<compile_context>
chip_gen: v7x
topology: tpu7x:2x2x1
jax: 0.10.0
libtpu: 0.0.40
codegen_flags: <defaults>
</compile_context>

<pallas_src>
import jax
import jax.numpy as jnp
from jax.experimental import pallas as pl
from jax.experimental.pallas import tpu as pltpu


def _round_up(v, m):
    return ((v + m - 1) // m) * m


def _repack_gate_cols(w, H, Hp):
    """Permute the 4H gate axis from torch order [i, f, g, o] to [i, f, o, g]
    and zero-pad each gate's columns from H to Hp.  w: (..., 4H) -> (..., 4Hp)."""
    i_w = w[..., 0 * H:1 * H]
    f_w = w[..., 1 * H:2 * H]
    g_w = w[..., 2 * H:3 * H]
    o_w = w[..., 3 * H:4 * H]
    pad = [(0, 0)] * (w.ndim - 1) + [(0, Hp - H)]
    return jnp.concatenate([jnp.pad(p, pad) for p in (i_w, f_w, o_w, g_w)],
                           axis=-1)


def _sigmoid(x):
    # One EUP tanh + cheap VPU mul/add (avoids a possible exp + reciprocal
    # lowering; relevant on v5e's single non-bf16 EUP).
    return 0.5 * jnp.tanh(0.5 * x) + 0.5


def _pick_time_block(T, tb_max):
    """Largest time block <= tb_max, preferring divisors of T (no tail mask)."""
    tb_max = max(1, min(int(tb_max), T))
    if tb_max >= T:
        return T
    best_div = max(d for d in range(1, tb_max + 1) if T % d == 0)
    if best_div * 2 >= tb_max:
        return best_div
    return tb_max


def _make_lstm_kernel(seq_len, block_t, n_time_blocks):
    """Recurrence kernel for static T, time-block TB and #time-blocks."""
    # Steps j < tail_valid are valid for EVERY time block; steps
    # j >= tail_valid are invalid only on the LAST time block.
    tail_valid = seq_len - (n_time_blocks - 1) * block_t      # in [1, block_t]

    def kernel(g_ref, wh_ref, h0_ref, c0_ref, out_ref, hN_ref, cN_ref,
               h_sc, c_sc):
        t = pl.program_id(1)
        n_t = pl.num_programs(1)
        Hp = h_sc.shape[1]                 # padded hidden dim (multiple of 128)
        mm_dtype = wh_ref.dtype

        @pl.when(t == 0)
        def _():
            h_sc[...] = h0_ref[...].astype(jnp.float32)
            c_sc[...] = c0_ref[...].astype(jnp.float32)

        def lstm_step(j, h, c):
            h_mm = h.astype(mm_dtype)
            g_row = g_ref[j]               # (BT, 4*Hp), compute dtype

            def gate(k):
                # Per-gate Hp-wide slice: small f32 temporaries, and the EUP
                # activation of slice k overlaps the MXU work of slice k+1.
                return (g_row[:, k * Hp:(k + 1) * Hp].astype(jnp.float32)
                        + jnp.dot(h_mm, wh_ref[:, k * Hp:(k + 1) * Hp],
                                  preferred_element_type=jnp.float32))

            # Repacked gate order along the 4*Hp axis: [i | f | o | g].
            i_g = _sigmoid(gate(0))
            f_g = _sigmoid(gate(1))
            o_g = _sigmoid(gate(2))
            g_g = jnp.tanh(gate(3))

            c_new = f_g * c + i_g * g_g
            h_new = o_g * jnp.tanh(c_new)
            out_ref[j] = h_new.astype(out_ref.dtype)
            return h_new, c_new

        h = h_sc[...]                      # f32 carries
        c = c_sc[...]

        # Bulk of the block: every one of these steps is valid for every
        # grid position -> no masking on the serial critical path.
        def body(j, carry):
            return lstm_step(j, *carry)

        h, c = jax.lax.fori_loop(0, tail_valid, body, (h, c), unroll=True)

        # Possibly-invalid tail steps (only exist when TB doesn't divide T).
        # They are invalid only on the LAST time block: freeze the carries
        # there; the (cropped) output rows may contain garbage.
        for j in range(tail_valid, block_t):
            h_new, c_new = lstm_step(j, h, c)
            keep = t < n_t - 1
            h = jnp.where(keep, h_new, h)
            c = jnp.where(keep, c_new, c)

        h_sc[...] = h
        c_sc[...] = c

        @pl.when(t == n_t - 1)
        def _():
            hN_ref[...] = h.astype(hN_ref.dtype)
            cN_ref[...] = c.astype(cN_ref.dtype)

    return kernel


def custom_lstm_forward(x, wx, bx, wh, state=None, *, time_block=None,
                        batch_tile=None, compute_dtype=jnp.bfloat16):
    """x: (T, B, D).  wx: (D, 4H), bx: (4H,), wh: (H, 4H) (torch weights
    transposed; torch gate order [i, f, g, o] along the 4H axis).

    time_block: timesteps per grid step (None -> derived from VMEM capacity).
    batch_tile: batch rows per grid block (set ~Bp//2 on v7x for megacore).
    compute_dtype: dtype of Wh and the streamed gate tensor (bf16 -> fast MXU).
    Returns (output (T, B, H), [h (B, H), c (B, H)])."""
    T, B, D = x.shape
    H = wh.shape[0]
    dt = x.dtype

    Hp = _round_up(H, 128)                 # lane alignment
    Bp = _round_up(B, 8)                   # sublane alignment
    if batch_tile is None:
        BT = Bp
    else:
        BT = _round_up(max(1, min(int(batch_tile), Bp)), 8)
    n_btiles = pl.cdiv(Bp, BT)
    Bp = n_btiles * BT

    # Repack weights: gate order [i, f, o, g], per-gate columns padded H -> Hp.
    wx_p = _repack_gate_cols(wx, H, Hp)                                 # (D, 4Hp)
    bx_p = _repack_gate_cols(bx.reshape(1, 4 * H), H, Hp)               # (1, 4Hp)
    wh_p = _repack_gate_cols(jnp.pad(wh, ((0, Hp - H), (0, 0))), H, Hp)  # (Hp, 4Hp)
    wh_p = wh_p.astype(compute_dtype)      # fast MXU path, half the VMEM

    if state is None:
        h0 = jnp.zeros((B, H), dtype=dt)
        c0 = jnp.zeros((B, H), dtype=dt)
    else:
        h0, c0 = state
    h0_p = jnp.pad(h0, ((0, Bp - B), (0, Hp - H)))
    c0_p = jnp.pad(c0, ((0, Bp - B), (0, Hp - H)))

    # Hoisted input projection (one large GEMM) in f32, stream stored in the
    # compute dtype (bf16 halves the dominant HBM stream and its VMEM blocks).
    x_p = jnp.pad(x, ((0, 0), (0, Bp - B), (0, 0)))                     # (T, Bp, D)
    gates_in = (jnp.einsum('tbd,dg->tbg', x_p, wx_p,
                           preferred_element_type=jnp.float32)
                + bx_p.astype(jnp.float32)).astype(compute_dtype)       # (T, Bp, 4Hp)

    # ---- Generation-aware VMEM policy / time-block selection. ----
    gate_isz = jnp.dtype(compute_dtype).itemsize
    out_isz = jnp.dtype(dt).itemsize
    io_isz = jnp.dtype(dt).itemsize
    f32sz = 4

    try:
        phys_vmem = int(pltpu.get_tpu_info().vmem_capacity_bytes)
    except Exception:
        phys_vmem = 64 * 1024 * 1024       # conservative (v7x per-TC)

    fixed_vmem = (Hp * 4 * Hp * gate_isz           # Wh, single-buffered
                  + 2 * BT * Hp * io_isz           # h0 + c0, single-buffered
                  + 2 * 2 * BT * Hp * io_isz       # hN + cN outputs
                  + 2 * BT * Hp * f32sz            # f32 h/c carries
                  + BT * 4 * Hp * gate_isz         # per-step gate-row load
                  + 6 * BT * Hp * f32sz)           # in-kernel f32 temporaries
    per_tb_vmem = (2 * BT * 4 * Hp * gate_isz      # gate stream (double-buffered)
                   + 2 * BT * Hp * out_isz)        # output slab (double-buffered)

    block_budget = max(int(phys_vmem * 0.70) - fixed_vmem, per_tb_vmem)
    if time_block is None:
        tb_max = max(1, min(block_budget // per_tb_vmem, T, 64))
        TB = _pick_time_block(T, tb_max)
    else:
        TB = max(1, min(int(time_block), T))

    n_tblocks = pl.cdiv(T, TB)
    T_pad = n_tblocks * TB
    if T_pad != T:
        gates_in = jnp.pad(gates_in, ((0, T_pad - T), (0, 0), (0, 0)))

    vmem_need = fixed_vmem + TB * per_tb_vmem
    vmem_limit = int(min(max(int(vmem_need * 1.25), 32 * 1024 * 1024),
                         phys_vmem - 8 * 1024 * 1024))

    kernel = _make_lstm_kernel(seq_len=T, block_t=TB, n_time_blocks=n_tblocks)

    const_buf = pl.Buffered(1)             # never re-fetched -> no double buffer
    grid_spec = pltpu.PrefetchScalarGridSpec(
        num_scalar_prefetch=0,
        grid=(n_btiles, n_tblocks),
        in_specs=[
            pl.BlockSpec((TB, BT, 4 * Hp), lambda bb, t: (t, bb, 0)),   # gates
            pl.BlockSpec((Hp, 4 * Hp), lambda bb, t: (0, 0),
                         pipeline_mode=const_buf),                      # Wh
            pl.BlockSpec((BT, Hp), lambda bb, t: (bb, 0),
                         pipeline_mode=const_buf),                      # h0
            pl.BlockSpec((BT, Hp), lambda bb, t: (bb, 0),
                         pipeline_mode=const_buf),                      # c0
        ],
        out_specs=[
            pl.BlockSpec((TB, BT, Hp), lambda bb, t: (t, bb, 0)),       # output slab
            pl.BlockSpec((BT, Hp), lambda bb, t: (bb, 0)),              # h final
            pl.BlockSpec((BT, Hp), lambda bb, t: (bb, 0)),              # c final
        ],
        scratch_shapes=[
            pltpu.VMEM((BT, Hp), jnp.float32),   # h carry
            pltpu.VMEM((BT, Hp), jnp.float32),   # c carry
        ],
    )

    out, h_n, c_n = pl.pallas_call(
        kernel,
        out_shape=(
            jax.ShapeDtypeStruct((T_pad, Bp, Hp), dt),
            jax.ShapeDtypeStruct((Bp, Hp), dt),
            jax.ShapeDtypeStruct((Bp, Hp), dt),
        ),
        grid_spec=grid_spec,
        compiler_params=pltpu.CompilerParams(
            dimension_semantics=("parallel", "arbitrary"),   # batch ∥, time serial
            vmem_limit_bytes=vmem_limit,
        ),
    )(gates_in, wh_p, h0_p, c0_p)

    return out[:T, :B, :H], [h_n[:B, :H], c_n[:B, :H]]


def _reference_forward(x, wx, bx, wh, state=None):
    """Pure-JAX reference mirroring the PyTorch loop (layer_norm=False)."""
    T, B, D = x.shape
    H = wh.shape[0]
    if state is None:
        h = jnp.zeros((B, H), dtype=x.dtype)
        c = jnp.zeros((B, H), dtype=x.dtype)
    else:
        h, c = state
    gated = jnp.einsum('tbd,dg->tbg', x, wx) + bx
    outs = []
    for t in range(T):
        gates = gated[t] + h @ wh
        i_g = jax.nn.sigmoid(gates[:, 0 * H:1 * H])
        f_g = jax.nn.sigmoid(gates[:, 1 * H:2 * H])
        g_g = jnp.tanh(gates[:, 2 * H:3 * H])
        o_g = jax.nn.sigmoid(gates[:, 3 * H:4 * H])
        c = f_g * c + i_g * g_g
        h = o_g * jnp.tanh(c)
        outs.append(h)
    return jnp.stack(outs, axis=0), [h, c]


if __name__ == "__main__":
    T, B, D, H = 8, 2, 16, 32
    key = jax.random.PRNGKey(0)
    kx, kwx, kbx, kwh, kx2 = jax.random.split(key, 5)

    x = jax.random.normal(kx, (T, B, D), dtype=jnp.float32)
    wx = jax.random.normal(kwx, (D, 4 * H), dtype=jnp.float32) * 0.1
    bx = jax.random.normal(kbx, (4 * H,), dtype=jnp.float32) * 0.1
    wh = jax.random.normal(kwh, (H, 4 * H), dtype=jnp.float32) * 0.1

    ref_out, (ref_h, ref_c) = _reference_forward(x, wx, bx, wh, state=None)

    # Case 1: f32 compute path, auto time block (divides T -> no tail masking).
    out, (h_n, c_n) = custom_lstm_forward(x, wx, bx, wh, state=None,
                                          compute_dtype=jnp.float32)
    jax.block_until_ready(out)
    assert out.shape == (T, B, H)
    assert jnp.allclose(out, ref_out, atol=2e-5, rtol=2e-5)
    assert jnp.allclose(h_n, ref_h, atol=2e-5, rtol=2e-5)
    assert jnp.allclose(c_n, ref_c, atol=2e-5, rtol=2e-5)

    # Case 2: non-divisor time block (exercises the masked tail-step path).
    out2, (h_n2, c_n2) = custom_lstm_forward(x, wx, bx, wh, state=None,
                                             time_block=3,
                                             compute_dtype=jnp.float32)
    jax.block_until_ready(out2)
    assert jnp.allclose(out2, ref_out, atol=2e-5, rtol=2e-5)
    assert jnp.allclose(h_n2, ref_h, atol=2e-5, rtol=2e-5)
    assert jnp.allclose(c_n2, ref_c, atol=2e-5, rtol=2e-5)

    # Case 3: default bf16 fast path (fast-MXU weights / gate stream).
    out3, (h_n3, c_n3) = custom_lstm_forward(x, wx, bx, wh, state=None)
    jax.block_until_ready(out3)
    assert jnp.allclose(out3, ref_out, atol=5e-2, rtol=5e-2)
    assert jnp.allclose(h_n3, ref_h, atol=5e-2, rtol=5e-2)
    assert jnp.allclose(c_n3, ref_c, atol=5e-2, rtol=5e-2)

    # Case 4: batch-tiled grid (megacore-style split on the parallel axis).
    B2 = 10
    x2 = jax.random.normal(kx2, (T, B2, D), dtype=jnp.float32)
    ref_out2, (ref_h2, ref_c2) = _reference_forward(x2, wx, bx, wh, state=None)
    out4, (h_n4, c_n4) = custom_lstm_forward(x2, wx, bx, wh, state=None,
                                             batch_tile=8,
                                             compute_dtype=jnp.float32)
    jax.block_until_ready(out4)
    assert out4.shape == (T, B2, H)
    assert jnp.allclose(out4, ref_out2, atol=2e-5, rtol=2e-5)
    assert jnp.allclose(h_n4, ref_h2, atol=2e-5, rtol=2e-5)
    assert jnp.allclose(c_n4, ref_c2, atol=2e-5, rtol=2e-5)

    print("KERNEL_OK")
</pallas_src>

<mosaic_0001>
module attributes {stable_mosaic.version = 11 : i64} {
  func.func @kernel(%arg0: i32, %arg1: i32, %arg2: memref<8x8x512xf32, #tpu.memory_space<vmem>>, %arg3: memref<128x512xf32, #tpu.memory_space<vmem>>, %arg4: memref<8x128xf32, #tpu.memory_space<vmem>>, %arg5: memref<8x128xf32, #tpu.memory_space<vmem>>, %arg6: memref<8x8x128xf32, #tpu.memory_space<vmem>>, %arg7: memref<8x128xf32, #tpu.memory_space<vmem>>, %arg8: memref<8x128xf32, #tpu.memory_space<vmem>>, %arg9: memref<8x128xf32, #tpu.memory_space<vmem>>, %arg10: memref<8x128xf32, #tpu.memory_space<vmem>>) attributes {dimension_semantics = [#tpu.dimension_semantics<parallel>, #tpu.dimension_semantics<arbitrary>], iteration_bounds = array<i64: 1, 1>, scalar_prefetch = 0 : i64, scratch_operands = 2 : i64, tpu.core_type = #tpu.core_type<tc>, window_params = [{transform_indices = @transform_0, window_bounds = array<i64: 8, 8, 512>}, {pipeline_mode = #tpu.pipeline_mode<synchronous>, transform_indices = @transform_1, window_bounds = array<i64: 128, 512>}, {pipeline_mode = #tpu.pipeline_mode<synchronous>, transform_indices = @transform_2, window_bounds = array<i64: 8, 128>}, {pipeline_mode = #tpu.pipeline_mode<synchronous>, transform_indices = @transform_3, window_bounds = array<i64: 8, 128>}, {transform_indices = @transform_4, window_bounds = array<i64: 8, 8, 128>}, {transform_indices = @transform_5, window_bounds = array<i64: 8, 128>}, {transform_indices = @transform_6, window_bounds = array<i64: 8, 128>}]} {
    %c0_i32 = arith.constant 0 : i32
    %0 = arith.cmpi eq, %arg1, %c0_i32 : i32
    %1 = arith.extui %0 : i1 to i32
    %c0_i32_0 = arith.constant 0 : i32
    %2 = arith.cmpi ne, %1, %c0_i32_0 : i32
    scf.if %2 {
      %c0_207 = arith.constant 0 : index
      %c0_208 = arith.constant 0 : index
      %410 = vector.load %arg4[%c0_207, %c0_208] : memref<8x128xf32, #tpu.memory_space<vmem>>, vector<8x128xf32>
      %c0_209 = arith.constant 0 : index
      %c0_210 = arith.constant 0 : index
      %411 = vector.load %arg9[%c0_209, %c0_210] : memref<8x128xf32, #tpu.memory_space<vmem>>, vector<8x128xf32>
      tpu.vector_store %arg9[%c0_209, %c0_210], %410 {strides = array<i32>} : memref<8x128xf32, #tpu.memory_space<vmem>>, vector<8x128xf32>,
      %c0_211 = arith.constant 0 : index
      %c0_212 = arith.constant 0 : index
      %412 = vector.load %arg5[%c0_211, %c0_212] : memref<8x128xf32, #tpu.memory_space<vmem>>, vector<8x128xf32>
      %c0_213 = arith.constant 0 : index
      %c0_214 = arith.constant 0 : index
      %413 = vector.load %arg10[%c0_213, %c0_214] : memref<8x128xf32, #tpu.memory_space<vmem>>, vector<8x128xf32>
      tpu.vector_store %arg10[%c0_213, %c0_214], %412 {strides = array<i32>} : memref<8x128xf32, #tpu.memory_space<vmem>>, vector<8x128xf32>,
    } else {
    }
    %c0 = arith.constant 0 : index
    %c0_1 = arith.constant 0 : index
    %3 = vector.load %arg9[%c0, %c0_1] : memref<8x128xf32, #tpu.memory_space<vmem>>, vector<8x128xf32>
    %c0_2 = arith.constant 0 : index
    %c0_3 = arith.constant 0 : index
    %4 = vector.load %arg10[%c0_2, %c0_3] : memref<8x128xf32, #tpu.memory_space<vmem>>, vector<8x128xf32>
    %c0_i32_4 = arith.constant 0 : i32
    %5 = arith.index_cast %c0_i32_4 : i32 to index
    %c0_5 = arith.constant 0 : index
    %c0_6 = arith.constant 0 : index
    %6 = vector.load %arg2[%5, %c0_5, %c0_6] : memref<8x8x512xf32, #tpu.memory_space<vmem>>, vector<1x8x512xf32>
    %7 = vector.shape_cast %6 : vector<1x8x512xf32> to vector<8x512xf32>
    %8 = vector.extract_strided_slice %7 {offsets = [0, 0], sizes = [8, 128], strides = [1, 1]} : vector<8x512xf32> to vector<8x128xf32>
    %c0_7 = arith.constant 0 : index
    %c0_8 = arith.constant 0 : index
    %9 = vector.load %arg3[%c0_7, %c0_8] : memref<128x512xf32, #tpu.memory_space<vmem>>, vector<128x128xf32>
    %cst = arith.constant dense<0.000000e+00> : vector<8x128xf32>
    %10 = tpu.matmul %3, %9, %cst {dimension_numbers = #tpu.dot_dimension_numbers<[1], [0], [0], [1], [0, 0, 1, 1], [], []>} : vector<8x128xf32>, vector<128x128xf32>, vector<8x128xf32> -> vector<8x128xf32>
    %11 = arith.addf %8, %10 : vector<8x128xf32>
    %cst_9 = arith.constant 5.000000e-01 : f32
    %12 = vector.broadcast %cst_9 : f32 to vector<8x128xf32>
    %13 = arith.mulf %12, %11 : vector<8x128xf32>
    %14 = math.tanh %13 : vector<8x128xf32>
    %cst_10 = arith.constant 5.000000e-01 : f32
    %15 = vector.broadcast %cst_10 : f32 to vector<8x128xf32>
    %16 = arith.mulf %15, %14 : vector<8x128xf32>
    %cst_11 = arith.constant 5.000000e-01 : f32
    %17 = vector.broadcast %cst_11 : f32 to vector<8x128xf32>
    %18 = arith.addf %16, %17 : vector<8x128xf32>
    %19 = vector.extract_strided_slice %7 {offsets = [0, 128], sizes = [8, 128], strides = [1, 1]} : vector<8x512xf32> to vector<8x128xf32>
    %c0_12 = arith.constant 0 : index
    %c128 = arith.constant 128 : index
    %20 = vector.load %arg3[%c0_12, %c128] : memref<128x512xf32, #tpu.memory_space<vmem>>, vector<128x128xf32>
    %cst_13 = arith.constant dense<0.000000e+00> : vector<8x128xf32>
    %21 = tpu.matmul %3, %20, %cst_13 {dimension_numbers = #tpu.dot_dimension_numbers<[1], [0], [0], [1], [0, 0, 1, 1], [], []>} : vector<8x128xf32>, vector<128x128xf32>, vector<8x128xf32> -> vector<8x128xf32>
    %22 = arith.addf %19, %21 : vector<8x128xf32>
    %cst_14 = arith.constant 5.000000e-01 : f32
    %23 = vector.broadcast %cst_14 : f32 to vector<8x128xf32>
    %24 = arith.mulf %23, %22 : vector<8x128xf32>
    %25 = math.tanh %24 : vector<8x128xf32>
    %cst_15 = arith.constant 5.000000e-01 : f32
    %26 = vector.broadcast %cst_15 : f32 to vector<8x128xf32>
    %27 = arith.mulf %26, %25 : vector<8x128xf32>
    %cst_16 = arith.constant 5.000000e-01 : f32
    %28 = vector.broadcast %cst_16 : f32 to vector<8x128xf32>
    %29 = arith.addf %27, %28 : vector<8x128xf32>
    %30 = vector.extract_strided_slice %7 {offsets = [0, 256], sizes = [8, 128], strides = [1, 1]} : vector<8x512xf32> to vector<8x128xf32>
    %c0_17 = arith.constant 0 : index
    %c256 = arith.constant 256 : index
    %31 = vector.load %arg3[%c0_17, %c256] : memref<128x512xf32, #tpu.memory_space<vmem>>, vector<128x128xf32>
    %cst_18 = arith.constant dense<0.000000e+00> : vector<8x128xf32>
    %32 = tpu.matmul %3, %31, %cst_18 {dimension_numbers = #tpu.dot_dimension_numbers<[1], [0], [0], [1], [0, 0, 1, 1], [], []>} : vector<8x128xf32>, vector<128x128xf32>, vector<8x128xf32> -> vector<8x128xf32>
    %33 = arith.addf %30, %32 : vector<8x128xf32>
    %cst_19 = arith.constant 5.000000e-01 : f32
    %34 = vector.broadcast %cst_19 : f32 to vector<8x128xf32>
    %35 = arith.mulf %34, %33 : vector<8x128xf32>
    %36 = math.tanh %35 : vector<8x128xf32>
    %cst_20 = arith.constant 5.000000e-01 : f32
    %37 = vector.broadcast %cst_20 : f32 to vector<8x128xf32>
    %38 = arith.mulf %37, %36 : vector<8x128xf32>
    %cst_21 = arith.constant 5.000000e-01 : f32
    %39 = vector.broadcast %cst_21 : f32 to vector<8x128xf32>
    %40 = arith.addf %38, %39 : vector<8x128xf32>
    %41 = vector.extract_strided_slice %7 {offsets = [0, 384], sizes = [8, 128], strides = [1, 1]} : vector<8x512xf32> to vector<8x128xf32>
    %c0_22 = arith.constant 0 : index
    %c384 = arith.constant 384 : index
    %42 = vector.load %arg3[%c0_22, %c384] : memref<128x512xf32, #tpu.memory_space<vmem>>, vector<128x128xf32>
    %cst_23 = arith.constant dense<0.000000e+00> : vector<8x128xf32>
    %43 = tpu.matmul %3, %42, %cst_23 {dimension_numbers = #tpu.dot_dimension_numbers<[1], [0], [0], [1], [0, 0, 1, 1], [], []>} : vector<8x128xf32>, vector<128x128xf32>, vector<8x128xf32> -> vector<8x128xf32>
    %44 = arith.addf %41, %43 : vector<8x128xf32>
    %45 = math.tanh %44 : vector<8x128xf32>
    %46 = arith.mulf %29, %4 : vector<8x128xf32>
    %47 = arith.mulf %18, %45 : vector<8x128xf32>
    %48 = arith.addf %46, %47 : vector<8x128xf32>
    %49 = math.tanh %48 : vector<8x128xf32>
    %50 = arith.mulf %40, %49 : vector<8x128xf32>
    %51 = arith.index_cast %c0_i32_4 : i32 to index
    %c0_24 = arith.constant 0 : index
    %c0_25 = arith.constant 0 : index
    %52 = vector.load %arg6[%51, %c0_24, %c0_25] : memref<8x8x128xf32, #tpu.memory_space<vmem>>, vector<1x8x128xf32>
    %53 = vector.shape_cast %52 : vector<1x8x128xf32> to vector<8x128xf32>
    %54 = vector.shape_cast %50 : vector<8x128xf32> to vector<1x8x128xf32>
    tpu.vector_store %arg6[%51, %c0_24, %c0_25], %54 {strides = array<i32>} : memref<8x8x128xf32, #tpu.memory_space<vmem>>, vector<1x8x128xf32>,
    %c1_i32 = arith.constant 1 : i32
    %55 = arith.index_cast %c1_i32 : i32 to index
    %c0_26 = arith.constant 0 : index
    %c0_27 = arith.constant 0 : index
    %56 = vector.load %arg2[%55, %c0_26, %c0_27] : memref<8x8x512xf32, #tpu.memory_space<vmem>>, vector<1x8x512xf32>
    %57 = vector.shape_cast %56 : vector<1x8x512xf32> to vector<8x512xf32>
    %58 = vector.extract_strided_slice %57 {offsets = [0, 0], sizes = [8, 128], strides = [1, 1]} : vector<8x512xf32> to vector<8x128xf32>
    %c0_28 = arith.constant 0 : index
    %c0_29 = arith.constant 0 : index
    %59 = vector.load %arg3[%c0_28, %c0_29] : memref<128x512xf32, #tpu.memory_space<vmem>>, vector<128x128xf32>
    %cst_30 = arith.constant dense<0.000000e+00> : vector<8x128xf32>
    %60 = tpu.matmul %50, %59, %cst_30 {dimension_numbers = #tpu.dot_dimension_numbers<[1], [0], [0], [1], [0, 0, 1, 1], [], []>} : vector<8x128xf32>, vector<128x128xf32>, vector<8x128xf32> -> vector<8x128xf32>
    %61 = arith.addf %58, %60 : vector<8x128xf32>
    %cst_31 = arith.constant 5.000000e-01 : f32
    %62 = vector.broadcast %cst_31 : f32 to vector<8x128xf32>
    %63 = arith.mulf %62, %61 : vector<8x128xf32>
    %64 = math.tanh %63 : vector<8x128xf32>
    %cst_32 = arith.constant 5.000000e-01 : f32
    %65 = vector.broadcast %cst_32 : f32 to vector<8x128xf32>
    %66 = arith.mulf %65, %64 : vector<8x128xf32>
    %cst_33 = arith.constant 5.000000e-01 : f32
    %67 = vector.broadcast %cst_33 : f32 to vector<8x128xf32>
    %68 = arith.addf %66, %67 : vector<8x128xf32>
    %69 = vector.extract_strided_slice %57 {offsets = [0, 128], sizes = [8, 128], strides = [1, 1]} : vector<8x512xf32> to vector<8x128xf32>
    %c0_34 = arith.constant 0 : index
    %c128_35 = arith.constant 128 : index
    %70 = vector.load %arg3[%c0_34, %c128_35] : memref<128x512xf32, #tpu.memory_space<vmem>>, vector<128x128xf32>
    %cst_36 = arith.constant dense<0.000000e+00> : vector<8x128xf32>
    %71 = tpu.matmul %50, %70, %cst_36 {dimension_numbers = #tpu.dot_dimension_numbers<[1], [0], [0], [1], [0, 0, 1, 1], [], []>} : vector<8x128xf32>, vector<128x128xf32>, vector<8x128xf32> -> vector<8x128xf32>
    %72 = arith.addf %69, %71 : vector<8x128xf32>
    %cst_37 = arith.constant 5.000000e-01 : f32
    %73 = vector.broadcast %cst_37 : f32 to vector<8x128xf32>
    %74 = arith.mulf %73, %72 : vector<8x128xf32>
    %75 = math.tanh %74 : vector<8x128xf32>
    %cst_38 = arith.constant 5.000000e-01 : f32
    %76 = vector.broadcast %cst_38 : f32 to vector<8x128xf32>
    %77 = arith.mulf %76, %75 : vector<8x128xf32>
    %cst_39 = arith.constant 5.000000e-01 : f32
    %78 = vector.broadcast %cst_39 : f32 to vector<8x128xf32>
    %79 = arith.addf %77, %78 : vector<8x128xf32>
    %80 = vector.extract_strided_slice %57 {offsets = [0, 256], sizes = [8, 128], strides = [1, 1]} : vector<8x512xf32> to vector<8x128xf32>
    %c0_40 = arith.constant 0 : index
    %c256_41 = arith.constant 256 : index
    %81 = vector.load %arg3[%c0_40, %c256_41] : memref<128x512xf32, #tpu.memory_space<vmem>>, vector<128x128xf32>
    %cst_42 = arith.constant dense<0.000000e+00> : vector<8x128xf32>
    %82 = tpu.matmul %50, %81, %cst_42 {dimension_numbers = #tpu.dot_dimension_numbers<[1], [0], [0], [1], [0, 0, 1, 1], [], []>} : vector<8x128xf32>, vector<128x128xf32>, vector<8x128xf32> -> vector<8x128xf32>
    %83 = arith.addf %80, %82 : vector<8x128xf32>
    %cst_43 = arith.constant 5.000000e-01 : f32
    %84 = vector.broadcast %cst_43 : f32 to vector<8x128xf32>
    %85 = arith.mulf %84, %83 : vector<8x128xf32>
    %86 = math.tanh %85 : vector<8x128xf32>
    %cst_44 = arith.constant 5.000000e-01 : f32
    %87 = vector.broadcast %cst_44 : f32 to vector<8x128xf32>
    %88 = arith.mulf %87, %86 : vector<8x128xf32>
    %cst_45 = arith.constant 5.000000e-01 : f32
    %89 = vector.broadcast %cst_45 : f32 to vector<8x128xf32>
    %90 = arith.addf %88, %89 : vector<8x128xf32>
    %91 = vector.extract_strided_slice %57 {offsets = [0, 384], sizes = [8, 128], strides = [1, 1]} : vector<8x512xf32> to vector<8x128xf32>
    %c0_46 = arith.constant 0 : index
    %c384_47 = arith.constant 384 : index
    %92 = vector.load %arg3[%c0_46, %c384_47] : memref<128x512xf32, #tpu.memory_space<vmem>>, vector<128x128xf32>
    %cst_48 = arith.constant dense<0.000000e+00> : vector<8x128xf32>
    %93 = tpu.matmul %50, %92, %cst_48 {dimension_numbers = #tpu.dot_dimension_numbers<[1], [0], [0], [1], [0, 0, 1, 1], [], []>} : vector<8x128xf32>, vector<128x128xf32>, vector<8x128xf32> -> vector<8x128xf32>
    %94 = arith.addf %91, %93 : vector<8x128xf32>
    %95 = math.tanh %94 : vector<8x128xf32>
    %96 = arith.mulf %79, %48 : vector<8x128xf32>
    %97 = arith.mulf %68, %95 : vector<8x128xf32>
    %98 = arith.addf %96, %97 : vector<8x128xf32>
    %99 = math.tanh %98 : vector<8x128xf32>
    %100 = arith.mulf %90, %99 : vector<8x128xf32>
    %101 = arith.index_cast %c1_i32 : i32 to index
    %c0_49 = arith.constant 0 : index
    %c0_50 = arith.constant 0 : index
    %102 = vector.load %arg6[%101, %c0_49, %c0_50] : memref<8x8x128xf32, #tpu.memory_space<vmem>>, vector<1x8x128xf32>
    %103 = vector.shape_cast %102 : vector<1x8x128xf32> to vector<8x128xf32>
    %104 = vector.shape_cast %100 : vector<8x128xf32> to vector<1x8x128xf32>
    tpu.vector_store %arg6[%101, %c0_49, %c0_50], %104 {strides = array<i32>} : memref<8x8x128xf32, #tpu.memory_space<vmem>>, vector<1x8x128xf32>,
    %c2_i32 = arith.constant 2 : i32
    %105 = arith.index_cast %c2_i32 : i32 to index
    %c0_51 = arith.constant 0 : index
    %c0_52 = arith.constant 0 : index
    %106 = vector.load %arg2[%105, %c0_51, %c0_52] : memref<8x8x512xf32, #tpu.memory_space<vmem>>, vector<1x8x512xf32>
    %107 = vector.shape_cast %106 : vector<1x8x512xf32> to vector<8x512xf32>
    %108 = vector.extract_strided_slice %107 {offsets = [0, 0], sizes = [8, 128], strides = [1, 1]} : vector<8x512xf32> to vector<8x128xf32>
    %c0_53 = arith.constant 0 : index
    %c0_54 = arith.constant 0 : index
    %109 = vector.load %arg3[%c0_53, %c0_54] : memref<128x512xf32, #tpu.memory_space<vmem>>, vector<128x128xf32>
    %cst_55 = arith.constant dense<0.000000e+00> : vector<8x128xf32>
    %110 = tpu.matmul %100, %109, %cst_55 {dimension_numbers = #tpu.dot_dimension_numbers<[1], [0], [0], [1], [0, 0, 1, 1], [], []>} : vector<8x128xf32>, vector<128x128xf32>, vector<8x128xf32> -> vector<8x128xf32>
    %111 = arith.addf %108, %110 : vector<8x128xf32>
    %cst_56 = arith.constant 5.000000e-01 : f32
    %112 = vector.broadcast %cst_56 : f32 to vector<8x128xf32>
    %113 = arith.mulf %112, %111 : vector<8x128xf32>
    %114 = math.tanh %113 : vector<8x128xf32>
    %cst_57 = arith.constant 5.000000e-01 : f32
    %115 = vector.broadcast %cst_57 : f32 to vector<8x128xf32>
    %116 = arith.mulf %115, %114 : vector<8x128xf32>
    %cst_58 = arith.constant 5.000000e-01 : f32
    %117 = vector.broadcast %cst_58 : f32 to vector<8x128xf32>
    %118 = arith.addf %116, %117 : vector<8x128xf32>
    %119 = vector.extract_strided_slice %107 {offsets = [0, 128], sizes = [8, 128], strides = [1, 1]} : vector<8x512xf32> to vector<8x128xf32>
    %c0_59 = arith.constant 0 : index
    %c128_60 = arith.constant 128 : index
    %120 = vector.load %arg3[%c0_59, %c128_60] : memref<128x512xf32, #tpu.memory_space<vmem>>, vector<128x128xf32>
    %cst_61 = arith.constant dense<0.000000e+00> : vector<8x128xf32>
    %121 = tpu.matmul %100, %120, %cst_61 {dimension_numbers = #tpu.dot_dimension_numbers<[1], [0], [0], [1], [0, 0, 1, 1], [], []>} : vector<8x128xf32>, vector<128x128xf32>, vector<8x128xf32> -> vector<8x128xf32>
    %122 = arith.addf %119, %121 : vector<8x128xf32>
    %cst_62 = arith.constant 5.000000e-01 : f32
    %123 = vector.broadcast %cst_62 : f32 to vector<8x128xf32>
    %124 = arith.mulf %123, %122 : vector<8x128xf32>
    %125 = math.tanh %124 : vector<8x128xf32>
    %cst_63 = arith.constant 5.000000e-01 : f32
    %126 = vector.broadcast %cst_63 : f32 to vector<8x128xf32>
    %127 = arith.mulf %126, %125 : vector<8x128xf32>
    %cst_64 = arith.constant 5.000000e-01 : f32
    %128 = vector.broadcast %cst_64 : f32 to vector<8x128xf32>
    %129 = arith.addf %127, %128 : vector<8x128xf32>
    %130 = vector.extract_strided_slice %107 {offsets = [0, 256], sizes = [8, 128], strides = [1, 1]} : vector<8x512xf32> to vector<8x128xf32>
    %c0_65 = arith.constant 0 : index
    %c256_66 = arith.constant 256 : index
    %131 = vector.load %arg3[%c0_65, %c256_66] : memref<128x512xf32, #tpu.memory_space<vmem>>, vector<128x128xf32>
    %cst_67 = arith.constant dense<0.000000e+00> : vector<8x128xf32>
    %132 = tpu.matmul %100, %131, %cst_67 {dimension_numbers = #tpu.dot_dimension_numbers<[1], [0], [0], [1], [0, 0, 1, 1], [], []>} : vector<8x128xf32>, vector<128x128xf32>, vector<8x128xf32> -> vector<8x128xf32>
    %133 = arith.addf %130, %132 : vector<8x128xf32>
    %cst_68 = arith.constant 5.000000e-01 : f32
    %134 = vector.broadcast %cst_68 : f32 to vector<8x128xf32>
    %135 = arith.mulf %134, %133 : vector<8x128xf32>
    %136 = math.tanh %135 : vector<8x128xf32>
    %cst_69 = arith.constant 5.000000e-01 : f32
    %137 = vector.broadcast %cst_69 : f32 to vector<8x128xf32>
    %138 = arith.mulf %137, %136 : vector<8x128xf32>
    %cst_70 = arith.constant 5.000000e-01 : f32
    %139 = vector.broadcast %cst_70 : f32 to vector<8x128xf32>
    %140 = arith.addf %138, %139 : vector<8x128xf32>
    %141 = vector.extract_strided_slice %107 {offsets = [0, 384], sizes = [8, 128], strides = [1, 1]} : vector<8x512xf32> to vector<8x128xf32>
    %c0_71 = arith.constant 0 : index
    %c384_72 = arith.constant 384 : index
    %142 = vector.load %arg3[%c0_71, %c384_72] : memref<128x512xf32, #tpu.memory_space<vmem>>, vector<128x128xf32>
    %cst_73 = arith.constant dense<0.000000e+00> : vector<8x128xf32>
    %143 = tpu.matmul %100, %142, %cst_73 {dimension_numbers = #tpu.dot_dimension_numbers<[1], [0], [0], [1], [0, 0, 1, 1], [], []>} : vector<8x128xf32>, vector<128x128xf32>, vector<8x128xf32> -> vector<8x128xf32>
    %144 = arith.addf %141, %143 : vector<8x128xf32>
    %145 = math.tanh %144 : vector<8x128xf32>
    %146 = arith.mulf %129, %98 : vector<8x128xf32>
    %147 = arith.mulf %118, %145 : vector<8x128xf32>
    %148 = arith.addf %146, %147 : vector<8x128xf32>
    %149 = math.tanh %148 : vector<8x128xf32>
    %150 = arith.mulf %140, %149 : vector<8x128xf32>
    %151 = arith.index_cast %c2_i32 : i32 to index
    %c0_74 = arith.constant 0 : index
    %c0_75 = arith.constant 0 : index
    %152 = vector.load %arg6[%151, %c0_74, %c0_75] : memref<8x8x128xf32, #tpu.memory_space<vmem>>, vector<1x8x128xf32>
    %153 = vector.shape_cast %152 : vector<1x8x128xf32> to vector<8x128xf32>
    %154 = vector.shape_cast %150 : vector<8x128xf32> to vector<1x8x128xf32>
    tpu.vector_store %arg6[%151, %c0_74, %c0_75], %154 {strides = array<i32>} : memref<8x8x128xf32, #tpu.memory_space<vmem>>, vector<1x8x128xf32>,
    %c3_i32 = arith.constant 3 : i32
    %155 = arith.index_cast %c3_i32 : i32 to index
    %c0_76 = arith.constant 0 : index
    %c0_77 = arith.constant 0 : index
    %156 = vector.load %arg2[%155, %c0_76, %c0_77] : memref<8x8x512xf32, #tpu.memory_space<vmem>>, vector<1x8x512xf32>
    %157 = vector.shape_cast %156 : vector<1x8x512xf32> to vector<8x512xf32>
    %158 = vector.extract_strided_slice %157 {offsets = [0, 0], sizes = [8, 128], strides = [1, 1]} : vector<8x512xf32> to vector<8x128xf32>
    %c0_78 = arith.constant 0 : index
    %c0_79 = arith.constant 0 : index
    %159 = vector.load %arg3[%c0_78, %c0_79] : memref<128x512xf32, #tpu.memory_space<vmem>>, vector<128x128xf32>
    %cst_80 = arith.constant dense<0.000000e+00> : vector<8x128xf32>
    %160 = tpu.matmul %150, %159, %cst_80 {dimension_numbers = #tpu.dot_dimension_numbers<[1], [0], [0], [1], [0, 0, 1, 1], [], []>} : vector<8x128xf32>, vector<128x128xf32>, vector<8x128xf32> -> vector<8x128xf32>
    %161 = arith.addf %158, %160 : vector<8x128xf32>
    %cst_81 = arith.constant 5.000000e-01 : f32
    %162 = vector.broadcast %cst_81 : f32 to vector<8x128xf32>
    %163 = arith.mulf %162, %161 : vector<8x128xf32>
    %164 = math.tanh %163 : vector<8x128xf32>
    %cst_82 = arith.constant 5.000000e-01 : f32
    %165 = vector.broadcast %cst_82 : f32 to vector<8x128xf32>
    %166 = arith.mulf %165, %164 : vector<8x128xf32>
    %cst_83 = arith.constant 5.000000e-01 : f32
    %167 = vector.broadcast %cst_83 : f32 to vector<8x128xf32>
    %168 = arith.addf %166, %167 : vector<8x128xf32>
    %169 = vector.extract_strided_slice %157 {offsets = [0, 128], sizes = [8, 128], strides = [1, 1]} : vector<8x512xf32> to vector<8x128xf32>
    %c0_84 = arith.constant 0 : index
    %c128_85 = arith.constant 128 : index
    %170 = vector.load %arg3[%c0_84, %c128_85] : memref<128x512xf32, #tpu.memory_space<vmem>>, vector<128x128xf32>
    %cst_86 = arith.constant dense<0.000000e+00> : vector<8x128xf32>
    %171 = tpu.matmul %150, %170, %cst_86 {dimension_numbers = #tpu.dot_dimension_numbers<[1], [0], [0], [1], [0, 0, 1, 1], [], []>} : vector<8x128xf32>, vector<128x128xf32>, vector<8x128xf32> -> vector<8x128xf32>
    %172 = arith.addf %169, %171 : vector<8x128xf32>
    %cst_87 = arith.constant 5.000000e-01 : f32
    %173 = vector.broadcast %cst_87 : f32 to vector<8x128xf32>
    %174 = arith.mulf %173, %172 : vector<8x128xf32>
    %175 = math.tanh %174 : vector<8x128xf32>
    %cst_88 = arith.constant 5.000000e-01 : f32
    %176 = vector.broadcast %cst_88 : f32 to vector<8x128xf32>
    %177 = arith.mulf %176, %175 : vector<8x128xf32>
    %cst_89 = arith.constant 5.000000e-01 : f32
    %178 = vector.broadcast %cst_89 : f32 to vector<8x128xf32>
    %179 = arith.addf %177, %178 : vector<8x128xf32>
    %180 = vector.extract_strided_slice %157 {offsets = [0, 256], sizes = [8, 128], strides = [1, 1]} : vector<8x512xf32> to vector<8x128xf32>
    %c0_90 = arith.constant 0 : index
    %c256_91 = arith.constant 256 : index
    %181 = vector.load %arg3[%c0_90, %c256_91] : memref<128x512xf32, #tpu.memory_space<vmem>>, vector<128x128xf32>
    %cst_92 = arith.constant dense<0.000000e+00> : vector<8x128xf32>
    %182 = tpu.matmul %150, %181, %cst_92 {dimension_numbers = #tpu.dot_dimension_numbers<[1], [0], [0], [1], [0, 0, 1, 1], [], []>} : vector<8x128xf32>, vector<128x128xf32>, vector<8x128xf32> -> vector<8x128xf32>
    %183 = arith.addf %180, %182 : vector<8x128xf32>
    %cst_93 = arith.constant 5.000000e-01 : f32
    %184 = vector.broadcast %cst_93 : f32 to vector<8x128xf32>
    %185 = arith.mulf %184, %183 : vector<8x128xf32>
    %186 = math.tanh %185 : vector<8x128xf32>
    %cst_94 = arith.constant 5.000000e-01 : f32
    %187 = vector.broadcast %cst_94 : f32 to vector<8x128xf32>
    %188 = arith.mulf %187, %186 : vector<8x128xf32>
    %cst_95 = arith.constant 5.000000e-01 : f32
    %189 = vector.broadcast %cst_95 : f32 to vector<8x128xf32>
    %190 = arith.addf %188, %189 : vector<8x128xf32>
    %191 = vector.extract_strided_slice %157 {offsets = [0, 384], sizes = [8, 128], strides = [1, 1]} : vector<8x512xf32> to vector<8x128xf32>
    %c0_96 = arith.constant 0 : index
    %c384_97 = arith.constant 384 : index
    %192 = vector.load %arg3[%c0_96, %c384_97] : memref<128x512xf32, #tpu.memory_space<vmem>>, vector<128x128xf32>
    %cst_98 = arith.constant dense<0.000000e+00> : vector<8x128xf32>
    %193 = tpu.matmul %150, %192, %cst_98 {dimension_numbers = #tpu.dot_dimension_numbers<[1], [0], [0], [1], [0, 0, 1, 1], [], []>} : vector<8x128xf32>, vector<128x128xf32>, vector<8x128xf32> -> vector<8x128xf32>
    %194 = arith.addf %191, %193 : vector<8x128xf32>
    %195 = math.tanh %194 : vector<8x128xf32>
    %196 = arith.mulf %179, %148 : vector<8x128xf32>
    %197 = arith.mulf %168, %195 : vector<8x128xf32>
    %198 = arith.addf %196, %197 : vector<8x128xf32>
    %199 = math.tanh %198 : vector<8x128xf32>
    %200 = arith.mulf %190, %199 : vector<8x128xf32>
    %201 = arith.index_cast %c3_i32 : i32 to index
    %c0_99 = arith.constant 0 : index
    %c0_100 = arith.constant 0 : index
    %202 = vector.load %arg6[%201, %c0_99, %c0_100] : memref<8x8x128xf32, #tpu.memory_space<vmem>>, vector<1x8x128xf32>
    %203 = vector.shape_cast %202 : vector<1x8x128xf32> to vector<8x128xf32>
    %204 = vector.shape_cast %200 : vector<8x128xf32> to vector<1x8x128xf32>
    tpu.vector_store %arg6[%201, %c0_99, %c0_100], %204 {strides = array<i32>} : memref<8x8x128xf32, #tpu.memory_space<vmem>>, vector<1x8x128xf32>,
    %c4_i32 = arith.constant 4 : i32
    %205 = arith.index_cast %c4_i32 : i32 to index
    %c0_101 = arith.constant 0 : index
    %c0_102 = arith.constant 0 : index
    %206 = vector.load %arg2[%205, %c0_101, %c0_102] : memref<8x8x512xf32, #tpu.memory_space<vmem>>, vector<1x8x512xf32>
    %207 = vector.shape_cast %206 : vector<1x8x512xf32> to vector<8x512xf32>
    %208 = vector.extract_strided_slice %207 {offsets = [0, 0], sizes = [8, 128], strides = [1, 1]} : vector<8x512xf32> to vector<8x128xf32>
    %c0_103 = arith.constant 0 : index
    %c0_104 = arith.constant 0 : index
    %209 = vector.load %arg3[%c0_103, %c0_104] : memref<128x512xf32, #tpu.memory_space<vmem>>, vector<128x128xf32>
    %cst_105 = arith.constant dense<0.000000e+00> : vector<8x128xf32>
    %210 = tpu.matmul %200, %209, %cst_105 {dimension_numbers = #tpu.dot_dimension_numbers<[1], [0], [0], [1], [0, 0, 1, 1], [], []>} : vector<8x128xf32>, vector<128x128xf32>, vector<8x128xf32> -> vector<8x128xf32>
    %211 = arith.addf %208, %210 : vector<8x128xf32>
    %cst_106 = arith.constant 5.000000e-01 : f32
    %212 = vector.broadcast %cst_106 : f32 to vector<8x128xf32>
    %213 = arith.mulf %212, %211 : vector<8x128xf32>
    %214 = math.tanh %213 : vector<8x128xf32>
    %cst_107 = arith.constant 5.000000e-01 : f32
    %215 = vector.broadcast %cst_107 : f32 to vector<8x128xf32>
    %216 = arith.mulf %215, %214 : vector<8x128xf32>
    %cst_108 = arith.constant 5.000000e-01 : f32
    %217 = vector.broadcast %cst_108 : f32 to vector<8x128xf32>
    %218 = arith.addf %216, %217 : vector<8x128xf32>
    %219 = vector.extract_strided_slice %207 {offsets = [0, 128], sizes = [8, 128], strides = [1, 1]} : vector<8x512xf32> to vector<8x128xf32>
    %c0_109 = arith.constant 0 : index
    %c128_110 = arith.constant 128 : index
    %220 = vector.load %arg3[%c0_109, %c128_110] : memref<128x512xf32, #tpu.memory_space<vmem>>, vector<128x128xf32>
    %cst_111 = arith.constant dense<0.000000e+00> : vector<8x128xf32>
    %221 = tpu.matmul %200, %220, %cst_111 {dimension_numbers = #tpu.dot_dimension_numbers<[1], [0], [0], [1], [0, 0, 1, 1], [], []>} : vector<8x128xf32>, vector<128x128xf32>, vector<8x128xf32> -> vector<8x128xf32>
    %222 = arith.addf %219, %221 : vector<8x128xf32>
    %cst_112 = arith.constant 5.000000e-01 : f32
    %223 = vector.broadcast %cst_112 : f32 to vector<8x128xf32>
    %224 = arith.mulf %223, %222 : vector<8x128xf32>
    %225 = math.tanh %224 : vector<8x128xf32>
    %cst_113 = arith.constant 5.000000e-01 : f32
    %226 = vector.broadcast %cst_113 : f32 to vector<8x128xf32>
    %227 = arith.mulf %226, %225 : vector<8x128xf32>
    %cst_114 = arith.constant 5.000000e-01 : f32
    %228 = vector.broadcast %cst_114 : f32 to vector<8x128xf32>
    %229 = arith.addf %227, %228 : vector<8x128xf32>
    %230 = vector.extract_strided_slice %207 {offsets = [0, 256], sizes = [8, 128], strides = [1, 1]} : vector<8x512xf32> to vector<8x128xf32>
    %c0_115 = arith.constant 0 : index
    %c256_116 = arith.constant 256 : index
    %231 = vector.load %arg3[%c0_115, %c256_116] : memref<128x512xf32, #tpu.memory_space<vmem>>, vector<128x128xf32>
    %cst_117 = arith.constant dense<0.000000e+00> : vector<8x128xf32>
    %232 = tpu.matmul %200, %231, %cst_117 {dimension_numbers = #tpu.dot_dimension_numbers<[1], [0], [0], [1], [0, 0, 1, 1], [], []>} : vector<8x128xf32>, vector<128x128xf32>, vector<8x128xf32> -> vector<8x128xf32>
    %233 = arith.addf %230, %232 : vector<8x128xf32>
    %cst_118 = arith.constant 5.000000e-01 : f32
    %234 = vector.broadcast %cst_118 : f32 to vector<8x128xf32>
    %235 = arith.mulf %234, %233 : vector<8x128xf32>
    %236 = math.tanh %235 : vector<8x128xf32>
    %cst_119 = arith.constant 5.000000e-01 : f32
    %237 = vector.broadcast %cst_119 : f32 to vector<8x128xf32>
    %238 = arith.mulf %237, %236 : vector<8x128xf32>
    %cst_120 = arith.constant 5.000000e-01 : f32
    %239 = vector.broadcast %cst_120 : f32 to vector<8x128xf32>
    %240 = arith.addf %238, %239 : vector<8x128xf32>
    %241 = vector.extract_strided_slice %207 {offsets = [0, 384], sizes = [8, 128], strides = [1, 1]} : vector<8x512xf32> to vector<8x128xf32>
    %c0_121 = arith.constant 0 : index
    %c384_122 = arith.constant 384 : index
    %242 = vector.load %arg3[%c0_121, %c384_122] : memref<128x512xf32, #tpu.memory_space<vmem>>, vector<128x128xf32>
    %cst_123 = arith.constant dense<0.000000e+00> : vector<8x128xf32>
    %243 = tpu.matmul %200, %242, %cst_123 {dimension_numbers = #tpu.dot_dimension_numbers<[1], [0], [0], [1], [0, 0, 1, 1], [], []>} : vector<8x128xf32>, vector<128x128xf32>, vector<8x128xf32> -> vector<8x128xf32>
    %244 = arith.addf %241, %243 : vector<8x128xf32>
    %245 = math.tanh %244 : vector<8x128xf32>
    %246 = arith.mulf %229, %198 : vector<8x128xf32>
    %247 = arith.mulf %218, %245 : vector<8x128xf32>
    %248 = arith.addf %246, %247 : vector<8x128xf32>
    %249 = math.tanh %248 : vector<8x128xf32>
    %250 = arith.mulf %240, %249 : vector<8x128xf32>
    %251 = arith.index_cast %c4_i32 : i32 to index
    %c0_124 = arith.constant 0 : index
    %c0_125 = arith.constant 0 : index
    %252 = vector.load %arg6[%251, %c0_124, %c0_125] : memref<8x8x128xf32, #tpu.memory_space<vmem>>, vector<1x8x128xf32>
    %253 = vector.shape_cast %252 : vector<1x8x128xf32> to vector<8x128xf32>
    %254 = vector.shape_cast %250 : vector<8x128xf32> to vector<1x8x128xf32>
    tpu.vector_store %arg6[%251, %c0_124, %c0_125], %254 {strides = array<i32>} : memref<8x8x128xf32, #tpu.memory_space<vmem>>, vector<1x8x128xf32>,
    %c5_i32 = arith.constant 5 : i32
    %255 = arith.index_cast %c5_i32 : i32 to index
    %c0_126 = arith.constant 0 : index
    %c0_127 = arith.constant 0 : index
    %256 = vector.load %arg2[%255, %c0_126, %c0_127] : memref<8x8x512xf32, #tpu.memory_space<vmem>>, vector<1x8x512xf32>
    %257 = vector.shape_cast %256 : vector<1x8x512xf32> to vector<8x512xf32>
    %258 = vector.extract_strided_slice %257 {offsets = [0, 0], sizes = [8, 128], strides = [1, 1]} : vector<8x512xf32> to vector<8x128xf32>
    %c0_128 = arith.constant 0 : index
    %c0_129 = arith.constant 0 : index
    %259 = vector.load %arg3[%c0_128, %c0_129] : memref<128x512xf32, #tpu.memory_space<vmem>>, vector<128x128xf32>
    %cst_130 = arith.constant dense<0.000000e+00> : vector<8x128xf32>
    %260 = tpu.matmul %250, %259, %cst_130 {dimension_numbers = #tpu.dot_dimension_numbers<[1], [0], [0], [1], [0, 0, 1, 1], [], []>} : vector<8x128xf32>, vector<128x128xf32>, vector<8x128xf32> -> vector<8x128xf32>
    %261 = arith.addf %258, %260 : vector<8x128xf32>
    %cst_131 = arith.constant 5.000000e-01 : f32
    %262 = vector.broadcast %cst_131 : f32 to vector<8x128xf32>
    %263 = arith.mulf %262, %261 : vector<8x128xf32>
    %264 = math.tanh %263 : vector<8x128xf32>
    %cst_132 = arith.constant 5.000000e-01 : f32
    %265 = vector.broadcast %cst_132 : f32 to vector<8x128xf32>
    %266 = arith.mulf %265, %264 : vector<8x128xf32>
    %cst_133 = arith.constant 5.000000e-01 : f32
    %267 = vector.broadcast %cst_133 : f32 to vector<8x128xf32>
    %268 = arith.addf %266, %267 : vector<8x128xf32>
    %269 = vector.extract_strided_slice %257 {offsets = [0, 128], sizes = [8, 128], strides = [1, 1]} : vector<8x512xf32> to vector<8x128xf32>
    %c0_134 = arith.constant 0 : index
    %c128_135 = arith.constant 128 : index
    %270 = vector.load %arg3[%c0_134, %c128_135] : memref<128x512xf32, #tpu.memory_space<vmem>>, vector<128x128xf32>
    %cst_136 = arith.constant dense<0.000000e+00> : vector<8x128xf32>
    %271 = tpu.matmul %250, %270, %cst_136 {dimension_numbers = #tpu.dot_dimension_numbers<[1], [0], [0], [1], [0, 0, 1, 1], [], []>} : vector<8x128xf32>, vector<128x128xf32>, vector<8x128xf32> -> vector<8x128xf32>
    %272 = arith.addf %269, %271 : vector<8x128xf32>
    %cst_137 = arith.constant 5.000000e-01 : f32
    %273 = vector.broadcast %cst_137 : f32 to vector<8x128xf32>
    %274 = arith.mulf %273, %272 : vector<8x128xf32>
    %275 = math.tanh %274 : vector<8x128xf32>
    %cst_138 = arith.constant 5.000000e-01 : f32
    %276 = vector.broadcast %cst_138 : f32 to vector<8x128xf32>
    %277 = arith.mulf %276, %275 : vector<8x128xf32>
    %cst_139 = arith.constant 5.000000e-01 : f32
    %278 = vector.broadcast %cst_139 : f32 to vector<8x128xf32>
    %279 = arith.addf %277, %278 : vector<8x128xf32>
    %280 = vector.extract_strided_slice %257 {offsets = [0, 256], sizes = [8, 128], strides = [1, 1]} : vector<8x512xf32> to vector<8x128xf32>
    %c0_140 = arith.constant 0 : index
    %c256_141 = arith.constant 256 : index
    %281 = vector.load %arg3[%c0_140, %c256_141] : memref<128x512xf32, #tpu.memory_space<vmem>>, vector<128x128xf32>
    %cst_142 = arith.constant dense<0.000000e+00> : vector<8x128xf32>
    %282 = tpu.matmul %250, %281, %cst_142 {dimension_numbers = #tpu.dot_dimension_numbers<[1], [0], [0], [1], [0, 0, 1, 1], [], []>} : vector<8x128xf32>, vector<128x128xf32>, vector<8x128xf32> -> vector<8x128xf32>
    %283 = arith.addf %280, %282 : vector<8x128xf32>
    %cst_143 = arith.constant 5.000000e-01 : f32
    %284 = vector.broadcast %cst_143 : f32 to vector<8x128xf32>
    %285 = arith.mulf %284, %283 : vector<8x128xf32>
    %286 = math.tanh %285 : vector<8x128xf32>
    %cst_144 = arith.constant 5.000000e-01 : f32
    %287 = vector.broadcast %cst_144 : f32 to vector<8x128xf32>
    %288 = arith.mulf %287, %286 : vector<8x128xf32>
    %cst_145 = arith.constant 5.000000e-01 : f32
    %289 = vector.broadcast %cst_145 : f32 to vector<8x128xf32>
    %290 = arith.addf %288, %289 : vector<8x128xf32>
    %291 = vector.extract_strided_slice %257 {offsets = [0, 384], sizes = [8, 128], strides = [1, 1]} : vector<8x512xf32> to vector<8x128xf32>
    %c0_146 = arith.constant 0 : index
    %c384_147 = arith.constant 384 : index
    %292 = vector.load %arg3[%c0_146, %c384_147] : memref<128x512xf32, #tpu.memory_space<vmem>>, vector<128x128xf32>
    %cst_148 = arith.constant dense<0.000000e+00> : vector<8x128xf32>
    %293 = tpu.matmul %250, %292, %cst_148 {dimension_numbers = #tpu.dot_dimension_numbers<[1], [0], [0], [1], [0, 0, 1, 1], [], []>} : vector<8x128xf32>, vector<128x128xf32>, vector<8x128xf32> -> vector<8x128xf32>
    %294 = arith.addf %291, %293 : vector<8x128xf32>
    %295 = math.tanh %294 : vector<8x128xf32>
    %296 = arith.mulf %279, %248 : vector<8x128xf32>
    %297 = arith.mulf %268, %295 : vector<8x128xf32>
    %298 = arith.addf %296, %297 : vector<8x128xf32>
    %299 = math.tanh %298 : vector<8x128xf32>
    %300 = arith.mulf %290, %299 : vector<8x128xf32>
    %301 = arith.index_cast %c5_i32 : i32 to index
    %c0_149 = arith.constant 0 : index
    %c0_150 = arith.constant 0 : index
    %302 = vector.load %arg6[%301, %c0_149, %c0_150] : memref<8x8x128xf32, #tpu.memory_space<vmem>>, vector<1x8x128xf32>
    %303 = vector.shape_cast %302 : vector<1x8x128xf32> to vector<8x128xf32>
    %304 = vector.shape_cast %300 : vector<8x128xf32> to vector<1x8x128xf32>
    tpu.vector_store %arg6[%301, %c0_149, %c0_150], %304 {strides = array<i32>} : memref<8x8x128xf32, #tpu.memory_space<vmem>>, vector<1x8x128xf32>,
    %c6_i32 = arith.constant 6 : i32
    %305 = arith.index_cast %c6_i32 : i32 to index
    %c0_151 = arith.constant 0 : index
    %c0_152 = arith.constant 0 : index
    %306 = vector.load %arg2[%305, %c0_151, %c0_152] : memref<8x8x512xf32, #tpu.memory_space<vmem>>, vector<1x8x512xf32>
    %307 = vector.shape_cast %306 : vector<1x8x512xf32> to vector<8x512xf32>
    %308 = vector.extract_strided_slice %307 {offsets = [0, 0], sizes = [8, 128], strides = [1, 1]} : vector<8x512xf32> to vector<8x128xf32>
    %c0_153 = arith.constant 0 : index
    %c0_154 = arith.constant 0 : index
    %309 = vector.load %arg3[%c0_153, %c0_154] : memref<128x512xf32, #tpu.memory_space<vmem>>, vector<128x128xf32>
    %cst_155 = arith.constant dense<0.000000e+00> : vector<8x128xf32>
    %310 = tpu.matmul %300, %309, %cst_155 {dimension_numbers = #tpu.dot_dimension_numbers<[1], [0], [0], [1], [0, 0, 1, 1], [], []>} : vector<8x128xf32>, vector<128x128xf32>, vector<8x128xf32> -> vector<8x128xf32>
    %311 = arith.addf %308, %310 : vector<8x128xf32>
    %cst_156 = arith.constant 5.000000e-01 : f32
    %312 = vector.broadcast %cst_156 : f32 to vector<8x128xf32>
    %313 = arith.mulf %312, %311 : vector<8x128xf32>
    %314 = math.tanh %313 : vector<8x128xf32>
    %cst_157 = arith.constant 5.000000e-01 : f32
    %315 = vector.broadcast %cst_157 : f32 to vector<8x128xf32>
    %316 = arith.mulf %315, %314 : vector<8x128xf32>
    %cst_158 = arith.constant 5.000000e-01 : f32
    %317 = vector.broadcast %cst_158 : f32 to vector<8x128xf32>
    %318 = arith.addf %316, %317 : vector<8x128xf32>
    %319 = vector.extract_strided_slice %307 {offsets = [0, 128], sizes = [8, 128], strides = [1, 1]} : vector<8x512xf32> to vector<8x128xf32>
    %c0_159 = arith.constant 0 : index
    %c128_160 = arith.constant 128 : index
    %320 = vector.load %arg3[%c0_159, %c128_160] : memref<128x512xf32, #tpu.memory_space<vmem>>, vector<128x128xf32>
    %cst_161 = arith.constant dense<0.000000e+00> : vector<8x128xf32>
    %321 = tpu.matmul %300, %320, %cst_161 {dimension_numbers = #tpu.dot_dimension_numbers<[1], [0], [0], [1], [0, 0, 1, 1], [], []>} : vector<8x128xf32>, vector<128x128xf32>, vector<8x128xf32> -> vector<8x128xf32>
    %322 = arith.addf %319, %321 : vector<8x128xf32>
    %cst_162 = arith.constant 5.000000e-01 : f32
    %323 = vector.broadcast %cst_162 : f32 to vector<8x128xf32>
    %324 = arith.mulf %323, %322 : vector<8x128xf32>
    %325 = math.tanh %324 : vector<8x128xf32>
    %cst_163 = arith.constant 5.000000e-01 : f32
    %326 = vector.broadcast %cst_163 : f32 to vector<8x128xf32>
    %327 = arith.mulf %326, %325 : vector<8x128xf32>
    %cst_164 = arith.constant 5.000000e-01 : f32
    %328 = vector.broadcast %cst_164 : f32 to vector<8x128xf32>
    %329 = arith.addf %327, %328 : vector<8x128xf32>
    %330 = vector.extract_strided_slice %307 {offsets = [0, 256], sizes = [8, 128], strides = [1, 1]} : vector<8x512xf32> to vector<8x128xf32>
    %c0_165 = arith.constant 0 : index
    %c256_166 = arith.constant 256 : index
    %331 = vector.load %arg3[%c0_165, %c256_166] : memref<128x512xf32, #tpu.memory_space<vmem>>, vector<128x128xf32>
    %cst_167 = arith.constant dense<0.000000e+00> : vector<8x128xf32>
    %332 = tpu.matmul %300, %331, %cst_167 {dimension_numbers = #tpu.dot_dimension_numbers<[1], [0], [0], [1], [0, 0, 1, 1], [], []>} : vector<8x128xf32>, vector<128x128xf32>, vector<8x128xf32> -> vector<8x128xf32>
    %333 = arith.addf %330, %332 : vector<8x128xf32>
    %cst_168 = arith.constant 5.000000e-01 : f32
    %334 = vector.broadcast %cst_168 : f32 to vector<8x128xf32>
    %335 = arith.mulf %334, %333 : vector<8x128xf32>
    %336 = math.tanh %335 : vector<8x128xf32>
    %cst_169 = arith.constant 5.000000e-01 : f32
    %337 = vector.broadcast %cst_169 : f32 to vector<8x128xf32>
    %338 = arith.mulf %337, %336 : vector<8x128xf32>
    %cst_170 = arith.constant 5.000000e-01 : f32
    %339 = vector.broadcast %cst_170 : f32 to vector<8x128xf32>
    %340 = arith.addf %338, %339 : vector<8x128xf32>
    %341 = vector.extract_strided_slice %307 {offsets = [0, 384], sizes = [8, 128], strides = [1, 1]} : vector<8x512xf32> to vector<8x128xf32>
    %c0_171 = arith.constant 0 : index
    %c384_172 = arith.constant 384 : index
    %342 = vector.load %arg3[%c0_171, %c384_172] : memref<128x512xf32, #tpu.memory_space<vmem>>, vector<128x128xf32>
    %cst_173 = arith.constant dense<0.000000e+00> : vector<8x128xf32>
    %343 = tpu.matmul %300, %342, %cst_173 {dimension_numbers = #tpu.dot_dimension_numbers<[1], [0], [0], [1], [0, 0, 1, 1], [], []>} : vector<8x128xf32>, vector<128x128xf32>, vector<8x128xf32> -> vector<8x128xf32>
    %344 = arith.addf %341, %343 : vector<8x128xf32>
    %345 = math.tanh %344 : vector<8x128xf32>
    %346 = arith.mulf %329, %298 : vector<8x128xf32>
    %347 = arith.mulf %318, %345 : vector<8x128xf32>
    %348 = arith.addf %346, %347 : vector<8x128xf32>
    %349 = math.tanh %348 : vector<8x128xf32>
    %350 = arith.mulf %340, %349 : vector<8x128xf32>
    %351 = arith.index_cast %c6_i32 : i32 to index
    %c0_174 = arith.constant 0 : index
    %c0_175 = arith.constant 0 : index
    %352 = vector.load %arg6[%351, %c0_174, %c0_175] : memref<8x8x128xf32, #tpu.memory_space<vmem>>, vector<1x8x128xf32>
    %353 = vector.shape_cast %352 : vector<1x8x128xf32> to vector<8x128xf32>
    %354 = vector.shape_cast %350 : vector<8x128xf32> to vector<1x8x128xf32>
    tpu.vector_store %arg6[%351, %c0_174, %c0_175], %354 {strides = array<i32>} : memref<8x8x128xf32, #tpu.memory_space<vmem>>, vector<1x8x128xf32>,
    %c7_i32 = arith.constant 7 : i32
    %355 = arith.index_cast %c7_i32 : i32 to index
    %c0_176 = arith.constant 0 : index
    %c0_177 = arith.constant 0 : index
    %356 = vector.load %arg2[%355, %c0_176, %c0_177] : memref<8x8x512xf32, #tpu.memory_space<vmem>>, vector<1x8x512xf32>
    %357 = vector.shape_cast %356 : vector<1x8x512xf32> to vector<8x512xf32>
    %358 = vector.extract_strided_slice %357 {offsets = [0, 0], sizes = [8, 128], strides = [1, 1]} : vector<8x512xf32> to vector<8x128xf32>
    %c0_178 = arith.constant 0 : index
    %c0_179 = arith.constant 0 : index
    %359 = vector.load %arg3[%c0_178, %c0_179] : memref<128x512xf32, #tpu.memory_space<vmem>>, vector<128x128xf32>
    %cst_180 = arith.constant dense<0.000000e+00> : vector<8x128xf32>
    %360 = tpu.matmul %350, %359, %cst_180 {dimension_numbers = #tpu.dot_dimension_numbers<[1], [0], [0], [1], [0, 0, 1, 1], [], []>} : vector<8x128xf32>, vector<128x128xf32>, vector<8x128xf32> -> vector<8x128xf32>
    %361 = arith.addf %358, %360 : vector<8x128xf32>
    %cst_181 = arith.constant 5.000000e-01 : f32
    %362 = vector.broadcast %cst_181 : f32 to vector<8x128xf32>
    %363 = arith.mulf %362, %361 : vector<8x128xf32>
    %364 = math.tanh %363 : vector<8x128xf32>
    %cst_182 = arith.constant 5.000000e-01 : f32
    %365 = vector.broadcast %cst_182 : f32 to vector<8x128xf32>
    %366 = arith.mulf %365, %364 : vector<8x128xf32>
    %cst_183 = arith.constant 5.000000e-01 : f32
    %367 = vector.broadcast %cst_183 : f32 to vector<8x128xf32>
    %368 = arith.addf %366, %367 : vector<8x128xf32>
    %369 = vector.extract_strided_slice %357 {offsets = [0, 128], sizes = [8, 128], strides = [1, 1]} : vector<8x512xf32> to vector<8x128xf32>
    %c0_184 = arith.constant 0 : index
    %c128_185 = arith.constant 128 : index
    %370 = vector.load %arg3[%c0_184, %c128_185] : memref<128x512xf32, #tpu.memory_space<vmem>>, vector<128x128xf32>
    %cst_186 = arith.constant dense<0.000000e+00> : vector<8x128xf32>
    %371 = tpu.matmul %350, %370, %cst_186 {dimension_numbers = #tpu.dot_dimension_numbers<[1], [0], [0], [1], [0, 0, 1, 1], [], []>} : vector<8x128xf32>, vector<128x128xf32>, vector<8x128xf32> -> vector<8x128xf32>
    %372 = arith.addf %369, %371 : vector<8x128xf32>
    %cst_187 = arith.constant 5.000000e-01 : f32
    %373 = vector.broadcast %cst_187 : f32 to vector<8x128xf32>
    %374 = arith.mulf %373, %372 : vector<8x128xf32>
    %375 = math.tanh %374 : vector<8x128xf32>
    %cst_188 = arith.constant 5.000000e-01 : f32
    %376 = vector.broadcast %cst_188 : f32 to vector<8x128xf32>
    %377 = arith.mulf %376, %375 : vector<8x128xf32>
    %cst_189 = arith.constant 5.000000e-01 : f32
    %378 = vector.broadcast %cst_189 : f32 to vector<8x128xf32>
    %379 = arith.addf %377, %378 : vector<8x128xf32>
    %380 = vector.extract_strided_slice %357 {offsets = [0, 256], sizes = [8, 128], strides = [1, 1]} : vector<8x512xf32> to vector<8x128xf32>
    %c0_190 = arith.constant 0 : index
    %c256_191 = arith.constant 256 : index
    %381 = vector.load %arg3[%c0_190, %c256_191] : memref<128x512xf32, #tpu.memory_space<vmem>>, vector<128x128xf32>
    %cst_192 = arith.constant dense<0.000000e+00> : vector<8x128xf32>
    %382 = tpu.matmul %350, %381, %cst_192 {dimension_numbers = #tpu.dot_dimension_numbers<[1], [0], [0], [1], [0, 0, 1, 1], [], []>} : vector<8x128xf32>, vector<128x128xf32>, vector<8x128xf32> -> vector<8x128xf32>
    %383 = arith.addf %380, %382 : vector<8x128xf32>
    %cst_193 = arith.constant 5.000000e-01 : f32
    %384 = vector.broadcast %cst_193 : f32 to vector<8x128xf32>
    %385 = arith.mulf %384, %383 : vector<8x128xf32>
    %386 = math.tanh %385 : vector<8x128xf32>
    %cst_194 = arith.constant 5.000000e-01 : f32
    %387 = vector.broadcast %cst_194 : f32 to vector<8x128xf32>
    %388 = arith.mulf %387, %386 : vector<8x128xf32>
    %cst_195 = arith.constant 5.000000e-01 : f32
    %389 = vector.broadcast %cst_195 : f32 to vector<8x128xf32>
    %390 = arith.addf %388, %389 : vector<8x128xf32>
    %391 = vector.extract_strided_slice %357 {offsets = [0, 384], sizes = [8, 128], strides = [1, 1]} : vector<8x512xf32> to vector<8x128xf32>
    %c0_196 = arith.constant 0 : index
    %c384_197 = arith.constant 384 : index
    %392 = vector.load %arg3[%c0_196, %c384_197] : memref<128x512xf32, #tpu.memory_space<vmem>>, vector<128x128xf32>
    %cst_198 = arith.constant dense<0.000000e+00> : vector<8x128xf32>
    %393 = tpu.matmul %350, %392, %cst_198 {dimension_numbers = #tpu.dot_dimension_numbers<[1], [0], [0], [1], [0, 0, 1, 1], [], []>} : vector<8x128xf32>, vector<128x128xf32>, vector<8x128xf32> -> vector<8x128xf32>
    %394 = arith.addf %391, %393 : vector<8x128xf32>
    %395 = math.tanh %394 : vector<8x128xf32>
    %396 = arith.mulf %379, %348 : vector<8x128xf32>
    %397 = arith.mulf %368, %395 : vector<8x128xf32>
    %398 = arith.addf %396, %397 : vector<8x128xf32>
    %399 = math.tanh %398 : vector<8x128xf32>
    %400 = arith.mulf %390, %399 : vector<8x128xf32>
    %401 = arith.index_cast %c7_i32 : i32 to index
    %c0_199 = arith.constant 0 : index
    %c0_200 = arith.constant 0 : index
    %402 = vector.load %arg6[%401, %c0_199, %c0_200] : memref<8x8x128xf32, #tpu.memory_space<vmem>>, vector<1x8x128xf32>
    %403 = vector.shape_cast %402 : vector<1x8x128xf32> to vector<8x128xf32>
    %404 = vector.shape_cast %400 : vector<8x128xf32> to vector<1x8x128xf32>
    tpu.vector_store %arg6[%401, %c0_199, %c0_200], %404 {strides = array<i32>} : memref<8x8x128xf32, #tpu.memory_space<vmem>>, vector<1x8x128xf32>,
    %c8_i32 = arith.constant 8 : i32
    %c0_201 = arith.constant 0 : index
    %c0_202 = arith.constant 0 : index
    %405 = vector.load %arg9[%c0_201, %c0_202] : memref<8x128xf32, #tpu.memory_space<vmem>>, vector<8x128xf32>
    tpu.vector_store %arg9[%c0_201, %c0_202], %400 {strides = array<i32>} : memref<8x128xf32, #tpu.memory_space<vmem>>, vector<8x128xf32>,
    %c0_203 = arith.constant 0 : index
    %c0_204 = arith.constant 0 : index
    %406 = vector.load %arg10[%c0_203, %c0_204] : memref<8x128xf32, #tpu.memory_space<vmem>>, vector<8x128xf32>
    tpu.vector_store %arg10[%c0_203, %c0_204], %398 {strides = array<i32>} : memref<8x128xf32, #tpu.memory_space<vmem>>, vector<8x128xf32>,
    %c0_i32_205 = arith.constant 0 : i32
    %407 = arith.cmpi eq, %arg1, %c0_i32_205 : i32
    %408 = arith.extui %407 : i1 to i32
    %c0_i32_206 = arith.constant 0 : i32
    %409 = arith.cmpi ne, %408, %c0_i32_206 : i32
    scf.if %409 {
      %c0_207 = arith.constant 0 : index
      %c0_208 = arith.constant 0 : index
      %410 = vector.load %arg7[%c0_207, %c0_208] : memref<8x128xf32, #tpu.memory_space<vmem>>, vector<8x128xf32>
      tpu.vector_store %arg7[%c0_207, %c0_208], %400 {strides = array<i32>} : memref<8x128xf32, #tpu.memory_space<vmem>>, vector<8x128xf32>,
      %c0_209 = arith.constant 0 : index
      %c0_210 = arith.constant 0 : index
      %411 = vector.load %arg8[%c0_209, %c0_210] : memref<8x128xf32, #tpu.memory_space<vmem>>, vector<8x128xf32>
      tpu.vector_store %arg8[%c0_209, %c0_210], %398 {strides = array<i32>} : memref<8x128xf32, #tpu.memory_space<vmem>>, vector<8x128xf32>,
    } else {
    }
    return
  }
  func.func @transform_0(%arg0: i32, %arg1: i32) -> (i32, i32, i32) {
    %c0_i32 = arith.constant 0 : i32
    %c0_i32_0 = arith.constant 0 : i32
    return %arg1, %arg0, %c0_i32 : i32, i32, i32
  }
  func.func @transform_1(%arg0: i32, %arg1: i32) -> (i32, i32) {
    %c0_i32 = arith.constant 0 : i32
    %c0_i32_0 = arith.constant 0 : i32
    %c0_i32_1 = arith.constant 0 : i32
    return %c0_i32, %c0_i32_0 : i32, i32
  }
  func.func @transform_2(%arg0: i32, %arg1: i32) -> (i32, i32) {
    %c0_i32 = arith.constant 0 : i32
    %c0_i32_0 = arith.constant 0 : i32
    return %arg0, %c0_i32 : i32, i32
  }
  func.func @transform_3(%arg0: i32, %arg1: i32) -> (i32, i32) {
    %c0_i32 = arith.constant 0 : i32
    %c0_i32_0 = arith.constant 0 : i32
    return %arg0, %c0_i32 : i32, i32
  }
  func.func @transform_4(%arg0: i32, %arg1: i32) -> (i32, i32, i32) {
    %c0_i32 = arith.constant 0 : i32
    %c0_i32_0 = arith.constant 0 : i32
    return %arg1, %arg0, %c0_i32 : i32, i32, i32
  }
  func.func @transform_5(%arg0: i32, %arg1: i32) -> (i32, i32) {
    %c0_i32 = arith.constant 0 : i32
    %c0_i32_0 = arith.constant 0 : i32
    return %arg0, %c0_i32 : i32, i32
  }
  func.func @transform_6(%arg0: i32, %arg1: i32) -> (i32, i32) {
    %c0_i32 = arith.constant 0 : i32
    %c0_i32_0 = arith.constant 0 : i32
    return %arg0, %c0_i32 : i32, i32
  }
}

</mosaic_0001>

<llo_original>
// kernel: tpu_custom_call.1
$region0: #{tpu_custom_call.1}
  #allocation0 [shape = 'u32[]', space=smem, size = 0x4, offset = 0x4, fixed_abs, tag = 'smem constant byte address 0x4 - core index']
  #allocation1 [shape = 'u32[144,128]{1,0:T(1,128)}', space=vmem, size = 0x12000, scoped, tag = 'internal scratch']
  #allocation2 [shape = 'f32[8,128]{1,0:T(8,128)}', space=vmem, size = 0x1000, scoped, tag = 'scratch operand']
  #allocation3 [shape = 'f32[8,128]{1,0:T(8,128)}', space=vmem, size = 0x1000, scoped, tag = 'scratch operand']
  %s0 = inlined_call_operand.hbm [shape: f32[8,8,512], index: 0, kind: input, shape index: {}]
  %s1 = inlined_call_operand.hbm [shape: f32[128,512], index: 1, kind: input, shape index: {}]
  %s2 = inlined_call_operand.hbm [shape: f32[8,128], index: 2, kind: input, shape index: {}]
  %s3 = inlined_call_operand.vmem [shape: f32[8,128], index: 3, kind: input, shape index: {}]
  %s4 = inlined_call_operand.hbm [shape: f32[8,8,128], index: 4, kind: output, shape index: {0}]
  %s5 = inlined_call_operand.hbm [shape: f32[8,128], index: 5, kind: output, shape index: {1}]
  %s6 = inlined_call_operand.hbm [shape: f32[8,128], index: 6, kind: output, shape index: {2}]
  %7 = xla_tuple %s4, %s5, %s6
  %s8 = sld [smem:[#allocation0]]
  $region62: #{tpu_custom_call.1} parent=0
    _
  %s10 = ssub.s32 1, %s8
  %s11 = scalar_select 0, %s10, %s8
  $region1: #{tpu_custom_call.1} parent=0
    #allocation4 [shape = 'u8[131072]{0}', space=vmem, size = 0x20000, scoped, tag = 'input window, operand 0, single buffered']
    #allocation5 [shape = 's32[1]{0}', space=sflag, size = 0x4, scoped, tag = 'scoped memory for tpu_custom_call.1']
    #allocation6 [shape = 's32[1]{0}', space=sflag, size = 0x4, scoped, tag = 'scoped memory for tpu_custom_call.1']
    #allocation7 [shape = 'u8[262144]{0}', space=vmem, size = 0x40000, scoped, tag = 'input window, operand 1, single buffered']
    #allocation8 [shape = 's32[1]{0}', space=sflag, size = 0x4, scoped, tag = 'scoped memory for tpu_custom_call.1']
    #allocation9 [shape = 'u8[4096]{0}', space=vmem, size = 0x1000, scoped, tag = 'input window, operand 2, single buffered']
    #allocation10 [shape = 'u8[32768]{0}', space=vmem, size = 0x8000, scoped, tag = 'output window, operand 0, single buffered']
    #allocation11 [shape = 'u8[4096]{0}', space=vmem, size = 0x1000, scoped, tag = 'output window, operand 1, single buffered']
    #allocation12 [shape = 's32[1]{0}', space=sflag, size = 0x4, scoped, tag = 'scoped memory for tpu_custom_call.1']
    #allocation13 [shape = 'u8[4096]{0}', space=vmem, size = 0x1000, scoped, tag = 'output window, operand 2, single buffered']
    %12 = vsyncpa [#allocation5], 0
    %13 = vsyncpa [#allocation8], 0
    %14 = vsyncpa [#allocation6], 0
    %15 = vsyncpa [#allocation12], 0
    // Predicated region
    $region2: #{tpu_custom_call.1} parent=1 // pred_check
      _
    $region3: #{tpu_custom_call.1} parent=1 // pred_check_branch
      %17 = sbr.rel (0) target = $region5
    $region4: #{tpu_custom_call.1} parent=1 // pred_region
      %s19 = ssub.s32 4096, 4096
      %20 = vsyncadd [#allocation5], %s19
      %s21 = sshll.u32 [#allocation4], 4
      %s22 = int_to_ptr.vmem [resolvable:$true] %s21
      %27 = dma.hbm_to_vmem [thread:$0]  %s0, 4096, %s22, [#allocation5], 512, 512, 32
    $region5: #{tpu_custom_call.1} parent=1 // pred_fallthru
      _
    // Predicated region
    $region6: #{tpu_custom_call.1} parent=1 // pred_check
      _
    $region7: #{tpu_custom_call.1} parent=1 // pred_check_branch
      %29 = sbr.rel (0) target = $region9
    $region8: #{tpu_custom_call.1} parent=1 // pred_region
      %s31 = ssub.s32 8192, 8192
      %32 = vsyncadd [#allocation8], %s31
      %s33 = sshll.u32 [#allocation7], 4
      %s34 = int_to_ptr.vmem [resolvable:$true] %s33
      %39 = dma.hbm_to_vmem [thread:$0]  %s1, 8192, %s34, [#allocation8], 512, 512, 32
    $region9: #{tpu_custom_call.1} parent=1 // pred_fallthru
      _
    // Predicated region
    $region10: #{tpu_custom_call.1} parent=1 // pred_check
      _
    $region11: #{tpu_custom_call.1} parent=1 // pred_check_branch
      %41 = sbr.rel (0) target = $region13
    $region12: #{tpu_custom_call.1} parent=1 // pred_region
      %s43 = ssub.s32 128, 128
      %44 = vsyncadd [#allocation8], %s43
      %s46 = sshll.u32 [#allocation9], 4
      %s47 = int_to_ptr.vmem [resolvable:$true] %s46
      %49 = dma.hbm_to_vmem [thread:$0]  %s2, 128, %s47, [#allocation8]
    $region13: #{tpu_custom_call.1} parent=1 // pred_fallthru
      _
    // Predicated region
    $region14: #{tpu_custom_call.1} parent=1 // pred_check
      _
    $region15: #{tpu_custom_call.1} parent=1 // pred_check_branch
      %51 = sbr.rel (0) target = $region17
    $region16: #{tpu_custom_call.1} parent=1 // pred_region
      _
    $region17: #{tpu_custom_call.1} parent=1 // pred_fallthru
      _
    // Predicated region
    $region18: #{tpu_custom_call.1} parent=1 // pred_check
      _
    $region19: #{tpu_custom_call.1} parent=1 // pred_check_branch
      %53 = sbr.rel (0) target = $region21
    $region20: #{tpu_custom_call.1} parent=1 // pred_region
      %54 = dma.done [#allocation5], 4096
    $region21: #{tpu_custom_call.1} parent=1 // pred_fallthru
      _
    // Predicated region
    $region22: #{tpu_custom_call.1} parent=1 // pred_check
      _
    $region23: #{tpu_custom_call.1} parent=1 // pred_check_branch
      %56 = sbr.rel (0) target = $region25
    $region24: #{tpu_custom_call.1} parent=1 // pred_region
      %57 = dma.done [#allocation8], 8192
    $region25: #{tpu_custom_call.1} parent=1 // pred_fallthru
      _
    // Predicated region
    $region26: #{tpu_custom_call.1} parent=1 // pred_check
      _
    $region27: #{tpu_custom_call.1} parent=1 // pred_check_branch
      %59 = sbr.rel (0) target = $region29
    $region28: #{tpu_custom_call.1} parent=1 // pred_region
      %60 = dma.done [#allocation8], 128
    $region29: #{tpu_custom_call.1} parent=1 // pred_fallthru
      _
    %p61 = scmp.eq.s32.totalorder 0, 0
    // Predicated region
    $region30: #{tpu_custom_call.1} parent=1 // pred_check
      %p62 = pneg %p61
    $region31: #{tpu_custom_call.1} parent=1 // pred_check_branch
      %64 = sbr.rel (%p62) target = $region33
    $region32: #{tpu_custom_call.1} parent=1 // pred_region
      %v65 = vld [vmem:[#allocation9] sm:$0xff]
      %66 = vst [vmem:[#allocation2] sm:$0xff] %v65
      %v67 = vld [vmem:[%s3] sm:$0xff]
      %68 = vst [vmem:[#allocation3] sm:$0xff] %v67
    $region33: #{tpu_custom_call.1} parent=1 // pred_fallthru
      _
    %v69 = vld [vmem:[#allocation2] sm:$0xff]
    %v70 = vld [vmem:[#allocation3] sm:$0xff]
    %v71 = vld [vmem:[#allocation4] sm:$0xff]
    %v72 = vld [vmem:[#allocation4 + $0x8] sm:$0xff]
    %v73 = vld [vmem:[#allocation4 + $0x10] sm:$0xff]
    %v74 = vld [vmem:[#allocation4 + $0x18] sm:$0xff]
    %v75 = vld [vmem:[#allocation7] sm:$0xff]
    %v76 = vld [vmem:[#allocation7 + $0x20] sm:$0xff]
    %v77 = vld [vmem:[#allocation7 + $0x40] sm:$0xff]
    %v78 = vld [vmem:[#allocation7 + $0x60] sm:$0xff]
    %v79 = vld [vmem:[#allocation7 + $0x80] sm:$0xff]
    %v80 = vld [vmem:[#allocation7 + $0xa0] sm:$0xff]
    %v81 = vld [vmem:[#allocation7 + $0xc0] sm:$0xff]
    %v82 = vld [vmem:[#allocation7 + $0xe0] sm:$0xff]
    %v83 = vld [vmem:[#allocation7 + $0x100] sm:$0xff]
    %v84 = vld [vmem:[#allocation7 + $0x120] sm:$0xff]
    %v85 = vld [vmem:[#allocation7 + $0x140] sm:$0xff]
    %v86 = vld [vmem:[#allocation7 + $0x160] sm:$0xff]
    %v87 = vld [vmem:[#allocation7 + $0x180] sm:$0xff]
    %v88 = vld [vmem:[#allocation7 + $0x1a0] sm:$0xff]
    %v89 = vld [vmem:[#allocation7 + $0x1c0] sm:$0xff]
    %v90 = vld [vmem:[#allocation7 + $0x1e0] sm:$0xff]
    %91 = vmatprep.subr.mxu0 0.0
    %92 = vmatpush1.msra.mxu0 %v75
    %93 = vmatprep.subr.mxu0 0.0
    %94 = vmatpush1.msra.mxu0 %v76
    %95 = vmatprep.subr.mxu0 0.0
    %96 = vmatpush1.msra.mxu0 %v77
    %97 = vmatprep.subr.mxu0 0.0
    %98 = vmatpush1.msra.mxu0 %v78
    %99 = vmatprep.subr.mxu0 0.0
    %100 = vmatpush1.msra.mxu0 %v79
    %101 = vmatprep.subr.mxu0 0.0
    %102 = vmatpush1.msra.mxu0 %v80
    %103 = vmatprep.subr.mxu0 0.0
    %104 = vmatpush1.msra.mxu0 %v81
    %105 = vmatprep.subr.mxu0 0.0
    %106 = vmatpush1.msra.mxu0 %v82
    %107 = vmatprep.subr.mxu0 0.0
    %108 = vmatpush1.msra.mxu0 %v83
    %109 = vmatprep.subr.mxu0 0.0
    %110 = vmatpush1.msra.mxu0 %v84
    %111 = vmatprep.subr.mxu0 0.0
    %112 = vmatpush1.msra.mxu0 %v85
    %113 = vmatprep.subr.mxu0 0.0
    %114 = vmatpush1.msra.mxu0 %v86
    %115 = vmatprep.subr.mxu0 0.0
    %116 = vmatpush1.msra.mxu0 %v87
    %117 = vmatprep.subr.mxu0 0.0
    %118 = vmatpush1.msra.mxu0 %v88
    %119 = vmatprep.subr.mxu0 0.0
    %120 = vmatpush1.msra.mxu0 %v89
    %121 = vmatprep.subr.mxu0 0.0
    %122 = vmatpush1.msra.mxu0 %v90
    %123 = vmatprep.subr.mxu0 0.0
    %124 = vmatpush1.msra.mxu0 0.0
    %125 = vmatprep.subr.mxu0 0.0
    %126 = vmatpush1.msra.mxu0 0.0
    %127 = vmatprep.subr.mxu0 0.0
    %128 = vmatpush1.msra.mxu0 0.0
    %129 = vmatprep.subr.mxu0 0.0
    %130 = vmatpush1.msra.mxu0 0.0
    %131 = vmatprep.subr.mxu0 0.0
    %132 = vmatpush1.msra.mxu0 0.0
    %133 = vmatprep.subr.mxu0 0.0
    %134 = vmatpush1.msra.mxu0 0.0
    %135 = vmatprep.subr.mxu0 0.0
    %136 = vmatpush1.msra.mxu0 0.0
    %137 = vmatprep.subr.mxu0 0.0
    %138 = vmatpush1.msra.mxu0 0.0
    %139 = vmatprep.subr.mxu0 0.0
    %140 = vmatpush1.msra.mxu0 0.0
    %141 = vmatprep.subr.mxu0 0.0
    %142 = vmatpush1.msra.mxu0 0.0
    %143 = vmatprep.subr.mxu0 0.0
    %144 = vmatpush1.msra.mxu0 0.0
    %145 = vmatprep.subr.mxu0 0.0
    %146 = vmatpush1.msra.mxu0 0.0
    %147 = vmatprep.subr.mxu0 0.0
    %148 = vmatpush1.msra.mxu0 0.0
    %149 = vmatprep.subr.mxu0 0.0
    %150 = vmatpush1.msra.mxu0 0.0
    %151 = vmatprep.subr.mxu0 0.0
    %152 = vmatpush1.msra.mxu0 0.0
    %153 = vmatprep.subr.mxu0 0.0
    %154 = vmatpush1.msra.mxu0 0.0
    %155 = vmatprep.mubr.f32.mxu0 0.0
    %156 = vmatmul.mubr.f32.gmra.mrb[0].mxu0 %v69
    %v157 = vpop.f32.mrb[0].mxu0
    %v158 = vadd.f32 0.0, %v157
    %v159 = vpop.f32.mrb[0].mxu0
    %160 = vdwg.mxu0
    %v161 = vadd.f32 %v71, %v158
    %v162 = vmul.f32 %v161, 0.5
    %v163 = vtanh.pop %v162
    %v164 = vmul.f32 %v163, 0.5
    %v165 = vadd.f32 %v164, 0.5
    %v166 = vld [vmem:[#allocation7 + $0x8] sm:$0xff]
    %v167 = vld [vmem:[#allocation7 + $0x28] sm:$0xff]
    %v168 = vld [vmem:[#allocation7 + $0x48] sm:$0xff]
    %v169 = vld [vmem:[#allocation7 + $0x68] sm:$0xff]
    %v170 = vld [vmem:[#allocation7 + $0x88] sm:$0xff]
    %v171 = vld [vmem:[#allocation7 + $0xa8] sm:$0xff]
    %v172 = vld [vmem:[#allocation7 + $0xc8] sm:$0xff]
    %v173 = vld [vmem:[#allocation7 + $0xe8] sm:$0xff]
    %v174 = vld [vmem:[#allocation7 + $0x108] sm:$0xff]
    %v175 = vld [vmem:[#allocation7 + $0x128] sm:$0xff]
    %v176 = vld [vmem:[#allocation7 + $0x148] sm:$0xff]
    %v177 = vld [vmem:[#allocation7 + $0x168] sm:$0xff]
    %v178 = vld [vmem:[#allocation7 + $0x188] sm:$0xff]
    %v179 = vld [vmem:[#allocation7 + $0x1a8] sm:$0xff]
    %v180 = vld [vmem:[#allocation7 + $0x1c8] sm:$0xff]
    %v181 = vld [vmem:[#allocation7 + $0x1e8] sm:$0xff]
    %182 = vmatprep.subr.mxu0 0.0
    %183 = vmatpush1.msra.mxu0 %v166
    %184 = vmatprep.subr.mxu0 0.0
    %185 = vmatpush1.msra.mxu0 %v167
    %186 = vmatprep.subr.mxu0 0.0
    %187 = vmatpush1.msra.mxu0 %v168
    %188 = vmatprep.subr.mxu0 0.0
    %189 = vmatpush1.msra.mxu0 %v169
    %190 = vmatprep.subr.mxu0 0.0
    %191 = vmatpush1.msra.mxu0 %v170
    %192 = vmatprep.subr.mxu0 0.0
    %193 = vmatpush1.msra.mxu0 %v171
    %194 = vmatprep.subr.mxu0 0.0
    %195 = vmatpush1.msra.mxu0 %v172
    %196 = vmatprep.subr.mxu0 0.0
    %197 = vmatpush1.msra.mxu0 %v173
    %198 = vmatprep.subr.mxu0 0.0
    %199 = vmatpush1.msra.mxu0 %v174
    %200 = vmatprep.subr.mxu0 0.0
    %201 = vmatpush1.msra.mxu0 %v175
    %202 = vmatprep.subr.mxu0 0.0
    %203 = vmatpush1.msra.mxu0 %v176
    %204 = vmatprep.subr.mxu0 0.0
    %205 = vmatpush1.msra.mxu0 %v177
    %206 = vmatprep.subr.mxu0 0.0
    %207 = vmatpush1.msra.mxu0 %v178
    %208 = vmatprep.subr.mxu0 0.0
    %209 = vmatpush1.msra.mxu0 %v179
    %210 = vmatprep.subr.mxu0 0.0
    %211 = vmatpush1.msra.mxu0 %v180
    %212 = vmatprep.subr.mxu0 0.0
    %213 = vmatpush1.msra.mxu0 %v181
    %214 = vmatprep.subr.mxu0 0.0
    %215 = vmatpush1.msra.mxu0 0.0
    %216 = vmatprep.subr.mxu0 0.0
    %217 = vmatpush1.msra.mxu0 0.0
    %218 = vmatprep.subr.mxu0 0.0
    %219 = vmatpush1.msra.mxu0 0.0
    %220 = vmatprep.subr.mxu0 0.0
    %221 = vmatpush1.msra.mxu0 0.0
    %222 = vmatprep.subr.mxu0 0.0
    %223 = vmatpush1.msra.mxu0 0.0
    %224 = vmatprep.subr.mxu0 0.0
    %225 = vmatpush1.msra.mxu0 0.0
    %226 = vmatprep.subr.mxu0 0.0
    %227 = vmatpush1.msra.mxu0 0.0
    %228 = vmatprep.subr.mxu0 0.0
    %229 = vmatpush1.msra.mxu0 0.0
    %230 = vmatprep.subr.mxu0 0.0
    %231 = vmatpush1.msra.mxu0 0.0
    %232 = vmatprep.subr.mxu0 0.0
    %233 = vmatpush1.msra.mxu0 0.0
    %234 = vmatprep.subr.mxu0 0.0
    %235 = vmatpush1.msra.mxu0 0.0
    %236 = vmatprep.subr.mxu0 0.0
    %237 = vmatpush1.msra.mxu0 0.0
    %238 = vmatprep.subr.mxu0 0.0
    %239 = vmatpush1.msra.mxu0 0.0
    %240 = vmatprep.subr.mxu0 0.0
    %241 = vmatpush1.msra.mxu0 0.0
    %242 = vmatprep.subr.mxu0 0.0
    %243 = vmatpush1.msra.mxu0 0.0
    %244 = vmatprep.subr.mxu0 0.0
    %245 = vmatpush1.msra.mxu0 0.0
    %246 = vmatprep.mubr.f32.mxu0 0.0
    %247 = vmatmul.mubr.f32.gmra.mrb[0].mxu0 %v69
    %v248 = vpop.f32.mrb[0].mxu0
    %v249 = vadd.f32 0.0, %v248
    %v250 = vpop.f32.mrb[0].mxu0
    %251 = vdwg.mxu0
    %v252 = vadd.f32 %v72, %v249
    %v253 = vmul.f32 %v252, 0.5
    %v254 = vtanh.pop %v253
    %v255 = vmul.f32 %v254, 0.5
    %v256 = vadd.f32 %v255, 0.5
    %v257 = vld [vmem:[#allocation7 + $0x10] sm:$0xff]
    %v258 = vld [vmem:[#allocation7 + $0x30] sm:$0xff]
    %v259 = vld [vmem:[#allocation7 + $0x50] sm:$0xff]
    %v260 = vld [vmem:[#allocation7 + $0x70] sm:$0xff]
    %v261 = vld [vmem:[#allocation7 + $0x90] sm:$0xff]
    %v262 = vld [vmem:[#allocation7 + $0xb0] sm:$0xff]
    %v263 = vld [vmem:[#allocation7 + $0xd0] sm:$0xff]
    %v264 = vld [vmem:[#allocation7 + $0xf0] sm:$0xff]
    %v265 = vld [vmem:[#allocation7 + $0x110] sm:$0xff]
    %v266 = vld [vmem:[#allocation7 + $0x130] sm:$0xff]
    %v267 = vld [vmem:[#allocation7 + $0x150] sm:$0xff]
    %v268 = vld [vmem:[#allocation7 + $0x170] sm:$0xff]
    %v269 = vld [vmem:[#allocation7 + $0x190] sm:$0xff]
    %v270 = vld [vmem:[#allocation7 + $0x1b0] sm:$0xff]
    %v271 = vld [vmem:[#allocation7 + $0x1d0] sm:$0xff]
    %v272 = vld [vmem:[#allocation7 + $0x1f0] sm:$0xff]
    %273 = vmatprep.subr.mxu0 0.0
    %274 = vmatpush1.msra.mxu0 %v257
    %275 = vmatprep.subr.mxu0 0.0
    %276 = vmatpush1.msra.mxu0 %v258
    %277 = vmatprep.subr.mxu0 0.0
    %278 = vmatpush1.msra.mxu0 %v259
    %279 = vmatprep.subr.mxu0 0.0
    %280 = vmatpush1.msra.mxu0 %v260
    %281 = vmatprep.subr.mxu0 0.0
    %282 = vmatpush1.msra.mxu0 %v261
    %283 = vmatprep.subr.mxu0 0.0
    %284 = vmatpush1.msra.mxu0 %v262
    %285 = vmatprep.subr.mxu0 0.0
    %286 = vmatpush1.msra.mxu0 %v263
    %287 = vmatprep.subr.mxu0 0.0
    %288 = vmatpush1.msra.mxu0 %v264
    %289 = vmatprep.subr.mxu0 0.0
    %290 = vmatpush1.msra.mxu0 %v265
    %291 = vmatprep.subr.mxu0 0.0
    %292 = vmatpush1.msra.mxu0 %v266
    %293 = vmatprep.subr.mxu0 0.0
    %294 = vmatpush1.msra.mxu0 %v267
    %295 = vmatprep.subr.mxu0 0.0
    %296 = vmatpush1.msra.mxu0 %v268
    %297 = vmatprep.subr.mxu0 0.0
    %298 = vmatpush1.msra.mxu0 %v269
    %299 = vmatprep.subr.mxu0 0.0
    %300 = vmatpush1.msra.mxu0 %v270
    %301 = vmatprep.subr.mxu0 0.0
    %302 = vmatpush1.msra.mxu0 %v271
    %303 = vmatprep.subr.mxu0 0.0
    %304 = vmatpush1.msra.mxu0 %v272
    %305 = vmatprep.subr.mxu0 0.0
    %306 = vmatpush1.msra.mxu0 0.0
    %307 = vmatprep.subr.mxu0 0.0
    %308 = vmatpush1.msra.mxu0 0.0
    %309 = vmatprep.subr.mxu0 0.0
    %310 = vmatpush1.msra.mxu0 0.0
    %311 = vmatprep.subr.mxu0 0.0
    %312 = vmatpush1.msra.mxu0 0.0
    %313 = vmatprep.subr.mxu0 0.0
    %314 = vmatpush1.msra.mxu0 0.0
    %315 = vmatprep.subr.mxu0 0.0
    %316 = vmatpush1.msra.mxu0 0.0
    %317 = vmatprep.subr.mxu0 0.0
    %318 = vmatpush1.msra.mxu0 0.0
    %319 = vmatprep.subr.mxu0 0.0
    %320 = vmatpush1.msra.mxu0 0.0
    %321 = vmatprep.subr.mxu0 0.0
    %322 = vmatpush1.msra.mxu0 0.0
    %323 = vmatprep.subr.mxu0 0.0
    %324 = vmatpush1.msra.mxu0 0.0
    %325 = vmatprep.subr.mxu0 0.0
    %326 = vmatpush1.msra.mxu0 0.0
    %327 = vmatprep.subr.mxu0 0.0
    %328 = vmatpush1.msra.mxu0 0.0
    %329 = vmatprep.subr.mxu0 0.0
    %330 = vmatpush1.msra.mxu0 0.0
    %331 = vmatprep.subr.mxu0 0.0
    %332 = vmatpush1.msra.mxu0 0.0
    %333 = vmatprep.subr.mxu0 0.0
    %334 = vmatpush1.msra.mxu0 0.0
    %335 = vmatprep.subr.mxu0 0.0
    %336 = vmatpush1.msra.mxu0 0.0
    %337 = vmatprep.mubr.f32.mxu0 0.0
    %338 = vmatmul.mubr.f32.gmra.mrb[0].mxu0 %v69
    %v339 = vpop.f32.mrb[0].mxu0
    %v340 = vadd.f32 0.0, %v339
    %v341 = vpop.f32.mrb[0].mxu0
    %342 = vdwg.mxu0
    %v343 = vadd.f32 %v73, %v340
    %v344 = vmul.f32 %v343, 0.5
    %v345 = vtanh.pop %v344
    %v346 = vmul.f32 %v345, 0.5
    %v347 = vadd.f32 %v346, 0.5
    %v348 = vld [vmem:[#allocation7 + $0x18] sm:$0xff]
    %v349 = vld [vmem:[#allocation7 + $0x38] sm:$0xff]
    %v350 = vld [vmem:[#allocation7 + $0x58] sm:$0xff]
    %v351 = vld [vmem:[#allocation7 + $0x78] sm:$0xff]
    %v352 = vld [vmem:[#allocation7 + $0x98] sm:$0xff]
    %v353 = vld [vmem:[#allocation7 + $0xb8] sm:$0xff]
    %v354 = vld [vmem:[#allocation7 + $0xd8] sm:$0xff]
    %v355 = vld [vmem:[#allocation7 + $0xf8] sm:$0xff]
    %v356 = vld [vmem:[#allocation7 + $0x118] sm:$0xff]
    %v357 = vld [vmem:[#allocation7 + $0x138] sm:$0xff]
    %v358 = vld [vmem:[#allocation7 + $0x158] sm:$0xff]
    %v359 = vld [vmem:[#allocation7 + $0x178] sm:$0xff]
    %v360 = vld [vmem:[#allocation7 + $0x198] sm:$0xff]
    %v361 = vld [vmem:[#allocation7 + $0x1b8] sm:$0xff]
    %v362 = vld [vmem:[#allocation7 + $0x1d8] sm:$0xff]
    %v363 = vld [vmem:[#allocation7 + $0x1f8] sm:$0xff]
    %364 = vmatprep.subr.mxu0 0.0
    %365 = vmatpush1.msra.mxu0 %v348
    %366 = vmatprep.subr.mxu0 0.0
    %367 = vmatpush1.msra.mxu0 %v349
    %368 = vmatprep.subr.mxu0 0.0
    %369 = vmatpush1.msra.mxu0 %v350
    %370 = vmatprep.subr.mxu0 0.0
    %371 = vmatpush1.msra.mxu0 %v351
    %372 = vmatprep.subr.mxu0 0.0
    %373 = vmatpush1.msra.mxu0 %v352
    %374 = vmatprep.subr.mxu0 0.0
    %375 = vmatpush1.msra.mxu0 %v353
    %376 = vmatprep.subr.mxu0 0.0
    %377 = vmatpush1.msra.mxu0 %v354
    %378 = vmatprep.subr.mxu0 0.0
    %379 = vmatpush1.msra.mxu0 %v355
    %380 = vmatprep.subr.mxu0 0.0
    %381 = vmatpush1.msra.mxu0 %v356
    %382 = vmatprep.subr.mxu0 0.0
    %383 = vmatpush1.msra.mxu0 %v357
    %384 = vmatprep.subr.mxu0 0.0
    %385 = vmatpush1.msra.mxu0 %v358
    %386 = vmatprep.subr.mxu0 0.0
    %387 = vmatpush1.msra.mxu0 %v359
    %388 = vmatprep.subr.mxu0 0.0
    %389 = vmatpush1.msra.mxu0 %v360
    %390 = vmatprep.subr.mxu0 0.0
    %391 = vmatpush1.msra.mxu0 %v361
    %392 = vmatprep.subr.mxu0 0.0
    %393 = vmatpush1.msra.mxu0 %v362
    %394 = vmatprep.subr.mxu0 0.0
    %395 = vmatpush1.msra.mxu0 %v363
    %396 = vmatprep.subr.mxu0 0.0
    %397 = vmatpush1.msra.mxu0 0.0
    %398 = vmatprep.subr.mxu0 0.0
    %399 = vmatpush1.msra.mxu0 0.0
    %400 = vmatprep.subr.mxu0 0.0
    %401 = vmatpush1.msra.mxu0 0.0
    %402 = vmatprep.subr.mxu0 0.0
    %403 = vmatpush1.msra.mxu0 0.0
    %404 = vmatprep.subr.mxu0 0.0
    %405 = vmatpush1.msra.mxu0 0.0
    %406 = vmatprep.subr.mxu0 0.0
    %407 = vmatpush1.msra.mxu0 0.0
    %408 = vmatprep.subr.mxu0 0.0
    %409 = vmatpush1.msra.mxu0 0.0
    %410 = vmatprep.subr.mxu0 0.0
    %411 = vmatpush1.msra.mxu0 0.0
    %412 = vmatprep.subr.mxu0 0.0
    %413 = vmatpush1.msra.mxu0 0.0
    %414 = vmatprep.subr.mxu0 0.0
    %415 = vmatpush1.msra.mxu0 0.0
    %416 = vmatprep.subr.mxu0 0.0
    %417 = vmatpush1.msra.mxu0 0.0
    %418 = vmatprep.subr.mxu0 0.0
    %419 = vmatpush1.msra.mxu0 0.0
    %420 = vmatprep.subr.mxu0 0.0
    %421 = vmatpush1.msra.mxu0 0.0
    %422 = vmatprep.subr.mxu0 0.0
    %423 = vmatpush1.msra.mxu0 0.0
    %424 = vmatprep.subr.mxu0 0.0
    %425 = vmatpush1.msra.mxu0 0.0
    %426 = vmatprep.subr.mxu0 0.0
    %427 = vmatpush1.msra.mxu0 0.0
    %428 = vmatprep.mubr.f32.mxu0 0.0
    %429 = vmatmul.mubr.f32.gmra.mrb[0].mxu0 %v69
    %v430 = vpop.f32.mrb[0].mxu0
    %v431 = vadd.f32 0.0, %v430
    %v432 = vpop.f32.mrb[0].mxu0
    %433 = vdwg.mxu0
    %v434 = vadd.f32 %v74, %v431
    %v435 = vtanh.pop %v434
    %v436 = vmul.f32 %v256, %v70
    %v437 = vmul.f32 %v165, %v435
    %v438 = vadd.f32 %v436, %v437
    %v439 = vtanh.pop %v438
    %v440 = vmul.f32 %v347, %v439
    %441 = vst [vmem:[#allocation10] sm:$0xff] %v440
    %s442 = scalar_lea.vmem [#allocation4], 32
    %v443 = vld [vmem:[%s442] sm:$0xff]
    %v444 = vld [vmem:[%s442 + $0x8] sm:$0xff]
    %v445 = vld [vmem:[%s442 + $0x10] sm:$0xff]
    %v446 = vld [vmem:[%s442 + $0x18] sm:$0xff]
    %v447 = vld [vmem:[#allocation7] sm:$0xff]
    %v448 = vld [vmem:[#allocation7 + $0x20] sm:$0xff]
    %v449 = vld [vmem:[#allocation7 + $0x40] sm:$0xff]
    %v450 = vld [vmem:[#allocation7 + $0x60] sm:$0xff]
    %v451 = vld [vmem:[#allocation7 + $0x80] sm:$0xff]
    %v452 = vld [vmem:[#allocation7 + $0xa0] sm:$0xff]
    %v453 = vld [vmem:[#allocation7 + $0xc0] sm:$0xff]
    %v454 = vld [vmem:[#allocation7 + $0xe0] sm:$0xff]
    %v455 = vld [vmem:[#allocation7 + $0x100] sm:$0xff]
    %v456 = vld [vmem:[#allocation7 + $0x120] sm:$0xff]
    %v457 = vld [vmem:[#allocation7 + $0x140] sm:$0xff]
    %v458 = vld [vmem:[#allocation7 + $0x160] sm:$0xff]
    %v459 = vld [vmem:[#allocation7 + $0x180] sm:$0xff]
    %v460 = vld [vmem:[#allocation7 + $0x1a0] sm:$0xff]
    %v461 = vld [vmem:[#allocation7 + $0x1c0] sm:$0xff]
    %v462 = vld [vmem:[#allocation7 + $0x1e0] sm:$0xff]
    %463 = vmatprep.subr.mxu0 0.0
    %464 = vmatpush1.msra.mxu0 %v447
    %465 = vmatprep.subr.mxu0 0.0
    %466 = vmatpush1.msra.mxu0 %v448
    %467 = vmatprep.subr.mxu0 0.0
    %468 = vmatpush1.msra.mxu0 %v449
    %469 = vmatprep.subr.mxu0 0.0
    %470 = vmatpush1.msra.mxu0 %v450
    %471 = vmatprep.subr.mxu0 0.0
    %472 = vmatpush1.msra.mxu0 %v451
    %473 = vmatprep.subr.mxu0 0.0
    %474 = vmatpush1.msra.mxu0 %v452
    %475 = vmatprep.subr.mxu0 0.0
    %476 = vmatpush1.msra.mxu0 %v453
    %477 = vmatprep.subr.mxu0 0.0
    %478 = vmatpush1.msra.mxu0 %v454
    %479 = vmatprep.subr.mxu0 0.0
    %480 = vmatpush1.msra.mxu0 %v455
    %481 = vmatprep.subr.mxu0 0.0
    %482 = vmatpush1.msra.mxu0 %v456
    %483 = vmatprep.subr.mxu0 0.0
    %484 = vmatpush1.msra.mxu0 %v457
    %485 = vmatprep.subr.mxu0 0.0
    %486 = vmatpush1.msra.mxu0 %v458
    %487 = vmatprep.subr.mxu0 0.0
    %488 = vmatpush1.msra.mxu0 %v459
    %489 = vmatprep.subr.mxu0 0.0
    %490 = vmatpush1.msra.mxu0 %v460
    %491 = vmatprep.subr.mxu0 0.0
    %492 = vmatpush1.msra.mxu0 %v461
    %493 = vmatprep.subr.mxu0 0.0
    %494 = vmatpush1.msra.mxu0 %v462
    %495 = vmatprep.subr.mxu0 0.0
    %496 = vmatpush1.msra.mxu0 0.0
    %497 = vmatprep.subr.mxu0 0.0
    %498 = vmatpush1.msra.mxu0 0.0
    %499 = vmatprep.subr.mxu0 0.0
    %500 = vmatpush1.msra.mxu0 0.0
    %501 = vmatprep.subr.mxu0 0.0
    %502 = vmatpush1.msra.mxu0 0.0
    %503 = vmatprep.subr.mxu0 0.0
    %504 = vmatpush1.msra.mxu0 0.0
    %505 = vmatprep.subr.mxu0 0.0
    %506 = vmatpush1.msra.mxu0 0.0
    %507 = vmatprep.subr.mxu0 0.0
    %508 = vmatpush1.msra.mxu0 0.0
    %509 = vmatprep.subr.mxu0 0.0
    %510 = vmatpush1.msra.mxu0 0.0
    %511 = vmatprep.subr.mxu0 0.0
    %512 = vmatpush1.msra.mxu0 0.0
    %513 = vmatprep.subr.mxu0 0.0
    %514 = vmatpush1.msra.mxu0 0.0
    %515 = vmatprep.subr.mxu0 0.0
    %516 = vmatpush1.msra.mxu0 0.0
    %517 = vmatprep.subr.mxu0 0.0
    %518 = vmatpush1.msra.mxu0 0.0
    %519 = vmatprep.subr.mxu0 0.0
    %520 = vmatpush1.msra.mxu0 0.0
    %521 = vmatprep.subr.mxu0 0.0
    %522 = vmatpush1.msra.mxu0 0.0
    %523 = vmatprep.subr.mxu0 0.0
    %524 = vmatpush1.msra.mxu0 0.0
    %525 = vmatprep.subr.mxu0 0.0
    %526 = vmatpush1.msra.mxu0 0.0
    %527 = vmatprep.mubr.f32.mxu0 0.0
    %528 = vmatmul.mubr.f32.gmra.mrb[0].mxu0 %v440
    %v529 = vpop.f32.mrb[0].mxu0
    %v530 = vadd.f32 0.0, %v529
    %v531 = vpop.f32.mrb[0].mxu0
    %532 = vdwg.mxu0
    %v533 = vadd.f32 %v443, %v530
    %v534 = vmul.f32 %v533, 0.5
    %v535 = vtanh.pop %v534
    %v536 = vmul.f32 %v535, 0.5
    %v537 = vadd.f32 %v536, 0.5
    %v538 = vld [vmem:[#allocation7 + $0x8] sm:$0xff]
    %v539 = vld [vmem:[#allocation7 + $0x28] sm:$0xff]
    %v540 = vld [vmem:[#allocation7 + $0x48] sm:$0xff]
    %v541 = vld [vmem:[#allocation7 + $0x68] sm:$0xff]
    %v542 = vld [vmem:[#allocation7 + $0x88] sm:$0xff]
    %v543 = vld [vmem:[#allocation7 + $0xa8] sm:$0xff]
    %v544 = vld [vmem:[#allocation7 + $0xc8] sm:$0xff]
    %v545 = vld [vmem:[#allocation7 + $0xe8] sm:$0xff]
    %v546 = vld [vmem:[#allocation7 + $0x108] sm:$0xff]
    %v547 = vld [vmem:[#allocation7 + $0x128] sm:$0xff]
    %v548 = vld [vmem:[#allocation7 + $0x148] sm:$0xff]
    %v549 = vld [vmem:[#allocation7 + $0x168] sm:$0xff]
    %v550 = vld [vmem:[#allocation7 + $0x188] sm:$0xff]
    %v551 = vld [vmem:[#allocation7 + $0x1a8] sm:$0xff]
    %v552 = vld [vmem:[#allocation7 + $0x1c8] sm:$0xff]
    %v553 = vld [vmem:[#allocation7 + $0x1e8] sm:$0xff]
    %554 = vmatprep.subr.mxu0 0.0
    %555 = vmatpush1.msra.mxu0 %v538
    %556 = vmatprep.subr.mxu0 0.0
    %557 = vmatpush1.msra.mxu0 %v539
    %558 = vmatprep.subr.mxu0 0.0
    %559 = vmatpush1.msra.mxu0 %v540
    %560 = vmatprep.subr.mxu0 0.0
    %561 = vmatpush1.msra.mxu0 %v541
    %562 = vmatprep.subr.mxu0 0.0
    %563 = vmatpush1.msra.mxu0 %v542
    %564 = vmatprep.subr.mxu0 0.0
    %565 = vmatpush1.msra.mxu0 %v543
    %566 = vmatprep.subr.mxu0 0.0
    %567 = vmatpush1.msra.mxu0 %v544
    %568 = vmatprep.subr.mxu0 0.0
    %569 = vmatpush1.msra.mxu0 %v545
    %570 = vmatprep.subr.mxu0 0.0
    %571 = vmatpush1.msra.mxu0 %v546
    %572 = vmatprep.subr.mxu0 0.0
    %573 = vmatpush1.msra.mxu0 %v547
    %574 = vmatprep.subr.mxu0 0.0
    %575 = vmatpush1.msra.mxu0 %v548
    %576 = vmatprep.subr.mxu0 0.0
    %577 = vmatpush1.msra.mxu0 %v549
    %578 = vmatprep.subr.mxu0 0.0
    %579 = vmatpush1.msra.mxu0 %v550
    %580 = vmatprep.subr.mxu0 0.0
    %581 = vmatpush1.msra.mxu0 %v551
    %582 = vmatprep.subr.mxu0 0.0
    %583 = vmatpush1.msra.mxu0 %v552
    %584 = vmatprep.subr.mxu0 0.0
    %585 = vmatpush1.msra.mxu0 %v553
    %586 = vmatprep.subr.mxu0 0.0
    %587 = vmatpush1.msra.mxu0 0.0
    %588 = vmatprep.subr.mxu0 0.0
    %589 = vmatpush1.msra.mxu0 0.0
    %590 = vmatprep.subr.mxu0 0.0
    %591 = vmatpush1.msra.mxu0 0.0
    %592 = vmatprep.subr.mxu0 0.0
    %593 = vmatpush1.msra.mxu0 0.0
    %594 = vmatprep.subr.mxu0 0.0
    %595 = vmatpush1.msra.mxu0 0.0
    %596 = vmatprep.subr.mxu0 0.0
    %597 = vmatpush1.msra.mxu0 0.0
    %598 = vmatprep.subr.mxu0 0.0
    %599 = vmatpush1.msra.mxu0 0.0
    %600 = vmatprep.subr.mxu0 0.0
    %601 = vmatpush1.msra.mxu0 0.0
    %602 = vmatprep.subr.mxu0 0.0
    %603 = vmatpush1.msra.mxu0 0.0
    %604 = vmatprep.subr.mxu0 0.0
    %605 = vmatpush1.msra.mxu0 0.0
    %606 = vmatprep.subr.mxu0 0.0
    %607 = vmatpush1.msra.mxu0 0.0
    %608 = vmatprep.subr.mxu0 0.0
    %609 = vmatpush1.msra.mxu0 0.0
    %610 = vmatprep.subr.mxu0 0.0
    %611 = vmatpush1.msra.mxu0 0.0
    %612 = vmatprep.subr.mxu0 0.0
    %613 = vmatpush1.msra.mxu0 0.0
    %614 = vmatprep.subr.mxu0 0.0
    %615 = vmatpush1.msra.mxu0 0.0
    %616 = vmatprep.subr.mxu0 0.0
    %617 = vmatpush1.msra.mxu0 0.0
    %618 = vmatprep.mubr.f32.mxu0 0.0
    %619 = vmatmul.mubr.f32.gmra.mrb[0].mxu0 %v440
    %v620 = vpop.f32.mrb[0].mxu0
    %v621 = vadd.f32 0.0, %v620
    %v622 = vpop.f32.mrb[0].mxu0
    %623 = vdwg.mxu0
    %v624 = vadd.f32 %v444, %v621
    %v625 = vmul.f32 %v624, 0.5
    %v626 = vtanh.pop %v625
    %v627 = vmul.f32 %v626, 0.5
    %v628 = vadd.f32 %v627, 0.5
    %v629 = vld [vmem:[#allocation7 + $0x10] sm:$0xff]
    %v630 = vld [vmem:[#allocation7 + $0x30] sm:$0xff]
    %v631 = vld [vmem:[#allocation7 + $0x50] sm:$0xff]
    %v632 = vld [vmem:[#allocation7 + $0x70] sm:$0xff]
    %v633 = vld [vmem:[#allocation7 + $0x90] sm:$0xff]
    %v634 = vld [vmem:[#allocation7 + $0xb0] sm:$0xff]
    %v635 = vld [vmem:[#allocation7 + $0xd0] sm:$0xff]
    %v636 = vld [vmem:[#allocation7 + $0xf0] sm:$0xff]
    %v637 = vld [vmem:[#allocation7 + $0x110] sm:$0xff]
    %v638 = vld [vmem:[#allocation7 + $0x130] sm:$0xff]
    %v639 = vld [vmem:[#allocation7 + $0x150] sm:$0xff]
    %v640 = vld [vmem:[#allocation7 + $0x170] sm:$0xff]
    %v641 = vld [vmem:[#allocation7 + $0x190] sm:$0xff]
    %v642 = vld [vmem:[#allocation7 + $0x1b0] sm:$0xff]
    %v643 = vld [vmem:[#allocation7 + $0x1d0] sm:$0xff]
    %v644 = vld [vmem:[#allocation7 + $0x1f0] sm:$0xff]
    %645 = vmatprep.subr.mxu0 0.0
    %646 = vmatpush1.msra.mxu0 %v629
    %647 = vmatprep.subr.mxu0 0.0
    %648 = vmatpush1.msra.mxu0 %v630
    %649 = vmatprep.subr.mxu0 0.0
    %650 = vmatpush1.msra.mxu0 %v631
    %651 = vmatprep.subr.mxu0 0.0
    %652 = vmatpush1.msra.mxu0 %v632
    %653 = vmatprep.subr.mxu0 0.0
    %654 = vmatpush1.msra.mxu0 %v633
    %655 = vmatprep.subr.mxu0 0.0
    %656 = vmatpush1.msra.mxu0 %v634
    %657 = vmatprep.subr.mxu0 0.0
    %658 = vmatpush1.msra.mxu0 %v635
    %659 = vmatprep.subr.mxu0 0.0
    %660 = vmatpush1.msra.mxu0 %v636
    %661 = vmatprep.subr.mxu0 0.0
    %662 = vmatpush1.msra.mxu0 %v637
    %663 = vmatprep.subr.mxu0 0.0
    %664 = vmatpush1.msra.mxu0 %v638
    %665 = vmatprep.subr.mxu0 0.0
    %666 = vmatpush1.msra.mxu0 %v639
    %667 = vmatprep.subr.mxu0 0.0
    %668 = vmatpush1.msra.mxu0 %v640
    %669 = vmatprep.subr.mxu0 0.0
    %670 = vmatpush1.msra.mxu0 %v641
    %671 = vmatprep.subr.mxu0 0.0
    %672 = vmatpush1.msra.mxu0 %v642
    %673 = vmatprep.subr.mxu0 0.0
    %674 = vmatpush1.msra.mxu0 %v643
    %675 = vmatprep.subr.mxu0 0.0
    %676 = vmatpush1.msra.mxu0 %v644
    %677 = vmatprep.subr.mxu0 0.0
    %678 = vmatpush1.msra.mxu0 0.0
    %679 = vmatprep.subr.mxu0 0.0
    %680 = vmatpush1.msra.mxu0 0.0
    %681 = vmatprep.subr.mxu0 0.0
    %682 = vmatpush1.msra.mxu0 0.0
    %683 = vmatprep.subr.mxu0 0.0
    %684 = vmatpush1.msra.mxu0 0.0
    %685 = vmatprep.subr.mxu0 0.0
    %686 = vmatpush1.msra.mxu0 0.0
    %687 = vmatprep.subr.mxu0 0.0
    %688 = vmatpush1.msra.mxu0 0.0
    %689 = vmatprep.subr.mxu0 0.0
    %690 = vmatpush1.msra.mxu0 0.0
    %691 = vmatprep.subr.mxu0 0.0
    %692 = vmatpush1.msra.mxu0 0.0
    %693 = vmatprep.subr.mxu0 0.0
    %694 = vmatpush1.msra.mxu0 0.0
    %695 = vmatprep.subr.mxu0 0.0
    %696 = vmatpush1.msra.mxu0 0.0
    %697 = vmatprep.subr.mxu0 0.0
    %698 = vmatpush1.msra.mxu0 0.0
    %699 = vmatprep.subr.mxu0 0.0
    %700 = vmatpush1.msra.mxu0 0.0
    %701 = vmatprep.subr.mxu0 0.0
    %702 = vmatpush1.msra.mxu0 0.0
    %703 = vmatprep.subr.mxu0 0.0
    %704 = vmatpush1.msra.mxu0 0.0
    %705 = vmatprep.subr.mxu0 0.0
    %706 = vmatpush1.msra.mxu0 0.0
    %707 = vmatprep.subr.mxu0 0.0
    %708 = vmatpush1.msra.mxu0 0.0
    %709 = vmatprep.mubr.f32.mxu0 0.0
    %710 = vmatmul.mubr.f32.gmra.mrb[0].mxu0 %v440
    %v711 = vpop.f32.mrb[0].mxu0
    %v712 = vadd.f32 0.0, %v711
    %v713 = vpop.f32.mrb[0].mxu0
    %714 = vdwg.mxu0
    %v715 = vadd.f32 %v445, %v712
    %v716 = vmul.f32 %v715, 0.5
    %v717 = vtanh.pop %v716
    %v718 = vmul.f32 %v717, 0.5
    %v719 = vadd.f32 %v718, 0.5
    %v720 = vld [vmem:[#allocation7 + $0x18] sm:$0xff]
    %v721 = vld [vmem:[#allocation7 + $0x38] sm:$0xff]
    %v722 = vld [vmem:[#allocation7 + $0x58] sm:$0xff]
    %v723 = vld [vmem:[#allocation7 + $0x78] sm:$0xff]
    %v724 = vld [vmem:[#allocation7 + $0x98] sm:$0xff]
    %v725 = vld [vmem:[#allocation7 + $0xb8] sm:$0xff]
    %v726 = vld [vmem:[#allocation7 + $0xd8] sm:$0xff]
    %v727 = vld [vmem:[#allocation7 + $0xf8] sm:$0xff]
    %v728 = vld [vmem:[#allocation7 + $0x118] sm:$0xff]
    %v729 = vld [vmem:[#allocation7 + $0x138] sm:$0xff]
    %v730 = vld [vmem:[#allocation7 + $0x158] sm:$0xff]
    %v731 = vld [vmem:[#allocation7 + $0x178] sm:$0xff]
    %v732 = vld [vmem:[#allocation7 + $0x198] sm:$0xff]
    %v733 = vld [vmem:[#allocation7 + $0x1b8] sm:$0xff]
    %v734 = vld [vmem:[#allocation7 + $0x1d8] sm:$0xff]
    %v735 = vld [vmem:[#allocation7 + $0x1f8] sm:$0xff]
    %736 = vmatprep.subr.mxu0 0.0
    %737 = vmatpush1.msra.mxu0 %v720
    %738 = vmatprep.subr.mxu0 0.0
    %739 = vmatpush1.msra.mxu0 %v721
    %740 = vmatprep.subr.mxu0 0.0
    %741 = vmatpush1.msra.mxu0 %v722
    %742 = vmatprep.subr.mxu0 0.0
    %743 = vmatpush1.msra.mxu0 %v723
    %744 = vmatprep.subr.mxu0 0.0
    %745 = vmatpush1.msra.mxu0 %v724
    %746 = vmatprep.subr.mxu0 0.0
    %747 = vmatpush1.msra.mxu0 %v725
    %748 = vmatprep.subr.mxu0 0.0
    %749 = vmatpush1.msra.mxu0 %v726
    %750 = vmatprep.subr.mxu0 0.0
    %751 = vmatpush1.msra.mxu0 %v727
    %752 = vmatprep.subr.mxu0 0.0
    %753 = vmatpush1.msra.mxu0 %v728
    %754 = vmatprep.subr.mxu0 0.0
    %755 = vmatpush1.msra.mxu0 %v729
    %756 = vmatprep.subr.mxu0 0.0
    %757 = vmatpush1.msra.mxu0 %v730
    %758 = vmatprep.subr.mxu0 0.0
    %759 = vmatpush1.msra.mxu0 %v731
    %760 = vmatprep.subr.mxu0 0.0
    %761 = vmatpush1.msra.mxu0 %v732
    %762 = vmatprep.subr.mxu0 0.0
    %763 = vmatpush1.msra.mxu0 %v733
    %764 = vmatprep.subr.mxu0 0.0
    %765 = vmatpush1.msra.mxu0 %v734
    %766 = vmatprep.subr.mxu0 0.0
    %767 = vmatpush1.msra.mxu0 %v735
    %768 = vmatprep.subr.mxu0 0.0
    %769 = vmatpush1.msra.mxu0 0.0
    %770 = vmatprep.subr.mxu0 0.0
    %771 = vmatpush1.msra.mxu0 0.0
    %772 = vmatprep.subr.mxu0 0.0
    %773 = vmatpush1.msra.mxu0 0.0
    %774 = vmatprep.subr.mxu0 0.0
    %775 = vmatpush1.msra.mxu0 0.0
    %776 = vmatprep.subr.mxu0 0.0
    %777 = vmatpush1.msra.mxu0 0.0
    %778 = vmatprep.subr.mxu0 0.0
    %779 = vmatpush1.msra.mxu0 0.0
    %780 = vmatprep.subr.mxu0 0.0
    %781 = vmatpush1.msra.mxu0 0.0
    %782 = vmatprep.subr.mxu0 0.0
    %783 = vmatpush1.msra.mxu0 0.0
    %784 = vmatprep.subr.mxu0 0.0
    %785 = vmatpush1.msra.mxu0 0.0
    %786 = vmatprep.subr.mxu0 0.0
    %787 = vmatpush1.msra.mxu0 0.0
    %788 = vmatprep.subr.mxu0 0.0
    %789 = vmatpush1.msra.mxu0 0.0
    %790 = vmatprep.subr.mxu0 0.0
    %791 = vmatpush1.msra.mxu0 0.0
    %792 = vmatprep.subr.mxu0 0.0
    %793 = vmatpush1.msra.mxu0 0.0
    %794 = vmatprep.subr.mxu0 0.0
    %795 = vmatpush1.msra.mxu0 0.0
    %796 = vmatprep.subr.mxu0 0.0
    %797 = vmatpush1.msra.mxu0 0.0
    %798 = vmatprep.subr.mxu0 0.0
    %799 = vmatpush1.msra.mxu0 0.0
    %800 = vmatprep.mubr.f32.mxu0 0.0
    %801 = vmatmul.mubr.f32.gmra.mrb[0].mxu0 %v440
    %v802 = vpop.f32.mrb[0].mxu0
    %v803 = vadd.f32 0.0, %v802
    %v804 = vpop.f32.mrb[0].mxu0
    %805 = vdwg.mxu0
    %v806 = vadd.f32 %v446, %v803
    %v807 = vtanh.pop %v806
    %v808 = vmul.f32 %v628, %v438
    %v809 = vmul.f32 %v537, %v807
    %v810 = vadd.f32 %v808, %v809
    %v811 = vtanh.pop %v810
    %v812 = vmul.f32 %v719, %v811
    %s813 = scalar_lea.vmem [#allocation10], 8
    %814 = vst [vmem:[%s813] sm:$0xff] %v812
    %s815 = scalar_lea.vmem [#allocation4], 64
    %v816 = vld [vmem:[%s815] sm:$0xff]
    %v817 = vld [vmem:[%s815 + $0x8] sm:$0xff]
    %v818 = vld [vmem:[%s815 + $0x10] sm:$0xff]
    %v819 = vld [vmem:[%s815 + $0x18] sm:$0xff]
    %v820 = vld [vmem:[#allocation7] sm:$0xff]
    %v821 = vld [vmem:[#allocation7 + $0x20] sm:$0xff]
    %v822 = vld [vmem:[#allocation7 + $0x40] sm:$0xff]
    %v823 = vld [vmem:[#allocation7 + $0x60] sm:$0xff]
    %v824 = vld [vmem:[#allocation7 + $0x80] sm:$0xff]
    %v825 = vld [vmem:[#allocation7 + $0xa0] sm:$0xff]
    %v826 = vld [vmem:[#allocation7 + $0xc0] sm:$0xff]
    %v827 = vld [vmem:[#allocation7 + $0xe0] sm:$0xff]
    %v828 = vld [vmem:[#allocation7 + $0x100] sm:$0xff]
    %v829 = vld [vmem:[#allocation7 + $0x120] sm:$0xff]
    %v830 = vld [vmem:[#allocation7 + $0x140] sm:$0xff]
    %v831 = vld [vmem:[#allocation7 + $0x160] sm:$0xff]
    %v832 = vld [vmem:[#allocation7 + $0x180] sm:$0xff]
    %v833 = vld [vmem:[#allocation7 + $0x1a0] sm:$0xff]
    %v834 = vld [vmem:[#allocation7 + $0x1c0] sm:$0xff]
    %v835 = vld [vmem:[#allocation7 + $0x1e0] sm:$0xff]
    %836 = vmatprep.subr.mxu0 0.0
    %837 = vmatpush1.msra.mxu0 %v820
    %838 = vmatprep.subr.mxu0 0.0
    %839 = vmatpush1.msra.mxu0 %v821
    %840 = vmatprep.subr.mxu0 0.0
    %841 = vmatpush1.msra.mxu0 %v822
    %842 = vmatprep.subr.mxu0 0.0
    %843 = vmatpush1.msra.mxu0 %v823
    %844 = vmatprep.subr.mxu0 0.0
    %845 = vmatpush1.msra.mxu0 %v824
    %846 = vmatprep.subr.mxu0 0.0
    %847 = vmatpush1.msra.mxu0 %v825
    %848 = vmatprep.subr.mxu0 0.0
    %849 = vmatpush1.msra.mxu0 %v826
    %850 = vmatprep.subr.mxu0 0.0
    %851 = vmatpush1.msra.mxu0 %v827
    %852 = vmatprep.subr.mxu0 0.0
    %853 = vmatpush1.msra.mxu0 %v828
    %854 = vmatprep.subr.mxu0 0.0
    %855 = vmatpush1.msra.mxu0 %v829
    %856 = vmatprep.subr.mxu0 0.0
    %857 = vmatpush1.msra.mxu0 %v830
    %858 = vmatprep.subr.mxu0 0.0
    %859 = vmatpush1.msra.mxu0 %v831
    %860 = vmatprep.subr.mxu0 0.0
    %861 = vmatpush1.msra.mxu0 %v832
    %862 = vmatprep.subr.mxu0 0.0
    %863 = vmatpush1.msra.mxu0 %v833
    %864 = vmatprep.subr.mxu0 0.0
    %865 = vmatpush1.msra.mxu0 %v834
    %866 = vmatprep.subr.mxu0 0.0
    %867 = vmatpush1.msra.mxu0 %v835
    %868 = vmatprep.subr.mxu0 0.0
    %869 = vmatpush1.msra.mxu0 0.0
    %870 = vmatprep.subr.mxu0 0.0
    %871 = vmatpush1.msra.mxu0 0.0
    %872 = vmatprep.subr.mxu0 0.0
    %873 = vmatpush1.msra.mxu0 0.0
    %874 = vmatprep.subr.mxu0 0.0
    %875 = vmatpush1.msra.mxu0 0.0
    %876 = vmatprep.subr.mxu0 0.0
    %877 = vmatpush1.msra.mxu0 0.0
    %878 = vmatprep.subr.mxu0 0.0
    %879 = vmatpush1.msra.mxu0 0.0
    %880 = vmatprep.subr.mxu0 0.0
    %881 = vmatpush1.msra.mxu0 0.0
    %882 = vmatprep.subr.mxu0 0.0
    %883 = vmatpush1.msra.mxu0 0.0
    %884 = vmatprep.subr.mxu0 0.0
    %885 = vmatpush1.msra.mxu0 0.0
    %886 = vmatprep.subr.mxu0 0.0
    %887 = vmatpush1.msra.mxu0 0.0
    %888 = vmatprep.subr.mxu0 0.0
    %889 = vmatpush1.msra.mxu0 0.0
    %890 = vmatprep.subr.mxu0 0.0
    %891 = vmatpush1.msra.mxu0 0.0
    %892 = vmatprep.subr.mxu0 0.0
    %893 = vmatpush1.msra.mxu0 0.0
    %894 = vmatprep.subr.mxu0 0.0
    %895 = vmatpush1.msra.mxu0 0.0
    %896 = vmatprep.subr.mxu0 0.0
    %897 = vmatpush1.msra.mxu0 0.0
    %898 = vmatprep.subr.mxu0 0.0
    %899 = vmatpush1.msra.mxu0 0.0
    %900 = vmatprep.mubr.f32.mxu0 0.0
    %901 = vmatmul.mubr.f32.gmra.mrb[0].mxu0 %v812
    %v902 = vpop.f32.mrb[0].mxu0
    %v903 = vadd.f32 0.0, %v902
    %v904 = vpop.f32.mrb[0].mxu0
    %905 = vdwg.mxu0
    %v906 = vadd.f32 %v816, %v903
    %v907 = vmul.f32 %v906, 0.5
    %v908 = vtanh.pop %v907
    %v909 = vmul.f32 %v908, 0.5
    %v910 = vadd.f32 %v909, 0.5
    %v911 = vld [vmem:[#allocation7 + $0x8] sm:$0xff]
    %v912 = vld [vmem:[#allocation7 + $0x28] sm:$0xff]
    %v913 = vld [vmem:[#allocation7 + $0x48] sm:$0xff]
    %v914 = vld [vmem:[#allocation7 + $0x68] sm:$0xff]
    %v915 = vld [vmem:[#allocation7 + $0x88] sm:$0xff]
    %v916 = vld [vmem:[#allocation7 + $0xa8] sm:$0xff]
    %v917 = vld [vmem:[#allocation7 + $0xc8] sm:$0xff]
    %v918 = vld [vmem:[#allocation7 + $0xe8] sm:$0xff]
    %v919 = vld [vmem:[#allocation7 + $0x108] sm:$0xff]
    %v920 = vld [vmem:[#allocation7 + $0x128] sm:$0xff]
    %v921 = vld [vmem:[#allocation7 + $0x148] sm:$0xff]
    %v922 = vld [vmem:[#allocation7 + $0x168] sm:$0xff]
    %v923 = vld [vmem:[#allocation7 + $0x188] sm:$0xff]
    %v924 = vld [vmem:[#allocation7 + $0x1a8] sm:$0xff]
    %v925 = vld [vmem:[#allocation7 + $0x1c8] sm:$0xff]
    %v926 = vld [vmem:[#allocation7 + $0x1e8] sm:$0xff]
    %927 = vmatprep.subr.mxu0 0.0
    %928 = vmatpush1.msra.mxu0 %v911
    %929 = vmatprep.subr.mxu0 0.0
    %930 = vmatpush1.msra.mxu0 %v912
    %931 = vmatprep.subr.mxu0 0.0
    %932 = vmatpush1.msra.mxu0 %v913
    %933 = vmatprep.subr.mxu0 0.0
    %934 = vmatpush1.msra.mxu0 %v914
    %935 = vmatprep.subr.mxu0 0.0
    %936 = vmatpush1.msra.mxu0 %v915
    %937 = vmatprep.subr.mxu0 0.0
    %938 = vmatpush1.msra.mxu0 %v916
    %939 = vmatprep.subr.mxu0 0.0
    %940 = vmatpush1.msra.mxu0 %v917
    %941 = vmatprep.subr.mxu0 0.0
    %942 = vmatpush1.msra.mxu0 %v918
    %943 = vmatprep.subr.mxu0 0.0
    %944 = vmatpush1.msra.mxu0 %v919
    %945 = vmatprep.subr.mxu0 0.0
    %946 = vmatpush1.msra.mxu0 %v920
    %947 = vmatprep.subr.mxu0 0.0
    %948 = vmatpush1.msra.mxu0 %v921
    %949 = vmatprep.subr.mxu0 0.0
    %950 = vmatpush1.msra.mxu0 %v922
    %951 = vmatprep.subr.mxu0 0.0
    %952 = vmatpush1.msra.mxu0 %v923
    %953 = vmatprep.subr.mxu0 0.0
    %954 = vmatpush1.msra.mxu0 %v924
    %955 = vmatprep.subr.mxu0 0.0
    %956 = vmatpush1.msra.mxu0 %v925
    %957 = vmatprep.subr.mxu0 0.0
    %958 = vmatpush1.msra.mxu0 %v926
    %959 = vmatprep.subr.mxu0 0.0
    %960 = vmatpush1.msra.mxu0 0.0
    %961 = vmatprep.subr.mxu0 0.0
    %962 = vmatpush1.msra.mxu0 0.0
    %963 = vmatprep.subr.mxu0 0.0
    %964 = vmatpush1.msra.mxu0 0.0
    %965 = vmatprep.subr.mxu0 0.0
    %966 = vmatpush1.msra.mxu0 0.0
    %967 = vmatprep.subr.mxu0 0.0
    %968 = vmatpush1.msra.mxu0 0.0
    %969 = vmatprep.subr.mxu0 0.0
    %970 = vmatpush1.msra.mxu0 0.0
    %971 = vmatprep.subr.mxu0 0.0
    %972 = vmatpush1.msra.mxu0 0.0
    %973 = vmatprep.subr.mxu0 0.0
    %974 = vmatpush1.msra.mxu0 0.0
    %975 = vmatprep.subr.mxu0 0.0
    %976 = vmatpush1.msra.mxu0 0.0
    %977 = vmatprep.subr.mxu0 0.0
    %978 = vmatpush1.msra.mxu0 0.0
    %979 = vmatprep.subr.mxu0 0.0
    %980 = vmatpush1.msra.mxu0 0.0
    %981 = vmatprep.subr.mxu0 0.0
    %982 = vmatpush1.msra.mxu0 0.0
    %983 = vmatprep.subr.mxu0 0.0
    %984 = vmatpush1.msra.mxu0 0.0
    %985 = vmatprep.subr.mxu0 0.0
    %986 = vmatpush1.msra.mxu0 0.0
    %987 = vmatprep.subr.mxu0 0.0
    %988 = vmatpush1.msra.mxu0 0.0
    %989 = vmatprep.subr.mxu0 0.0
    %990 = vmatpush1.msra.mxu0 0.0
    %991 = vmatprep.mubr.f32.mxu0 0.0
    %992 = vmatmul.mubr.f32.gmra.mrb[0].mxu0 %v812
    %v993 = vpop.f32.mrb[0].mxu0
    %v994 = vadd.f32 0.0, %v993
    %v995 = vpop.f32.mrb[0].mxu0
    %996 = vdwg.mxu0
    %v997 = vadd.f32 %v817, %v994
    %v998 = vmul.f32 %v997, 0.5
    %v999 = vtanh.pop %v998
    %v1000 = vmul.f32 %v999, 0.5
    %v1001 = vadd.f32 %v1000, 0.5
    %v1002 = vld [vmem:[#allocation7 + $0x10] sm:$0xff]
    %v1003 = vld [vmem:[#allocation7 + $0x30] sm:$0xff]
    %v1004 = vld [vmem:[#allocation7 + $0x50] sm:$0xff]
    %v1005 = vld [vmem:[#allocation7 + $0x70] sm:$0xff]
    %v1006 = vld [vmem:[#allocation7 + $0x90] sm:$0xff]
    %v1007 = vld [vmem:[#allocation7 + $0xb0] sm:$0xff]
    %v1008 = vld [vmem:[#allocation7 + $0xd0] sm:$0xff]
    %v1009 = vld [vmem:[#allocation7 + $0xf0] sm:$0xff]
    %v1010 = vld [vmem:[#allocation7 + $0x110] sm:$0xff]
    %v1011 = vld [vmem:[#allocation7 + $0x130] sm:$0xff]
    %v1012 = vld [vmem:[#allocation7 + $0x150] sm:$0xff]
    %v1013 = vld [vmem:[#allocation7 + $0x170] sm:$0xff]
    %v1014 = vld [vmem:[#allocation7 + $0x190] sm:$0xff]
    %v1015 = vld [vmem:[#allocation7 + $0x1b0] sm:$0xff]
    %v1016 = vld [vmem:[#allocation7 + $0x1d0] sm:$0xff]
    %v1017 = vld [vmem:[#allocation7 + $0x1f0] sm:$0xff]
    %1018 = vmatprep.subr.mxu0 0.0
    %1019 = vmatpush1.msra.mxu0 %v1002
    %1020 = vmatprep.subr.mxu0 0.0
    %1021 = vmatpush1.msra.mxu0 %v1003
    %1022 = vmatprep.subr.mxu0 0.0
    %1023 = vmatpush1.msra.mxu0 %v1004
    %1024 = vmatprep.subr.mxu0 0.0
    %1025 = vmatpush1.msra.mxu0 %v1005
    %1026 = vmatprep.subr.mxu0 0.0
    %1027 = vmatpush1.msra.mxu0 %v1006
    %1028 = vmatprep.subr.mxu0 0.0
    %1029 = vmatpush1.msra.mxu0 %v1007
    %1030 = vmatprep.subr.mxu0 0.0
    %1031 = vmatpush1.msra.mxu0 %v1008
    %1032 = vmatprep.subr.mxu0 0.0
    %1033 = vmatpush1.msra.mxu0 %v1009
    %1034 = vmatprep.subr.mxu0 0.0
    %1035 = vmatpush1.msra.mxu0 %v1010
    %1036 = vmatprep.subr.mxu0 0.0
    %1037 = vmatpush1.msra.mxu0 %v1011
    %1038 = vmatprep.subr.mxu0 0.0
    %1039 = vmatpush1.msra.mxu0 %v1012
    %1040 = vmatprep.subr.mxu0 0.0
    %1041 = vmatpush1.msra.mxu0 %v1013
    %1042 = vmatprep.subr.mxu0 0.0
    %1043 = vmatpush1.msra.mxu0 %v1014
    %1044 = vmatprep.subr.mxu0 0.0
    %1045 = vmatpush1.msra.mxu0 %v1015
    %1046 = vmatprep.subr.mxu0 0.0
    %1047 = vmatpush1.msra.mxu0 %v1016
    %1048 = vmatprep.subr.mxu0 0.0
    %1049 = vmatpush1.msra.mxu0 %v1017
    %1050 = vmatprep.subr.mxu0 0.0
    %1051 = vmatpush1.msra.mxu0 0.0
    %1052 = vmatprep.subr.mxu0 0.0
    %1053 = vmatpush1.msra.mxu0 0.0
    %1054 = vmatprep.subr.mxu0 0.0
    %1055 = vmatpush1.msra.mxu0 0.0
    %1056 = vmatprep.subr.mxu0 0.0
    %1057 = vmatpush1.msra.mxu0 0.0
    %1058 = vmatprep.subr.mxu0 0.0
    %1059 = vmatpush1.msra.mxu0 0.0
    %1060 = vmatprep.subr.mxu0 0.0
    %1061 = vmatpush1.msra.mxu0 0.0
    %1062 = vmatprep.subr.mxu0 0.0
    %1063 = vmatpush1.msra.mxu0 0.0
    %1064 = vmatprep.subr.mxu0 0.0
    %1065 = vmatpush1.msra.mxu0 0.0
    %1066 = vmatprep.subr.mxu0 0.0
    %1067 = vmatpush1.msra.mxu0 0.0
    %1068 = vmatprep.subr.mxu0 0.0
    %1069 = vmatpush1.msra.mxu0 0.0
    %1070 = vmatprep.subr.mxu0 0.0
    %1071 = vmatpush1.msra.mxu0 0.0
    %1072 = vmatprep.subr.mxu0 0.0
    %1073 = vmatpush1.msra.mxu0 0.0
    %1074 = vmatprep.subr.mxu0 0.0
    %1075 = vmatpush1.msra.mxu0 0.0
    %1076 = vmatprep.subr.mxu0 0.0
    %1077 = vmatpush1.msra.mxu0 0.0
    %1078 = vmatprep.subr.mxu0 0.0
    %1079 = vmatpush1.msra.mxu0 0.0
    %1080 = vmatprep.subr.mxu0 0.0
    %1081 = vmatpush1.msra.mxu0 0.0
    %1082 = vmatprep.mubr.f32.mxu0 0.0
    %1083 = vmatmul.mubr.f32.gmra.mrb[0].mxu0 %v812
    %v1084 = vpop.f32.mrb[0].mxu0
    %v1085 = vadd.f32 0.0, %v1084
    %v1086 = vpop.f32.mrb[0].mxu0
    %1087 = vdwg.mxu0
    %v1088 = vadd.f32 %v818, %v1085
    %v1089 = vmul.f32 %v1088, 0.5
    %v1090 = vtanh.pop %v1089
    %v1091 = vmul.f32 %v1090, 0.5
    %v1092 = vadd.f32 %v1091, 0.5
    %v1093 = vld [vmem:[#allocation7 + $0x18] sm:$0xff]
    %v1094 = vld [vmem:[#allocation7 + $0x38] sm:$0xff]
    %v1095 = vld [vmem:[#allocation7 + $0x58] sm:$0xff]
    %v1096 = vld [vmem:[#allocation7 + $0x78] sm:$0xff]
    %v1097 = vld [vmem:[#allocation7 + $0x98] sm:$0xff]
    %v1098 = vld [vmem:[#allocation7 + $0xb8] sm:$0xff]
    %v1099 = vld [vmem:[#allocation7 + $0xd8] sm:$0xff]
    %v1100 = vld [vmem:[#allocation7 + $0xf8] sm:$0xff]
    %v1101 = vld [vmem:[#allocation7 + $0x118] sm:$0xff]
    %v1102 = vld [vmem:[#allocation7 + $0x138] sm:$0xff]
    %v1103 = vld [vmem:[#allocation7 + $0x158] sm:$0xff]
    %v1104 = vld [vmem:[#allocation7 + $0x178] sm:$0xff]
    %v1105 = vld [vmem:[#allocation7 + $0x198] sm:$0xff]
    %v1106 = vld [vmem:[#allocation7 + $0x1b8] sm:$0xff]
    %v1107 = vld [vmem:[#allocation7 + $0x1d8] sm:$0xff]
    %v1108 = vld [vmem:[#allocation7 + $0x1f8] sm:$0xff]
    %1109 = vmatprep.subr.mxu0 0.0
    %1110 = vmatpush1.msra.mxu0 %v1093
    %1111 = vmatprep.subr.mxu0 0.0
    %1112 = vmatpush1.msra.mxu0 %v1094
    %1113 = vmatprep.subr.mxu0 0.0
    %1114 = vmatpush1.msra.mxu0 %v1095
    %1115 = vmatprep.subr.mxu0 0.0
    %1116 = vmatpush1.msra.mxu0 %v1096
    %1117 = vmatprep.subr.mxu0 0.0
    %1118 = vmatpush1.msra.mxu0 %v1097
    %1119 = vmatprep.subr.mxu0 0.0
    %1120 = vmatpush1.msra.mxu0 %v1098
    %1121 = vmatprep.subr.mxu0 0.0
    %1122 = vmatpush1.msra.mxu0 %v1099
    %1123 = vmatprep.subr.mxu0 0.0
    %1124 = vmatpush1.msra.mxu0 %v1100
    %1125 = vmatprep.subr.mxu0 0.0
    %1126 = vmatpush1.msra.mxu0 %v1101
    %1127 = vmatprep.subr.mxu0 0.0
    %1128 = vmatpush1.msra.mxu0 %v1102
    %1129 = vmatprep.subr.mxu0 0.0
    %1130 = vmatpush1.msra.mxu0 %v1103
    %1131 = vmatprep.subr.mxu0 0.0
    %1132 = vmatpush1.msra.mxu0 %v1104
    %1133 = vmatprep.subr.mxu0 0.0
    %1134 = vmatpush1.msra.mxu0 %v1105
    %1135 = vmatprep.subr.mxu0 0.0
    %1136 = vmatpush1.msra.mxu0 %v1106
    %1137 = vmatprep.subr.mxu0 0.0
    %1138 = vmatpush1.msra.mxu0 %v1107
    %1139 = vmatprep.subr.mxu0 0.0
    %1140 = vmatpush1.msra.mxu0 %v1108
    %1141 = vmatprep.subr.mxu0 0.0
    %1142 = vmatpush1.msra.mxu0 0.0
    %1143 = vmatprep.subr.mxu0 0.0
    %1144 = vmatpush1.msra.mxu0 0.0
    %1145 = vmatprep.subr.mxu0 0.0
    %1146 = vmatpush1.msra.mxu0 0.0
    %1147 = vmatprep.subr.mxu0 0.0
    %1148 = vmatpush1.msra.mxu0 0.0
    %1149 = vmatprep.subr.mxu0 0.0
    %1150 = vmatpush1.msra.mxu0 0.0
    %1151 = vmatprep.subr.mxu0 0.0
    %1152 = vmatpush1.msra.mxu0 0.0
    %1153 = vmatprep.subr.mxu0 0.0
    %1154 = vmatpush1.msra.mxu0 0.0
    %1155 = vmatprep.subr.mxu0 0.0
    %1156 = vmatpush1.msra.mxu0 0.0
    %1157 = vmatprep.subr.mxu0 0.0
    %1158 = vmatpush1.msra.mxu0 0.0
    %1159 = vmatprep.subr.mxu0 0.0
    %1160 = vmatpush1.msra.mxu0 0.0
    %1161 = vmatprep.subr.mxu0 0.0
    %1162 = vmatpush1.msra.mxu0 0.0
    %1163 = vmatprep.subr.mxu0 0.0
    %1164 = vmatpush1.msra.mxu0 0.0
    %1165 = vmatprep.subr.mxu0 0.0
    %1166 = vmatpush1.msra.mxu0 0.0
    %1167 = vmatprep.subr.mxu0 0.0
    %1168 = vmatpush1.msra.mxu0 0.0
    %1169 = vmatprep.subr.mxu0 0.0
    %1170 = vmatpush1.msra.mxu0 0.0
    %1171 = vmatprep.subr.mxu0 0.0
    %1172 = vmatpush1.msra.mxu0 0.0
    %1173 = vmatprep.mubr.f32.mxu0 0.0
    %1174 = vmatmul.mubr.f32.gmra.mrb[0].mxu0 %v812
    %v1175 = vpop.f32.mrb[0].mxu0
    %v1176 = vadd.f32 0.0, %v1175
    %v1177 = vpop.f32.mrb[0].mxu0
    %1178 = vdwg.mxu0
    %v1179 = vadd.f32 %v819, %v1176
    %v1180 = vtanh.pop %v1179
    %v1181 = vmul.f32 %v1001, %v810
    %v1182 = vmul.f32 %v910, %v1180
    %v1183 = vadd.f32 %v1181, %v1182
    %v1184 = vtanh.pop %v1183
    %v1185 = vmul.f32 %v1092, %v1184
    %s1186 = scalar_lea.vmem [#allocation10], 16
    %1187 = vst [vmem:[%s1186] sm:$0xff] %v1185
    %s1188 = scalar_lea.vmem [#allocation4], 96
    %v1189 = vld [vmem:[%s1188] sm:$0xff]
    %v1190 = vld [vmem:[%s1188 + $0x8] sm:$0xff]
    %v1191 = vld [vmem:[%s1188 + $0x10] sm:$0xff]
    %v1192 = vld [vmem:[%s1188 + $0x18] sm:$0xff]
    %v1193 = vld [vmem:[#allocation7] sm:$0xff]
    %v1194 = vld [vmem:[#allocation7 + $0x20] sm:$0xff]
    %v1195 = vld [vmem:[#allocation7 + $0x40] sm:$0xff]
    %v1196 = vld [vmem:[#allocation7 + $0x60] sm:$0xff]
    %v1197 = vld [vmem:[#allocation7 + $0x80] sm:$0xff]
    %v1198 = vld [vmem:[#allocation7 + $0xa0] sm:$0xff]
    %v1199 = vld [vmem:[#allocation7 + $0xc0] sm:$0xff]
    %v1200 = vld [vmem:[#allocation7 + $0xe0] sm:$0xff]
    %v1201 = vld [vmem:[#allocation7 + $0x100] sm:$0xff]
    %v1202 = vld [vmem:[#allocation7 + $0x120] sm:$0xff]
    %v1203 = vld [vmem:[#allocation7 + $0x140] sm:$0xff]
    %v1204 = vld [vmem:[#allocation7 + $0x160] sm:$0xff]
    %v1205 = vld [vmem:[#allocation7 + $0x180] sm:$0xff]
    %v1206 = vld [vmem:[#allocation7 + $0x1a0] sm:$0xff]
    %v1207 = vld [vmem:[#allocation7 + $0x1c0] sm:$0xff]
    %v1208 = vld [vmem:[#allocation7 + $0x1e0] sm:$0xff]
    %1209 = vmatprep.subr.mxu0 0.0
    %1210 = vmatpush1.msra.mxu0 %v1193
    %1211 = vmatprep.subr.mxu0 0.0
    %1212 = vmatpush1.msra.mxu0 %v1194
    %1213 = vmatprep.subr.mxu0 0.0
    %1214 = vmatpush1.msra.mxu0 %v1195
    %1215 = vmatprep.subr.mxu0 0.0
    %1216 = vmatpush1.msra.mxu0 %v1196
    %1217 = vmatprep.subr.mxu0 0.0
    %1218 = vmatpush1.msra.mxu0 %v1197
    %1219 = vmatprep.subr.mxu0 0.0
    %1220 = vmatpush1.msra.mxu0 %v1198
    %1221 = vmatprep.subr.mxu0 0.0
    %1222 = vmatpush1.msra.mxu0 %v1199
    %1223 = vmatprep.subr.mxu0 0.0
    %1224 = vmatpush1.msra.mxu0 %v1200
    %1225 = vmatprep.subr.mxu0 0.0
    %1226 = vmatpush1.msra.mxu0 %v1201
    %1227 = vmatprep.subr.mxu0 0.0
    %1228 = vmatpush1.msra.mxu0 %v1202
    %1229 = vmatprep.subr.mxu0 0.0
    %1230 = vmatpush1.msra.mxu0 %v1203
    %1231 = vmatprep.subr.mxu0 0.0
    %1232 = vmatpush1.msra.mxu0 %v1204
    %1233 = vmatprep.subr.mxu0 0.0
    %1234 = vmatpush1.msra.mxu0 %v1205
    %1235 = vmatprep.subr.mxu0 0.0
    %1236 = vmatpush1.msra.mxu0 %v1206
    %1237 = vmatprep.subr.mxu0 0.0
    %1238 = vmatpush1.msra.mxu0 %v1207
    %1239 = vmatprep.subr.mxu0 0.0
    %1240 = vmatpush1.msra.mxu0 %v1208
    %1241 = vmatprep.subr.mxu0 0.0
    %1242 = vmatpush1.msra.mxu0 0.0
    %1243 = vmatprep.subr.mxu0 0.0
    %1244 = vmatpush1.msra.mxu0 0.0
    %1245 = vmatprep.subr.mxu0 0.0
    %1246 = vmatpush1.msra.mxu0 0.0
    %1247 = vmatprep.subr.mxu0 0.0
    %1248 = vmatpush1.msra.mxu0 0.0
    %1249 = vmatprep.subr.mxu0 0.0
    %1250 = vmatpush1.msra.mxu0 0.0
    %1251 = vmatprep.subr.mxu0 0.0
    %1252 = vmatpush1.msra.mxu0 0.0
    %1253 = vmatprep.subr.mxu0 0.0
    %1254 = vmatpush1.msra.mxu0 0.0
    %1255 = vmatprep.subr.mxu0 0.0
    %1256 = vmatpush1.msra.mxu0 0.0
    %1257 = vmatprep.subr.mxu0 0.0
    %1258 = vmatpush1.msra.mxu0 0.0
    %1259 = vmatprep.subr.mxu0 0.0
    %1260 = vmatpush1.msra.mxu0 0.0
    %1261 = vmatprep.subr.mxu0 0.0
    %1262 = vmatpush1.msra.mxu0 0.0
    %1263 = vmatprep.subr.mxu0 0.0
    %1264 = vmatpush1.msra.mxu0 0.0
    %1265 = vmatprep.subr.mxu0 0.0
    %1266 = vmatpush1.msra.mxu0 0.0
    %1267 = vmatprep.subr.mxu0 0.0
    %1268 = vmatpush1.msra.mxu0 0.0
    %1269 = vmatprep.subr.mxu0 0.0
    %1270 = vmatpush1.msra.mxu0 0.0
    %1271 = vmatprep.subr.mxu0 0.0
    %1272 = vmatpush1.msra.mxu0 0.0
    %1273 = vmatprep.mubr.f32.mxu0 0.0
    %1274 = vmatmul.mubr.f32.gmra.mrb[0].mxu0 %v1185
    %v1275 = vpop.f32.mrb[0].mxu0
    %v1276 = vadd.f32 0.0, %v1275
    %v1277 = vpop.f32.mrb[0].mxu0
    %1278 = vdwg.mxu0
    %v1279 = vadd.f32 %v1189, %v1276
    %v1280 = vmul.f32 %v1279, 0.5
    %v1281 = vtanh.pop %v1280
    %v1282 = vmul.f32 %v1281, 0.5
    %v1283 = vadd.f32 %v1282, 0.5
    %v1284 = vld [vmem:[#allocation7 + $0x8] sm:$0xff]
    %v1285 = vld [vmem:[#allocation7 + $0x28] sm:$0xff]
    %v1286 = vld [vmem:[#allocation7 + $0x48] sm:$0xff]
    %v1287 = vld [vmem:[#allocation7 + $0x68] sm:$0xff]
    %v1288 = vld [vmem:[#allocation7 + $0x88] sm:$0xff]
    %v1289 = vld [vmem:[#allocation7 + $0xa8] sm:$0xff]
    %v1290 = vld [vmem:[#allocation7 + $0xc8] sm:$0xff]
    %v1291 = vld [vmem:[#allocation7 + $0xe8] sm:$0xff]
    %v1292 = vld [vmem:[#allocation7 + $0x108] sm:$0xff]
    %v1293 = vld [vmem:[#allocation7 + $0x128] sm:$0xff]
    %v1294 = vld [vmem:[#allocation7 + $0x148] sm:$0xff]
    %v1295 = vld [vmem:[#allocation7 + $0x168] sm:$0xff]
    %v1296 = vld [vmem:[#allocation7 + $0x188] sm:$0xff]
    %v1297 = vld [vmem:[#allocation7 + $0x1a8] sm:$0xff]
    %v1298 = vld [vmem:[#allocation7 + $0x1c8] sm:$0xff]
    %v1299 = vld [vmem:[#allocation7 + $0x1e8] sm:$0xff]
    %1300 = vmatprep.subr.mxu0 0.0
    %1301 = vmatpush1.msra.mxu0 %v1284
    %1302 = vmatprep.subr.mxu0 0.0
    %1303 = vmatpush1.msra.mxu0 %v1285
    %1304 = vmatprep.subr.mxu0 0.0
    %1305 = vmatpush1.msra.mxu0 %v1286
    %1306 = vmatprep.subr.mxu0 0.0
    %1307 = vmatpush1.msra.mxu0 %v1287
    %1308 = vmatprep.subr.mxu0 0.0
    %1309 = vmatpush1.msra.mxu0 %v1288
    %1310 = vmatprep.subr.mxu0 0.0
    %1311 = vmatpush1.msra.mxu0 %v1289
    %1312 = vmatprep.subr.mxu0 0.0
    %1313 = vmatpush1.msra.mxu0 %v1290
    %1314 = vmatprep.subr.mxu0 0.0
    %1315 = vmatpush1.msra.mxu0 %v1291
    %1316 = vmatprep.subr.mxu0 0.0
    %1317 = vmatpush1.msra.mxu0 %v1292
    %1318 = vmatprep.subr.mxu0 0.0
    %1319 = vmatpush1.msra.mxu0 %v1293
    %1320 = vmatprep.subr.mxu0 0.0
    %1321 = vmatpush1.msra.mxu0 %v1294
    %1322 = vmatprep.subr.mxu0 0.0
    %1323 = vmatpush1.msra.mxu0 %v1295
    %1324 = vmatprep.subr.mxu0 0.0
    %1325 = vmatpush1.msra.mxu0 %v1296
    %1326 = vmatprep.subr.mxu0 0.0
    %1327 = vmatpush1.msra.mxu0 %v1297
    %1328 = vmatprep.subr.mxu0 0.0
    %1329 = vmatpush1.msra.mxu0 %v1298
    %1330 = vmatprep.subr.mxu0 0.0
    %1331 = vmatpush1.msra.mxu0 %v1299
    %1332 = vmatprep.subr.mxu0 0.0
    %1333 = vmatpush1.msra.mxu0 0.0
    %1334 = vmatprep.subr.mxu0 0.0
    %1335 = vmatpush1.msra.mxu0 0.0
    %1336 = vmatprep.subr.mxu0 0.0
    %1337 = vmatpush1.msra.mxu0 0.0
    %1338 = vmatprep.subr.mxu0 0.0
    %1339 = vmatpush1.msra.mxu0 0.0
    %1340 = vmatprep.subr.mxu0 0.0
    %1341 = vmatpush1.msra.mxu0 0.0
    %1342 = vmatprep.subr.mxu0 0.0
    %1343 = vmatpush1.msra.mxu0 0.0
    %1344 = vmatprep.subr.mxu0 0.0
    %1345 = vmatpush1.msra.mxu0 0.0
    %1346 = vmatprep.subr.mxu0 0.0
    %1347 = vmatpush1.msra.mxu0 0.0
    %1348 = vmatprep.subr.mxu0 0.0
    %1349 = vmatpush1.msra.mxu0 0.0
    %1350 = vmatprep.subr.mxu0 0.0
    %1351 = vmatpush1.msra.mxu0 0.0
    %1352 = vmatprep.subr.mxu0 0.0
    %1353 = vmatpush1.msra.mxu0 0.0
    %1354 = vmatprep.subr.mxu0 0.0
    %1355 = vmatpush1.msra.mxu0 0.0
    %1356 = vmatprep.subr.mxu0 0.0
    %1357 = vmatpush1.msra.mxu0 0.0
    %1358 = vmatprep.subr.mxu0 0.0
    %1359 = vmatpush1.msra.mxu0 0.0
    %1360 = vmatprep.subr.mxu0 0.0
    %1361 = vmatpush1.msra.mxu0 0.0
    %1362 = vmatprep.subr.mxu0 0.0
    %1363 = vmatpush1.msra.mxu0 0.0
    %1364 = vmatprep.mubr.f32.mxu0 0.0
    %1365 = vmatmul.mubr.f32.gmra.mrb[0].mxu0 %v1185
    %v1366 = vpop.f32.mrb[0].mxu0
    %v1367 = vadd.f32 0.0, %v1366
    %v1368 = vpop.f32.mrb[0].mxu0
    %1369 = vdwg.mxu0
    %v1370 = vadd.f32 %v1190, %v1367
    %v1371 = vmul.f32 %v1370, 0.5
    %v1372 = vtanh.pop %v1371
    %v1373 = vmul.f32 %v1372, 0.5
    %v1374 = vadd.f32 %v1373, 0.5
    %v1375 = vld [vmem:[#allocation7 + $0x10] sm:$0xff]
    %v1376 = vld [vmem:[#allocation7 + $0x30] sm:$0xff]
    %v1377 = vld [vmem:[#allocation7 + $0x50] sm:$0xff]
    %v1378 = vld [vmem:[#allocation7 + $0x70] sm:$0xff]
    %v1379 = vld [vmem:[#allocation7 + $0x90] sm:$0xff]
    %v1380 = vld [vmem:[#allocation7 + $0xb0] sm:$0xff]
    %v1381 = vld [vmem:[#allocation7 + $0xd0] sm:$0xff]
    %v1382 = vld [vmem:[#allocation7 + $0xf0] sm:$0xff]
    %v1383 = vld [vmem:[#allocation7 + $0x110] sm:$0xff]
    %v1384 = vld [vmem:[#allocation7 + $0x130] sm:$0xff]
    %v1385 = vld [vmem:[#allocation7 + $0x150] sm:$0xff]
    %v1386 = vld [vmem:[#allocation7 + $0x170] sm:$0xff]
    %v1387 = vld [vmem:[#allocation7 + $0x190] sm:$0xff]
    %v1388 = vld [vmem:[#allocation7 + $0x1b0] sm:$0xff]
    %v1389 = vld [vmem:[#allocation7 + $0x1d0] sm:$0xff]
    %v1390 = vld [vmem:[#allocation7 + $0x1f0] sm:$0xff]
    %1391 = vmatprep.subr.mxu0 0.0
    %1392 = vmatpush1.msra.mxu0 %v1375
    %1393 = vmatprep.subr.mxu0 0.0
    %1394 = vmatpush1.msra.mxu0 %v1376
    %1395 = vmatprep.subr.mxu0 0.0
    %1396 = vmatpush1.msra.mxu0 %v1377
    %1397 = vmatprep.subr.mxu0 0.0
    %1398 = vmatpush1.msra.mxu0 %v1378
    %1399 = vmatprep.subr.mxu0 0.0
    %1400 = vmatpush1.msra.mxu0 %v1379
    %1401 = vmatprep.subr.mxu0 0.0
    %1402 = vmatpush1.msra.mxu0 %v1380
    %1403 = vmatprep.subr.mxu0 0.0
    %1404 = vmatpush1.msra.mxu0 %v1381
    %1405 = vmatprep.subr.mxu0 0.0
    %1406 = vmatpush1.msra.mxu0 %v1382
    %1407 = vmatprep.subr.mxu0 0.0
    %1408 = vmatpush1.msra.mxu0 %v1383
    %1409 = vmatprep.subr.mxu0 0.0
    %1410 = vmatpush1.msra.mxu0 %v1384
    %1411 = vmatprep.subr.mxu0 0.0
    %1412 = vmatpush1.msra.mxu0 %v1385
    %1413 = vmatprep.subr.mxu0 0.0
    %1414 = vmatpush1.msra.mxu0 %v1386
    %1415 = vmatprep.subr.mxu0 0.0
    %1416 = vmatpush1.msra.mxu0 %v1387
    %1417 = vmatprep.subr.mxu0 0.0
    %1418 = vmatpush1.msra.mxu0 %v1388
    %1419 = vmatprep.subr.mxu0 0.0
    %1420 = vmatpush1.msra.mxu0 %v1389
    %1421 = vmatprep.subr.mxu0 0.0
    %1422 = vmatpush1.msra.mxu0 %v1390
    %1423 = vmatprep.subr.mxu0 0.0
    %1424 = vmatpush1.msra.mxu0 0.0
    %1425 = vmatprep.subr.mxu0 0.0
    %1426 = vmatpush1.msra.mxu0 0.0
    %1427 = vmatprep.subr.mxu0 0.0
    %1428 = vmatpush1.msra.mxu0 0.0
    %1429 = vmatprep.subr.mxu0 0.0
    %1430 = vmatpush1.msra.mxu0 0.0
    %1431 = vmatprep.subr.mxu0 0.0
    %1432 = vmatpush1.msra.mxu0 0.0
    %1433 = vmatprep.subr.mxu0 0.0
    %1434 = vmatpush1.msra.mxu0 0.0
    %1435 = vmatprep.subr.mxu0 0.0
    %1436 = vmatpush1.msra.mxu0 0.0
    %1437 = vmatprep.subr.mxu0 0.0
    %1438 = vmatpush1.msra.mxu0 0.0
    %1439 = vmatprep.subr.mxu0 0.0
    %1440 = vmatpush1.msra.mxu0 0.0
    %1441 = vmatprep.subr.mxu0 0.0
    %1442 = vmatpush1.msra.mxu0 0.0
    %1443 = vmatprep.subr.mxu0 0.0
    %1444 = vmatpush1.msra.mxu0 0.0
    %1445 = vmatprep.subr.mxu0 0.0
    %1446 = vmatpush1.msra.mxu0 0.0
    %1447 = vmatprep.subr.mxu0 0.0
    %1448 = vmatpush1.msra.mxu0 0.0
    %1449 = vmatprep.subr.mxu0 0.0
    %1450 = vmatpush1.msra.mxu0 0.0
    %1451 = vmatprep.subr.mxu0 0.0
    %1452 = vmatpush1.msra.mxu0 0.0
    %1453 = vmatprep.subr.mxu0 0.0
    %1454 = vmatpush1.msra.mxu0 0.0
    %1455 = vmatprep.mubr.f32.mxu0 0.0
    %1456 = vmatmul.mubr.f32.gmra.mrb[0].mxu0 %v1185
    %v1457 = vpop.f32.mrb[0].mxu0
    %v1458 = vadd.f32 0.0, %v1457
    %v1459 = vpop.f32.mrb[0].mxu0
    %1460 = vdwg.mxu0
    %v1461 = vadd.f32 %v1191, %v1458
    %v1462 = vmul.f32 %v1461, 0.5
    %v1463 = vtanh.pop %v1462
    %v1464 = vmul.f32 %v1463, 0.5
    %v1465 = vadd.f32 %v1464, 0.5
    %v1466 = vld [vmem:[#allocation7 + $0x18] sm:$0xff]
    %v1467 = vld [vmem:[#allocation7 + $0x38] sm:$0xff]
    %v1468 = vld [vmem:[#allocation7 + $0x58] sm:$0xff]
    %v1469 = vld [vmem:[#allocation7 + $0x78] sm:$0xff]
    %v1470 = vld [vmem:[#allocation7 + $0x98] sm:$0xff]
    %v1471 = vld [vmem:[#allocation7 + $0xb8] sm:$0xff]
    %v1472 = vld [vmem:[#allocation7 + $0xd8] sm:$0xff]
    %v1473 = vld [vmem:[#allocation7 + $0xf8] sm:$0xff]
    %v1474 = vld [vmem:[#allocation7 + $0x118] sm:$0xff]
    %v1475 = vld [vmem:[#allocation7 + $0x138] sm:$0xff]
    %v1476 = vld [vmem:[#allocation7 + $0x158] sm:$0xff]
    %v1477 = vld [vmem:[#allocation7 + $0x178] sm:$0xff]
    %v1478 = vld [vmem:[#allocation7 + $0x198] sm:$0xff]
    %v1479 = vld [vmem:[#allocation7 + $0x1b8] sm:$0xff]
    %v1480 = vld [vmem:[#allocation7 + $0x1d8] sm:$0xff]
    %v1481 = vld [vmem:[#allocation7 + $0x1f8] sm:$0xff]
    %1482 = vmatprep.subr.mxu0 0.0
    %1483 = vmatpush1.msra.mxu0 %v1466
    %1484 = vmatprep.subr.mxu0 0.0
    %1485 = vmatpush1.msra.mxu0 %v1467
    %1486 = vmatprep.subr.mxu0 0.0
    %1487 = vmatpush1.msra.mxu0 %v1468
    %1488 = vmatprep.subr.mxu0 0.0
    %1489 = vmatpush1.msra.mxu0 %v1469
    %1490 = vmatprep.subr.mxu0 0.0
    %1491 = vmatpush1.msra.mxu0 %v1470
    %1492 = vmatprep.subr.mxu0 0.0
    %1493 = vmatpush1.msra.mxu0 %v1471
    %1494 = vmatprep.subr.mxu0 0.0
    %1495 = vmatpush1.msra.mxu0 %v1472
    %1496 = vmatprep.subr.mxu0 0.0
    %1497 = vmatpush1.msra.mxu0 %v1473
    %1498 = vmatprep.subr.mxu0 0.0
    %1499 = vmatpush1.msra.mxu0 %v1474
    %1500 = vmatprep.subr.mxu0 0.0
    %1501 = vmatpush1.msra.mxu0 %v1475
    %1502 = vmatprep.subr.mxu0 0.0
    %1503 = vmatpush1.msra.mxu0 %v1476
    %1504 = vmatprep.subr.mxu0 0.0
    %1505 = vmatpush1.msra.mxu0 %v1477
    %1506 = vmatprep.subr.mxu0 0.0
    %1507 = vmatpush1.msra.mxu0 %v1478
    %1508 = vmatprep.subr.mxu0 0.0
    %1509 = vmatpush1.msra.mxu0 %v1479
    %1510 = vmatprep.subr.mxu0 0.0
    %1511 = vmatpush1.msra.mxu0 %v1480
    %1512 = vmatprep.subr.mxu0 0.0
    %1513 = vmatpush1.msra.mxu0 %v1481
    %1514 = vmatprep.subr.mxu0 0.0
    %1515 = vmatpush1.msra.mxu0 0.0
    %1516 = vmatprep.subr.mxu0 0.0
    %1517 = vmatpush1.msra.mxu0 0.0
    %1518 = vmatprep.subr.mxu0 0.0
    %1519 = vmatpush1.msra.mxu0 0.0
    %1520 = vmatprep.subr.mxu0 0.0
    %1521 = vmatpush1.msra.mxu0 0.0
    %1522 = vmatprep.subr.mxu0 0.0
    %1523 = vmatpush1.msra.mxu0 0.0
    %1524 = vmatprep.subr.mxu0 0.0
    %1525 = vmatpush1.msra.mxu0 0.0
    %1526 = vmatprep.subr.mxu0 0.0
    %1527 = vmatpush1.msra.mxu0 0.0
    %1528 = vmatprep.subr.mxu0 0.0
    %1529 = vmatpush1.msra.mxu0 0.0
    %1530 = vmatprep.subr.mxu0 0.0
    %1531 = vmatpush1.msra.mxu0 0.0
    %1532 = vmatprep.subr.mxu0 0.0
    %1533 = vmatpush1.msra.mxu0 0.0
    %1534 = vmatprep.subr.mxu0 0.0
    %1535 = vmatpush1.msra.mxu0 0.0
    %1536 = vmatprep.subr.mxu0 0.0
    %1537 = vmatpush1.msra.mxu0 0.0
    %1538 = vmatprep.subr.mxu0 0.0
    %1539 = vmatpush1.msra.mxu0 0.0
    %1540 = vmatprep.subr.mxu0 0.0
    %1541 = vmatpush1.msra.mxu0 0.0
    %1542 = vmatprep.subr.mxu0 0.0
    %1543 = vmatpush1.msra.mxu0 0.0
    %1544 = vmatprep.subr.mxu0 0.0
    %1545 = vmatpush1.msra.mxu0 0.0
    %1546 = vmatprep.mubr.f32.mxu0 0.0
    %1547 = vmatmul.mubr.f32.gmra.mrb[0].mxu0 %v1185
    %v1548 = vpop.f32.mrb[0].mxu0
    %v1549 = vadd.f32 0.0, %v1548
    %v1550 = vpop.f32.mrb[0].mxu0
    %1551 = vdwg.mxu0
    %v1552 = vadd.f32 %v1192, %v1549
    %v1553 = vtanh.pop %v1552
    %v1554 = vmul.f32 %v1374, %v1183
    %v1555 = vmul.f32 %v1283, %v1553
    %v1556 = vadd.f32 %v1554, %v1555
    %v1557 = vtanh.pop %v1556
    %v1558 = vmul.f32 %v1465, %v1557
    %s1559 = scalar_lea.vmem [#allocation10], 24
    %1560 = vst [vmem:[%s1559] sm:$0xff] %v1558
    %s1561 = scalar_lea.vmem [#allocation4], 128
    %v1562 = vld [vmem:[%s1561] sm:$0xff]
    %v1563 = vld [vmem:[%s1561 + $0x8] sm:$0xff]
    %v1564 = vld [vmem:[%s1561 + $0x10] sm:$0xff]
    %v1565 = vld [vmem:[%s1561 + $0x18] sm:$0xff]
    %v1566 = vld [vmem:[#allocation7] sm:$0xff]
    %v1567 = vld [vmem:[#allocation7 + $0x20] sm:$0xff]
    %v1568 = vld [vmem:[#allocation7 + $0x40] sm:$0xff]
    %v1569 = vld [vmem:[#allocation7 + $0x60] sm:$0xff]
    %v1570 = vld [vmem:[#allocation7 + $0x80] sm:$0xff]
    %v1571 = vld [vmem:[#allocation7 + $0xa0] sm:$0xff]
    %v1572 = vld [vmem:[#allocation7 + $0xc0] sm:$0xff]
    %v1573 = vld [vmem:[#allocation7 + $0xe0] sm:$0xff]
    %v1574 = vld [vmem:[#allocation7 + $0x100] sm:$0xff]
    %v1575 = vld [vmem:[#allocation7 + $0x120] sm:$0xff]
    %v1576 = vld [vmem:[#allocation7 + $0x140] sm:$0xff]
    %v1577 = vld [vmem:[#allocation7 + $0x160] sm:$0xff]
    %v1578 = vld [vmem:[#allocation7 + $0x180] sm:$0xff]
    %v1579 = vld [vmem:[#allocation7 + $0x1a0] sm:$0xff]
    %v1580 = vld [vmem:[#allocation7 + $0x1c0] sm:$0xff]
    %v1581 = vld [vmem:[#allocation7 + $0x1e0] sm:$0xff]
    %1582 = vmatprep.subr.mxu0 0.0
    %1583 = vmatpush1.msra.mxu0 %v1566
    %1584 = vmatprep.subr.mxu0 0.0
    %1585 = vmatpush1.msra.mxu0 %v1567
    %1586 = vmatprep.subr.mxu0 0.0
    %1587 = vmatpush1.msra.mxu0 %v1568
    %1588 = vmatprep.subr.mxu0 0.0
    %1589 = vmatpush1.msra.mxu0 %v1569
    %1590 = vmatprep.subr.mxu0 0.0
    %1591 = vmatpush1.msra.mxu0 %v1570
    %1592 = vmatprep.subr.mxu0 0.0
    %1593 = vmatpush1.msra.mxu0 %v1571
    %1594 = vmatprep.subr.mxu0 0.0
    %1595 = vmatpush1.msra.mxu0 %v1572
    %1596 = vmatprep.subr.mxu0 0.0
    %1597 = vmatpush1.msra.mxu0 %v1573
    %1598 = vmatprep.subr.mxu0 0.0
    %1599 = vmatpush1.msra.mxu0 %v1574
    %1600 = vmatprep.subr.mxu0 0.0
    %1601 = vmatpush1.msra.mxu0 %v1575
    %1602 = vmatprep.subr.mxu0 0.0
    %1603 = vmatpush1.msra.mxu0 %v1576
    %1604 = vmatprep.subr.mxu0 0.0
    %1605 = vmatpush1.msra.mxu0 %v1577
    %1606 = vmatprep.subr.mxu0 0.0
    %1607 = vmatpush1.msra.mxu0 %v1578
    %1608 = vmatprep.subr.mxu0 0.0
    %1609 = vmatpush1.msra.mxu0 %v1579
    %1610 = vmatprep.subr.mxu0 0.0
    %1611 = vmatpush1.msra.mxu0 %v1580
    %1612 = vmatprep.subr.mxu0 0.0
    %1613 = vmatpush1.msra.mxu0 %v1581
    %1614 = vmatprep.subr.mxu0 0.0
    %1615 = vmatpush1.msra.mxu0 0.0
    %1616 = vmatprep.subr.mxu0 0.0
    %1617 = vmatpush1.msra.mxu0 0.0
    %1618 = vmatprep.subr.mxu0 0.0
    %1619 = vmatpush1.msra.mxu0 0.0
    %1620 = vmatprep.subr.mxu0 0.0
    %1621 = vmatpush1.msra.mxu0 0.0
    %1622 = vmatprep.subr.mxu0 0.0
    %1623 = vmatpush1.msra.mxu0 0.0
    %1624 = vmatprep.subr.mxu0 0.0
    %1625 = vmatpush1.msra.mxu0 0.0
    %1626 = vmatprep.subr.mxu0 0.0
    %1627 = vmatpush1.msra.mxu0 0.0
    %1628 = vmatprep.subr.mxu0 0.0
    %1629 = vmatpush1.msra.mxu0 0.0
    %1630 = vmatprep.subr.mxu0 0.0
    %1631 = vmatpush1.msra.mxu0 0.0
    %1632 = vmatprep.subr.mxu0 0.0
    %1633 = vmatpush1.msra.mxu0 0.0
    %1634 = vmatprep.subr.mxu0 0.0
    %1635 = vmatpush1.msra.mxu0 0.0
    %1636 = vmatprep.subr.mxu0 0.0
    %1637 = vmatpush1.msra.mxu0 0.0
    %1638 = vmatprep.subr.mxu0 0.0
    %1639 = vmatpush1.msra.mxu0 0.0
    %1640 = vmatprep.subr.mxu0 0.0
    %1641 = vmatpush1.msra.mxu0 0.0
    %1642 = vmatprep.subr.mxu0 0.0
    %1643 = vmatpush1.msra.mxu0 0.0
    %1644 = vmatprep.subr.mxu0 0.0
    %1645 = vmatpush1.msra.mxu0 0.0
    %1646 = vmatprep.mubr.f32.mxu0 0.0
    %1647 = vmatmul.mubr.f32.gmra.mrb[0].mxu0 %v1558
    %v1648 = vpop.f32.mrb[0].mxu0
    %v1649 = vadd.f32 0.0, %v1648
    %v1650 = vpop.f32.mrb[0].mxu0
    %1651 = vdwg.mxu0
    %v1652 = vadd.f32 %v1562, %v1649
    %v1653 = vmul.f32 %v1652, 0.5
    %v1654 = vtanh.pop %v1653
    %v1655 = vmul.f32 %v1654, 0.5
    %v1656 = vadd.f32 %v1655, 0.5
    %v1657 = vld [vmem:[#allocation7 + $0x8] sm:$0xff]
    %v1658 = vld [vmem:[#allocation7 + $0x28] sm:$0xff]
    %v1659 = vld [vmem:[#allocation7 + $0x48] sm:$0xff]
    %v1660 = vld [vmem:[#allocation7 + $0x68] sm:$0xff]
    %v1661 = vld [vmem:[#allocation7 + $0x88] sm:$0xff]
    %v1662 = vld [vmem:[#allocation7 + $0xa8] sm:$0xff]
    %v1663 = vld [vmem:[#allocation7 + $0xc8] sm:$0xff]
    %v1664 = vld [vmem:[#allocation7 + $0xe8] sm:$0xff]
    %v1665 = vld [vmem:[#allocation7 + $0x108] sm:$0xff]
    %v1666 = vld [vmem:[#allocation7 + $0x128] sm:$0xff]
    %v1667 = vld [vmem:[#allocation7 + $0x148] sm:$0xff]
    %v1668 = vld [vmem:[#allocation7 + $0x168] sm:$0xff]
    %v1669 = vld [vmem:[#allocation7 + $0x188] sm:$0xff]
    %v1670 = vld [vmem:[#allocation7 + $0x1a8] sm:$0xff]
    %v1671 = vld [vmem:[#allocation7 + $0x1c8] sm:$0xff]
    %v1672 = vld [vmem:[#allocation7 + $0x1e8] sm:$0xff]
    %1673 = vmatprep.subr.mxu0 0.0
    %1674 = vmatpush1.msra.mxu0 %v1657
    %1675 = vmatprep.subr.mxu0 0.0
    %1676 = vmatpush1.msra.mxu0 %v1658
    %1677 = vmatprep.subr.mxu0 0.0
    %1678 = vmatpush1.msra.mxu0 %v1659
    %1679 = vmatprep.subr.mxu0 0.0
    %1680 = vmatpush1.msra.mxu0 %v1660
    %1681 = vmatprep.subr.mxu0 0.0
    %1682 = vmatpush1.msra.mxu0 %v1661
    %1683 = vmatprep.subr.mxu0 0.0
    %1684 = vmatpush1.msra.mxu0 %v1662
    %1685 = vmatprep.subr.mxu0 0.0
    %1686 = vmatpush1.msra.mxu0 %v1663
    %1687 = vmatprep.subr.mxu0 0.0
    %1688 = vmatpush1.msra.mxu0 %v1664
    %1689 = vmatprep.subr.mxu0 0.0
    %1690 = vmatpush1.msra.mxu0 %v1665
    %1691 = vmatprep.subr.mxu0 0.0
    %1692 = vmatpush1.msra.mxu0 %v1666
    %1693 = vmatprep.subr.mxu0 0.0
    %1694 = vmatpush1.msra.mxu0 %v1667
    %1695 = vmatprep.subr.mxu0 0.0
    %1696 = vmatpush1.msra.mxu0 %v1668
    %1697 = vmatprep.subr.mxu0 0.0
    %1698 = vmatpush1.msra.mxu0 %v1669
    %1699 = vmatprep.subr.mxu0 0.0
    %1700 = vmatpush1.msra.mxu0 %v1670
    %1701 = vmatprep.subr.mxu0 0.0
    %1702 = vmatpush1.msra.mxu0 %v1671
    %1703 = vmatprep.subr.mxu0 0.0
    %1704 = vmatpush1.msra.mxu0 %v1672
    %1705 = vmatprep.subr.mxu0 0.0
    %1706 = vmatpush1.msra.mxu0 0.0
    %1707 = vmatprep.subr.mxu0 0.0
    %1708 = vmatpush1.msra.mxu0 0.0
    %1709 = vmatprep.subr.mxu0 0.0
    %1710 = vmatpush1.msra.mxu0 0.0
    %1711 = vmatprep.subr.mxu0 0.0
    %1712 = vmatpush1.msra.mxu0 0.0
    %1713 = vmatprep.subr.mxu0 0.0
    %1714 = vmatpush1.msra.mxu0 0.0
    %1715 = vmatprep.subr.mxu0 0.0
    %1716 = vmatpush1.msra.mxu0 0.0
    %1717 = vmatprep.subr.mxu0 0.0
    %1718 = vmatpush1.msra.mxu0 0.0
    %1719 = vmatprep.subr.mxu0 0.0
    %1720 = vmatpush1.msra.mxu0 0.0
    %1721 = vmatprep.subr.mxu0 0.0
    %1722 = vmatpush1.msra.mxu0 0.0
    %1723 = vmatprep.subr.mxu0 0.0
    %1724 = vmatpush1.msra.mxu0 0.0
    %1725 = vmatprep.subr.mxu0 0.0
    %1726 = vmatpush1.msra.mxu0 0.0
    %1727 = vmatprep.subr.mxu0 0.0
    %1728 = vmatpush1.msra.mxu0 0.0
    %1729 = vmatprep.subr.mxu0 0.0
    %1730 = vmatpush1.msra.mxu0 0.0
    %1731 = vmatprep.subr.mxu0 0.0
    %1732 = vmatpush1.msra.mxu0 0.0
    %1733 = vmatprep.subr.mxu0 0.0
    %1734 = vmatpush1.msra.mxu0 0.0
    %1735 = vmatprep.subr.mxu0 0.0
    %1736 = vmatpush1.msra.mxu0 0.0
    %1737 = vmatprep.mubr.f32.mxu0 0.0
    %1738 = vmatmul.mubr.f32.gmra.mrb[0].mxu0 %v1558
    %v1739 = vpop.f32.mrb[0].mxu0
    %v1740 = vadd.f32 0.0, %v1739
    %v1741 = vpop.f32.mrb[0].mxu0
    %1742 = vdwg.mxu0
    %v1743 = vadd.f32 %v1563, %v1740
    %v1744 = vmul.f32 %v1743, 0.5
    %v1745 = vtanh.pop %v1744
    %v1746 = vmul.f32 %v1745, 0.5
    %v1747 = vadd.f32 %v1746, 0.5
    %v1748 = vld [vmem:[#allocation7 + $0x10] sm:$0xff]
    %v1749 = vld [vmem:[#allocation7 + $0x30] sm:$0xff]
    %v1750 = vld [vmem:[#allocation7 + $0x50] sm:$0xff]
    %v1751 = vld [vmem:[#allocation7 + $0x70] sm:$0xff]
    %v1752 = vld [vmem:[#allocation7 + $0x90] sm:$0xff]
    %v1753 = vld [vmem:[#allocation7 + $0xb0] sm:$0xff]
    %v1754 = vld [vmem:[#allocation7 + $0xd0] sm:$0xff]
    %v1755 = vld [vmem:[#allocation7 + $0xf0] sm:$0xff]
    %v1756 = vld [vmem:[#allocation7 + $0x110] sm:$0xff]
    %v1757 = vld [vmem:[#allocation7 + $0x130] sm:$0xff]
    %v1758 = vld [vmem:[#allocation7 + $0x150] sm:$0xff]
    %v1759 = vld [vmem:[#allocation7 + $0x170] sm:$0xff]
    %v1760 = vld [vmem:[#allocation7 + $0x190] sm:$0xff]
    %v1761 = vld [vmem:[#allocation7 + $0x1b0] sm:$0xff]
    %v1762 = vld [vmem:[#allocation7 + $0x1d0] sm:$0xff]
    %v1763 = vld [vmem:[#allocation7 + $0x1f0] sm:$0xff]
    %1764 = vmatprep.subr.mxu0 0.0
    %1765 = vmatpush1.msra.mxu0 %v1748
    %1766 = vmatprep.subr.mxu0 0.0
    %1767 = vmatpush1.msra.mxu0 %v1749
    %1768 = vmatprep.subr.mxu0 0.0
    %1769 = vmatpush1.msra.mxu0 %v1750
    %1770 = vmatprep.subr.mxu0 0.0
    %1771 = vmatpush1.msra.mxu0 %v1751
    %1772 = vmatprep.subr.mxu0 0.0
    %1773 = vmatpush1.msra.mxu0 %v1752
    %1774 = vmatprep.subr.mxu0 0.0
    %1775 = vmatpush1.msra.mxu0 %v1753
    %1776 = vmatprep.subr.mxu0 0.0
    %1777 = vmatpush1.msra.mxu0 %v1754
    %1778 = vmatprep.subr.mxu0 0.0
    %1779 = vmatpush1.msra.mxu0 %v1755
    %1780 = vmatprep.subr.mxu0 0.0
    %1781 = vmatpush1.msra.mxu0 %v1756
    %1782 = vmatprep.subr.mxu0 0.0
    %1783 = vmatpush1.msra.mxu0 %v1757
    %1784 = vmatprep.subr.mxu0 0.0
    %1785 = vmatpush1.msra.mxu0 %v1758
    %1786 = vmatprep.subr.mxu0 0.0
    %1787 = vmatpush1.msra.mxu0 %v1759
    %1788 = vmatprep.subr.mxu0 0.0
    %1789 = vmatpush1.msra.mxu0 %v1760
    %1790 = vmatprep.subr.mxu0 0.0
    %1791 = vmatpush1.msra.mxu0 %v1761
    %1792 = vmatprep.subr.mxu0 0.0
    %1793 = vmatpush1.msra.mxu0 %v1762
    %1794 = vmatprep.subr.mxu0 0.0
    %1795 = vmatpush1.msra.mxu0 %v1763
    %1796 = vmatprep.subr.mxu0 0.0
    %1797 = vmatpush1.msra.mxu0 0.0
    %1798 = vmatprep.subr.mxu0 0.0
    %1799 = vmatpush1.msra.mxu0 0.0
    %1800 = vmatprep.subr.mxu0 0.0
    %1801 = vmatpush1.msra.mxu0 0.0
    %1802 = vmatprep.subr.mxu0 0.0
    %1803 = vmatpush1.msra.mxu0 0.0
    %1804 = vmatprep.subr.mxu0 0.0
    %1805 = vmatpush1.msra.mxu0 0.0
    %1806 = vmatprep.subr.mxu0 0.0
    %1807 = vmatpush1.msra.mxu0 0.0
    %1808 = vmatprep.subr.mxu0 0.0
    %1809 = vmatpush1.msra.mxu0 0.0
    %1810 = vmatprep.subr.mxu0 0.0
    %1811 = vmatpush1.msra.mxu0 0.0
    %1812 = vmatprep.subr.mxu0 0.0
    %1813 = vmatpush1.msra.mxu0 0.0
    %1814 = vmatprep.subr.mxu0 0.0
    %1815 = vmatpush1.msra.mxu0 0.0
    %1816 = vmatprep.subr.mxu0 0.0
    %1817 = vmatpush1.msra.mxu0 0.0
    %1818 = vmatprep.subr.mxu0 0.0
    %1819 = vmatpush1.msra.mxu0 0.0
    %1820 = vmatprep.subr.mxu0 0.0
    %1821 = vmatpush1.msra.mxu0 0.0
    %1822 = vmatprep.subr.mxu0 0.0
    %1823 = vmatpush1.msra.mxu0 0.0
    %1824 = vmatprep.subr.mxu0 0.0
    %1825 = vmatpush1.msra.mxu0 0.0
    %1826 = vmatprep.subr.mxu0 0.0
    %1827 = vmatpush1.msra.mxu0 0.0
    %1828 = vmatprep.mubr.f32.mxu0 0.0
    %1829 = vmatmul.mubr.f32.gmra.mrb[0].mxu0 %v1558
    %v1830 = vpop.f32.mrb[0].mxu0
    %v1831 = vadd.f32 0.0, %v1830
    %v1832 = vpop.f32.mrb[0].mxu0
    %1833 = vdwg.mxu0
    %v1834 = vadd.f32 %v1564, %v1831
    %v1835 = vmul.f32 %v1834, 0.5
    %v1836 = vtanh.pop %v1835
    %v1837 = vmul.f32 %v1836, 0.5
    %v1838 = vadd.f32 %v1837, 0.5
    %v1839 = vld [vmem:[#allocation7 + $0x18] sm:$0xff]
    %v1840 = vld [vmem:[#allocation7 + $0x38] sm:$0xff]
    %v1841 = vld [vmem:[#allocation7 + $0x58] sm:$0xff]
    %v1842 = vld [vmem:[#allocation7 + $0x78] sm:$0xff]
    %v1843 = vld [vmem:[#allocation7 + $0x98] sm:$0xff]
    %v1844 = vld [vmem:[#allocation7 + $0xb8] sm:$0xff]
    %v1845 = vld [vmem:[#allocation7 + $0xd8] sm:$0xff]
    %v1846 = vld [vmem:[#allocation7 + $0xf8] sm:$0xff]
    %v1847 = vld [vmem:[#allocation7 + $0x118] sm:$0xff]
    %v1848 = vld [vmem:[#allocation7 + $0x138] sm:$0xff]
    %v1849 = vld [vmem:[#allocation7 + $0x158] sm:$0xff]
    %v1850 = vld [vmem:[#allocation7 + $0x178] sm:$0xff]
    %v1851 = vld [vmem:[#allocation7 + $0x198] sm:$0xff]
    %v1852 = vld [vmem:[#allocation7 + $0x1b8] sm:$0xff]
    %v1853 = vld [vmem:[#allocation7 + $0x1d8] sm:$0xff]
    %v1854 = vld [vmem:[#allocation7 + $0x1f8] sm:$0xff]
    %1855 = vmatprep.subr.mxu0 0.0
    %1856 = vmatpush1.msra.mxu0 %v1839
    %1857 = vmatprep.subr.mxu0 0.0
    %1858 = vmatpush1.msra.mxu0 %v1840
    %1859 = vmatprep.subr.mxu0 0.0
    %1860 = vmatpush1.msra.mxu0 %v1841
    %1861 = vmatprep.subr.mxu0 0.0
    %1862 = vmatpush1.msra.mxu0 %v1842
    %1863 = vmatprep.subr.mxu0 0.0
    %1864 = vmatpush1.msra.mxu0 %v1843
    %1865 = vmatprep.subr.mxu0 0.0
    %1866 = vmatpush1.msra.mxu0 %v1844
    %1867 = vmatprep.subr.mxu0 0.0
    %1868 = vmatpush1.msra.mxu0 %v1845
    %1869 = vmatprep.subr.mxu0 0.0
    %1870 = vmatpush1.msra.mxu0 %v1846
    %1871 = vmatprep.subr.mxu0 0.0
    %1872 = vmatpush1.msra.mxu0 %v1847
    %1873 = vmatprep.subr.mxu0 0.0
    %1874 = vmatpush1.msra.mxu0 %v1848
    %1875 = vmatprep.subr.mxu0 0.0
    %1876 = vmatpush1.msra.mxu0 %v1849
    %1877 = vmatprep.subr.mxu0 0.0
    %1878 = vmatpush1.msra.mxu0 %v1850
    %1879 = vmatprep.subr.mxu0 0.0
    %1880 = vmatpush1.msra.mxu0 %v1851
    %1881 = vmatprep.subr.mxu0 0.0
    %1882 = vmatpush1.msra.mxu0 %v1852
    %1883 = vmatprep.subr.mxu0 0.0
    %1884 = vmatpush1.msra.mxu0 %v1853
    %1885 = vmatprep.subr.mxu0 0.0
    %1886 = vmatpush1.msra.mxu0 %v1854
    %1887 = vmatprep.subr.mxu0 0.0
    %1888 = vmatpush1.msra.mxu0 0.0
    %1889 = vmatprep.subr.mxu0 0.0
    %1890 = vmatpush1.msra.mxu0 0.0
    %1891 = vmatprep.subr.mxu0 0.0
    %1892 = vmatpush1.msra.mxu0 0.0
    %1893 = vmatprep.subr.mxu0 0.0
    %1894 = vmatpush1.msra.mxu0 0.0
    %1895 = vmatprep.subr.mxu0 0.0
    %1896 = vmatpush1.msra.mxu0 0.0
    %1897 = vmatprep.subr.mxu0 0.0
    %1898 = vmatpush1.msra.mxu0 0.0
    %1899 = vmatprep.subr.mxu0 0.0
    %1900 = vmatpush1.msra.mxu0 0.0
    %1901 = vmatprep.subr.mxu0 0.0
    %1902 = vmatpush1.msra.mxu0 0.0
    %1903 = vmatprep.subr.mxu0 0.0
    %1904 = vmatpush1.msra.mxu0 0.0
    %1905 = vmatprep.subr.mxu0 0.0
    %1906 = vmatpush1.msra.mxu0 0.0
    %1907 = vmatprep.subr.mxu0 0.0
    %1908 = vmatpush1.msra.mxu0 0.0
    %1909 = vmatprep.subr.mxu0 0.0
    %1910 = vmatpush1.msra.mxu0 0.0
    %1911 = vmatprep.subr.mxu0 0.0
    %1912 = vmatpush1.msra.mxu0 0.0
    %1913 = vmatprep.subr.mxu0 0.0
    %1914 = vmatpush1.msra.mxu0 0.0
    %1915 = vmatprep.subr.mxu0 0.0
    %1916 = vmatpush1.msra.mxu0 0.0
    %1917 = vmatprep.subr.mxu0 0.0
    %1918 = vmatpush1.msra.mxu0 0.0
    %1919 = vmatprep.mubr.f32.mxu0 0.0
    %1920 = vmatmul.mubr.f32.gmra.mrb[0].mxu0 %v1558
    %v1921 = vpop.f32.mrb[0].mxu0
    %v1922 = vadd.f32 0.0, %v1921
    %v1923 = vpop.f32.mrb[0].mxu0
    %1924 = vdwg.mxu0
    %v1925 = vadd.f32 %v1565, %v1922
    %v1926 = vtanh.pop %v1925
    %v1927 = vmul.f32 %v1747, %v1556
    %v1928 = vmul.f32 %v1656, %v1926
    %v1929 = vadd.f32 %v1927, %v1928
    %v1930 = vtanh.pop %v1929
    %v1931 = vmul.f32 %v1838, %v1930
    %s1932 = scalar_lea.vmem [#allocation10], 32
    %1933 = vst [vmem:[%s1932] sm:$0xff] %v1931
    %s1934 = scalar_lea.vmem [#allocation4], 160
    %v1935 = vld [vmem:[%s1934] sm:$0xff]
    %v1936 = vld [vmem:[%s1934 + $0x8] sm:$0xff]
    %v1937 = vld [vmem:[%s1934 + $0x10] sm:$0xff]
    %v1938 = vld [vmem:[%s1934 + $0x18] sm:$0xff]
    %v1939 = vld [vmem:[#allocation7] sm:$0xff]
    %v1940 = vld [vmem:[#allocation7 + $0x20] sm:$0xff]
    %v1941 = vld [vmem:[#allocation7 + $0x40] sm:$0xff]
    %v1942 = vld [vmem:[#allocation7 + $0x60] sm:$0xff]
    %v1943 = vld [vmem:[#allocation7 + $0x80] sm:$0xff]
    %v1944 = vld [vmem:[#allocation7 + $0xa0] sm:$0xff]
    %v1945 = vld [vmem:[#allocation7 + $0xc0] sm:$0xff]
    %v1946 = vld [vmem:[#allocation7 + $0xe0] sm:$0xff]
    %v1947 = vld [vmem:[#allocation7 + $0x100] sm:$0xff]
    %v1948 = vld [vmem:[#allocation7 + $0x120] sm:$0xff]
    %v1949 = vld [vmem:[#allocation7 + $0x140] sm:$0xff]
    %v1950 = vld [vmem:[#allocation7 + $0x160] sm:$0xff]
    %v1951 = vld [vmem:[#allocation7 + $0x180] sm:$0xff]
    %v1952 = vld [vmem:[#allocation7 + $0x1a0] sm:$0xff]
    %v1953 = vld [vmem:[#allocation7 + $0x1c0] sm:$0xff]
    %v1954 = vld [vmem:[#allocation7 + $0x1e0] sm:$0xff]
    %1955 = vmatprep.subr.mxu0 0.0
    %1956 = vmatpush1.msra.mxu0 %v1939
    %1957 = vmatprep.subr.mxu0 0.0
    %1958 = vmatpush1.msra.mxu0 %v1940
    %1959 = vmatprep.subr.mxu0 0.0
    %1960 = vmatpush1.msra.mxu0 %v1941
    %1961 = vmatprep.subr.mxu0 0.0
    %1962 = vmatpush1.msra.mxu0 %v1942
    %1963 = vmatprep.subr.mxu0 0.0
    %1964 = vmatpush1.msra.mxu0 %v1943
    %1965 = vmatprep.subr.mxu0 0.0
    %1966 = vmatpush1.msra.mxu0 %v1944
    %1967 = vmatprep.subr.mxu0 0.0
    %1968 = vmatpush1.msra.mxu0 %v1945
    %1969 = vmatprep.subr.mxu0 0.0
    %1970 = vmatpush1.msra.mxu0 %v1946
    %1971 = vmatprep.subr.mxu0 0.0
    %1972 = vmatpush1.msra.mxu0 %v1947
    %1973 = vmatprep.subr.mxu0 0.0
    %1974 = vmatpush1.msra.mxu0 %v1948
    %1975 = vmatprep.subr.mxu0 0.0
    %1976 = vmatpush1.msra.mxu0 %v1949
    %1977 = vmatprep.subr.mxu0 0.0
    %1978 = vmatpush1.msra.mxu0 %v1950
    %1979 = vmatprep.subr.mxu0 0.0
    %1980 = vmatpush1.msra.mxu0 %v1951
    %1981 = vmatprep.subr.mxu0 0.0
    %1982 = vmatpush1.msra.mxu0 %v1952
    %1983 = vmatprep.subr.mxu0 0.0
    %1984 = vmatpush1.msra.mxu0 %v1953
    %1985 = vmatprep.subr.mxu0 0.0
    %1986 = vmatpush1.msra.mxu0 %v1954
    %1987 = vmatprep.subr.mxu0 0.0
    %1988 = vmatpush1.msra.mxu0 0.0
    %1989 = vmatprep.subr.mxu0 0.0
    %1990 = vmatpush1.msra.mxu0 0.0
    %1991 = vmatprep.subr.mxu0 0.0
    %1992 = vmatpush1.msra.mxu0 0.0
    %1993 = vmatprep.subr.mxu0 0.0
    %1994 = vmatpush1.msra.mxu0 0.0
    %1995 = vmatprep.subr.mxu0 0.0
    %1996 = vmatpush1.msra.mxu0 0.0
    %1997 = vmatprep.subr.mxu0 0.0
    %1998 = vmatpush1.msra.mxu0 0.0
    %1999 = vmatprep.subr.mxu0 0.0
    %2000 = vmatpush1.msra.mxu0 0.0
    %2001 = vmatprep.subr.mxu0 0.0
    %2002 = vmatpush1.msra.mxu0 0.0
    %2003 = vmatprep.subr.mxu0 0.0
    %2004 = vmatpush1.msra.mxu0 0.0
    %2005 = vmatprep.subr.mxu0 0.0
    %2006 = vmatpush1.msra.mxu0 0.0
    %2007 = vmatprep.subr.mxu0 0.0
    %2008 = vmatpush1.msra.mxu0 0.0
    %2009 = vmatprep.subr.mxu0 0.0
    %2010 = vmatpush1.msra.mxu0 0.0
    %2011 = vmatprep.subr.mxu0 0.0
    %2012 = vmatpush1.msra.mxu0 0.0
    %2013 = vmatprep.subr.mxu0 0.0
    %2014 = vmatpush1.msra.mxu0 0.0
    %2015 = vmatprep.subr.mxu0 0.0
    %2016 = vmatpush1.msra.mxu0 0.0
    %2017 = vmatprep.subr.mxu0 0.0
    %2018 = vmatpush1.msra.mxu0 0.0
    %2019 = vmatprep.mubr.f32.mxu0 0.0
    %2020 = vmatmul.mubr.f32.gmra.mrb[0].mxu0 %v1931
    %v2021 = vpop.f32.mrb[0].mxu0
    %v2022 = vadd.f32 0.0, %v2021
    %v2023 = vpop.f32.mrb[0].mxu0
    %2024 = vdwg.mxu0
    %v2025 = vadd.f32 %v1935, %v2022
    %v2026 = vmul.f32 %v2025, 0.5
    %v2027 = vtanh.pop %v2026
    %v2028 = vmul.f32 %v2027, 0.5
    %v2029 = vadd.f32 %v2028, 0.5
    %v2030 = vld [vmem:[#allocation7 + $0x8] sm:$0xff]
    %v2031 = vld [vmem:[#allocation7 + $0x28] sm:$0xff]
    %v2032 = vld [vmem:[#allocation7 + $0x48] sm:$0xff]
    %v2033 = vld [vmem:[#allocation7 + $0x68] sm:$0xff]
    %v2034 = vld [vmem:[#allocation7 + $0x88] sm:$0xff]
    %v2035 = vld [vmem:[#allocation7 + $0xa8] sm:$0xff]
    %v2036 = vld [vmem:[#allocation7 + $0xc8] sm:$0xff]
    %v2037 = vld [vmem:[#allocation7 + $0xe8] sm:$0xff]
    %v2038 = vld [vmem:[#allocation7 + $0x108] sm:$0xff]
    %v2039 = vld [vmem:[#allocation7 + $0x128] sm:$0xff]
    %v2040 = vld [vmem:[#allocation7 + $0x148] sm:$0xff]
    %v2041 = vld [vmem:[#allocation7 + $0x168] sm:$0xff]
    %v2042 = vld [vmem:[#allocation7 + $0x188] sm:$0xff]
    %v2043 = vld [vmem:[#allocation7 + $0x1a8] sm:$0xff]
    %v2044 = vld [vmem:[#allocation7 + $0x1c8] sm:$0xff]
    %v2045 = vld [vmem:[#allocation7 + $0x1e8] sm:$0xff]
    %2046 = vmatprep.subr.mxu0 0.0
    %2047 = vmatpush1.msra.mxu0 %v2030
    %2048 = vmatprep.subr.mxu0 0.0
    %2049 = vmatpush1.msra.mxu0 %v2031
    %2050 = vmatprep.subr.mxu0 0.0
    %2051 = vmatpush1.msra.mxu0 %v2032
    %2052 = vmatprep.subr.mxu0 0.0
    %2053 = vmatpush1.msra.mxu0 %v2033
    %2054 = vmatprep.subr.mxu0 0.0
    %2055 = vmatpush1.msra.mxu0 %v2034
    %2056 = vmatprep.subr.mxu0 0.0
    %2057 = vmatpush1.msra.mxu0 %v2035
    %2058 = vmatprep.subr.mxu0 0.0
    %2059 = vmatpush1.msra.mxu0 %v2036
    %2060 = vmatprep.subr.mxu0 0.0
    %2061 = vmatpush1.msra.mxu0 %v2037
    %2062 = vmatprep.subr.mxu0 0.0
    %2063 = vmatpush1.msra.mxu0 %v2038
    %2064 = vmatprep.subr.mxu0 0.0
    %2065 = vmatpush1.msra.mxu0 %v2039
    %2066 = vmatprep.subr.mxu0 0.0
    %2067 = vmatpush1.msra.mxu0 %v2040
    %2068 = vmatprep.subr.mxu0 0.0
    %2069 = vmatpush1.msra.mxu0 %v2041
    %2070 = vmatprep.subr.mxu0 0.0
    %2071 = vmatpush1.msra.mxu0 %v2042
    %2072 = vmatprep.subr.mxu0 0.0
    %2073 = vmatpush1.msra.mxu0 %v2043
    %2074 = vmatprep.subr.mxu0 0.0
    %2075 = vmatpush1.msra.mxu0 %v2044
    %2076 = vmatprep.subr.mxu0 0.0
    %2077 = vmatpush1.msra.mxu0 %v2045
    %2078 = vmatprep.subr.mxu0 0.0
    %2079 = vmatpush1.msra.mxu0 0.0
    %2080 = vmatprep.subr.mxu0 0.0
    %2081 = vmatpush1.msra.mxu0 0.0
    %2082 = vmatprep.subr.mxu0 0.0
    %2083 = vmatpush1.msra.mxu0 0.0
    %2084 = vmatprep.subr.mxu0 0.0
    %2085 = vmatpush1.msra.mxu0 0.0
    %2086 = vmatprep.subr.mxu0 0.0
    %2087 = vmatpush1.msra.mxu0 0.0
    %2088 = vmatprep.subr.mxu0 0.0
    %2089 = vmatpush1.msra.mxu0 0.0
    %2090 = vmatprep.subr.mxu0 0.0
    %2091 = vmatpush1.msra.mxu0 0.0
    %2092 = vmatprep.subr.mxu0 0.0
    %2093 = vmatpush1.msra.mxu0 0.0
    %2094 = vmatprep.subr.mxu0 0.0
    %2095 = vmatpush1.msra.mxu0 0.0
    %2096 = vmatprep.subr.mxu0 0.0
    %2097 = vmatpush1.msra.mxu0 0.0
    %2098 = vmatprep.subr.mxu0 0.0
    %2099 = vmatpush1.msra.mxu0 0.0
    %2100 = vmatprep.subr.mxu0 0.0
    %2101 = vmatpush1.msra.mxu0 0.0
    %2102 = vmatprep.subr.mxu0 0.0
    %2103 = vmatpush1.msra.mxu0 0.0
    %2104 = vmatprep.subr.mxu0 0.0
    %2105 = vmatpush1.msra.mxu0 0.0
    %2106 = vmatprep.subr.mxu0 0.0
    %2107 = vmatpush1.msra.mxu0 0.0
    %2108 = vmatprep.subr.mxu0 0.0
    %2109 = vmatpush1.msra.mxu0 0.0
    %2110 = vmatprep.mubr.f32.mxu0 0.0
    %2111 = vmatmul.mubr.f32.gmra.mrb[0].mxu0 %v1931
    %v2112 = vpop.f32.mrb[0].mxu0
    %v2113 = vadd.f32 0.0, %v2112
    %v2114 = vpop.f32.mrb[0].mxu0
    %2115 = vdwg.mxu0
    %v2116 = vadd.f32 %v1936, %v2113
    %v2117 = vmul.f32 %v2116, 0.5
    %v2118 = vtanh.pop %v2117
    %v2119 = vmul.f32 %v2118, 0.5
    %v2120 = vadd.f32 %v2119, 0.5
    %v2121 = vld [vmem:[#allocation7 + $0x10] sm:$0xff]
    %v2122 = vld [vmem:[#allocation7 + $0x30] sm:$0xff]
    %v2123 = vld [vmem:[#allocation7 + $0x50] sm:$0xff]
    %v2124 = vld [vmem:[#allocation7 + $0x70] sm:$0xff]
    %v2125 = vld [vmem:[#allocation7 + $0x90] sm:$0xff]
    %v2126 = vld [vmem:[#allocation7 + $0xb0] sm:$0xff]
    %v2127 = vld [vmem:[#allocation7 + $0xd0] sm:$0xff]
    %v2128 = vld [vmem:[#allocation7 + $0xf0] sm:$0xff]
    %v2129 = vld [vmem:[#allocation7 + $0x110] sm:$0xff]
    %v2130 = vld [vmem:[#allocation7 + $0x130] sm:$0xff]
    %v2131 = vld [vmem:[#allocation7 + $0x150] sm:$0xff]
    %v2132 = vld [vmem:[#allocation7 + $0x170] sm:$0xff]
    %v2133 = vld [vmem:[#allocation7 + $0x190] sm:$0xff]
    %v2134 = vld [vmem:[#allocation7 + $0x1b0] sm:$0xff]
    %v2135 = vld [vmem:[#allocation7 + $0x1d0] sm:$0xff]
    %v2136 = vld [vmem:[#allocation7 + $0x1f0] sm:$0xff]
    %2137 = vmatprep.subr.mxu0 0.0
    %2138 = vmatpush1.msra.mxu0 %v2121
    %2139 = vmatprep.subr.mxu0 0.0
    %2140 = vmatpush1.msra.mxu0 %v2122
    %2141 = vmatprep.subr.mxu0 0.0
    %2142 = vmatpush1.msra.mxu0 %v2123
    %2143 = vmatprep.subr.mxu0 0.0
    %2144 = vmatpush1.msra.mxu0 %v2124
    %2145 = vmatprep.subr.mxu0 0.0
    %2146 = vmatpush1.msra.mxu0 %v2125
    %2147 = vmatprep.subr.mxu0 0.0
    %2148 = vmatpush1.msra.mxu0 %v2126
    %2149 = vmatprep.subr.mxu0 0.0
    %2150 = vmatpush1.msra.mxu0 %v2127
    %2151 = vmatprep.subr.mxu0 0.0
    %2152 = vmatpush1.msra.mxu0 %v2128
    %2153 = vmatprep.subr.mxu0 0.0
    %2154 = vmatpush1.msra.mxu0 %v2129
    %2155 = vmatprep.subr.mxu0 0.0
    %2156 = vmatpush1.msra.mxu0 %v2130
    %2157 = vmatprep.subr.mxu0 0.0
    %2158 = vmatpush1.msra.mxu0 %v2131
    %2159 = vmatprep.subr.mxu0 0.0
    %2160 = vmatpush1.msra.mxu0 %v2132
    %2161 = vmatprep.subr.mxu0 0.0
    %2162 = vmatpush1.msra.mxu0 %v2133
    %2163 = vmatprep.subr.mxu0 0.0
    %2164 = vmatpush1.msra.mxu0 %v2134
    %2165 = vmatprep.subr.mxu0 0.0
    %2166 = vmatpush1.msra.mxu0 %v2135
    %2167 = vmatprep.subr.mxu0 0.0
    %2168 = vmatpush1.msra.mxu0 %v2136
    %2169 = vmatprep.subr.mxu0 0.0
    %2170 = vmatpush1.msra.mxu0 0.0
    %2171 = vmatprep.subr.mxu0 0.0
    %2172 = vmatpush1.msra.mxu0 0.0
    %2173 = vmatprep.subr.mxu0 0.0
    %2174 = vmatpush1.msra.mxu0 0.0
    %2175 = vmatprep.subr.mxu0 0.0
    %2176 = vmatpush1.msra.mxu0 0.0
    %2177 = vmatprep.subr.mxu0 0.0
    %2178 = vmatpush1.msra.mxu0 0.0
    %2179 = vmatprep.subr.mxu0 0.0
    %2180 = vmatpush1.msra.mxu0 0.0
    %2181 = vmatprep.subr.mxu0 0.0
    %2182 = vmatpush1.msra.mxu0 0.0
    %2183 = vmatprep.subr.mxu0 0.0
    %2184 = vmatpush1.msra.mxu0 0.0
    %2185 = vmatprep.subr.mxu0 0.0
    %2186 = vmatpush1.msra.mxu0 0.0
    %2187 = vmatprep.subr.mxu0 0.0
    %2188 = vmatpush1.msra.mxu0 0.0
    %2189 = vmatprep.subr.mxu0 0.0
    %2190 = vmatpush1.msra.mxu0 0.0
    %2191 = vmatprep.subr.mxu0 0.0
    %2192 = vmatpush1.msra.mxu0 0.0
    %2193 = vmatprep.subr.mxu0 0.0
    %2194 = vmatpush1.msra.mxu0 0.0
    %2195 = vmatprep.subr.mxu0 0.0
    %2196 = vmatpush1.msra.mxu0 0.0
    %2197 = vmatprep.subr.mxu0 0.0
    %2198 = vmatpush1.msra.mxu0 0.0
    %2199 = vmatprep.subr.mxu0 0.0
    %2200 = vmatpush1.msra.mxu0 0.0
    %2201 = vmatprep.mubr.f32.mxu0 0.0
    %2202 = vmatmul.mubr.f32.gmra.mrb[0].mxu0 %v1931
    %v2203 = vpop.f32.mrb[0].mxu0
    %v2204 = vadd.f32 0.0, %v2203
    %v2205 = vpop.f32.mrb[0].mxu0
    %2206 = vdwg.mxu0
    %v2207 = vadd.f32 %v1937, %v2204
    %v2208 = vmul.f32 %v2207, 0.5
    %v2209 = vtanh.pop %v2208
    %v2210 = vmul.f32 %v2209, 0.5
    %v2211 = vadd.f32 %v2210, 0.5
    %v2212 = vld [vmem:[#allocation7 + $0x18] sm:$0xff]
    %v2213 = vld [vmem:[#allocation7 + $0x38] sm:$0xff]
    %v2214 = vld [vmem:[#allocation7 + $0x58] sm:$0xff]
    %v2215 = vld [vmem:[#allocation7 + $0x78] sm:$0xff]
    %v2216 = vld [vmem:[#allocation7 + $0x98] sm:$0xff]
    %v2217 = vld [vmem:[#allocation7 + $0xb8] sm:$0xff]
    %v2218 = vld [vmem:[#allocation7 + $0xd8] sm:$0xff]
    %v2219 = vld [vmem:[#allocation7 + $0xf8] sm:$0xff]
    %v2220 = vld [vmem:[#allocation7 + $0x118] sm:$0xff]
    %v2221 = vld [vmem:[#allocation7 + $0x138] sm:$0xff]
    %v2222 = vld [vmem:[#allocation7 + $0x158] sm:$0xff]
    %v2223 = vld [vmem:[#allocation7 + $0x178] sm:$0xff]
    %v2224 = vld [vmem:[#allocation7 + $0x198] sm:$0xff]
    %v2225 = vld [vmem:[#allocation7 + $0x1b8] sm:$0xff]
    %v2226 = vld [vmem:[#allocation7 + $0x1d8] sm:$0xff]
    %v2227 = vld [vmem:[#allocation7 + $0x1f8] sm:$0xff]
    %2228 = vmatprep.subr.mxu0 0.0
    %2229 = vmatpush1.msra.mxu0 %v2212
    %2230 = vmatprep.subr.mxu0 0.0
    %2231 = vmatpush1.msra.mxu0 %v2213
    %2232 = vmatprep.subr.mxu0 0.0
    %2233 = vmatpush1.msra.mxu0 %v2214
    %2234 = vmatprep.subr.mxu0 0.0
    %2235 = vmatpush1.msra.mxu0 %v2215
    %2236 = vmatprep.subr.mxu0 0.0
    %2237 = vmatpush1.msra.mxu0 %v2216
    %2238 = vmatprep.subr.mxu0 0.0
    %2239 = vmatpush1.msra.mxu0 %v2217
    %2240 = vmatprep.subr.mxu0 0.0
    %2241 = vmatpush1.msra.mxu0 %v2218
    %2242 = vmatprep.subr.mxu0 0.0
    %2243 = vmatpush1.msra.mxu0 %v2219
    %2244 = vmatprep.subr.mxu0 0.0
    %2245 = vmatpush1.msra.mxu0 %v2220
    %2246 = vmatprep.subr.mxu0 0.0
    %2247 = vmatpush1.msra.mxu0 %v2221
    %2248 = vmatprep.subr.mxu0 0.0
    %2249 = vmatpush1.msra.mxu0 %v2222
    %2250 = vmatprep.subr.mxu0 0.0
    %2251 = vmatpush1.msra.mxu0 %v2223
    %2252 = vmatprep.subr.mxu0 0.0
    %2253 = vmatpush1.msra.mxu0 %v2224
    %2254 = vmatprep.subr.mxu0 0.0
    %2255 = vmatpush1.msra.mxu0 %v2225
    %2256 = vmatprep.subr.mxu0 0.0
    %2257 = vmatpush1.msra.mxu0 %v2226
    %2258 = vmatprep.subr.mxu0 0.0
    %2259 = vmatpush1.msra.mxu0 %v2227
    %2260 = vmatprep.subr.mxu0 0.0
    %2261 = vmatpush1.msra.mxu0 0.0
    %2262 = vmatprep.subr.mxu0 0.0
    %2263 = vmatpush1.msra.mxu0 0.0
    %2264 = vmatprep.subr.mxu0 0.0
    %2265 = vmatpush1.msra.mxu0 0.0
    %2266 = vmatprep.subr.mxu0 0.0
    %2267 = vmatpush1.msra.mxu0 0.0
    %2268 = vmatprep.subr.mxu0 0.0
    %2269 = vmatpush1.msra.mxu0 0.0
    %2270 = vmatprep.subr.mxu0 0.0
    %2271 = vmatpush1.msra.mxu0 0.0
    %2272 = vmatprep.subr.mxu0 0.0
    %2273 = vmatpush1.msra.mxu0 0.0
    %2274 = vmatprep.subr.mxu0 0.0
    %2275 = vmatpush1.msra.mxu0 0.0
    %2276 = vmatprep.subr.mxu0 0.0
    %2277 = vmatpush1.msra.mxu0 0.0
    %2278 = vmatprep.subr.mxu0 0.0
    %2279 = vmatpush1.msra.mxu0 0.0
    %2280 = vmatprep.subr.mxu0 0.0
    %2281 = vmatpush1.msra.mxu0 0.0
    %2282 = vmatprep.subr.mxu0 0.0
    %2283 = vmatpush1.msra.mxu0 0.0
    %2284 = vmatprep.subr.mxu0 0.0
    %2285 = vmatpush1.msra.mxu0 0.0
    %2286 = vmatprep.subr.mxu0 0.0
    %2287 = vmatpush1.msra.mxu0 0.0
    %2288 = vmatprep.subr.mxu0 0.0
    %2289 = vmatpush1.msra.mxu0 0.0
    %2290 = vmatprep.subr.mxu0 0.0
    %2291 = vmatpush1.msra.mxu0 0.0
    %2292 = vmatprep.mubr.f32.mxu0 0.0
    %2293 = vmatmul.mubr.f32.gmra.mrb[0].mxu0 %v1931
    %v2294 = vpop.f32.mrb[0].mxu0
    %v2295 = vadd.f32 0.0, %v2294
    %v2296 = vpop.f32.mrb[0].mxu0
    %2297 = vdwg.mxu0
    %v2298 = vadd.f32 %v1938, %v2295
    %v2299 = vtanh.pop %v2298
    %v2300 = vmul.f32 %v2120, %v1929
    %v2301 = vmul.f32 %v2029, %v2299
    %v2302 = vadd.f32 %v2300, %v2301
    %v2303 = vtanh.pop %v2302
    %v2304 = vmul.f32 %v2211, %v2303
    %s2305 = scalar_lea.vmem [#allocation10], 40
    %2306 = vst [vmem:[%s2305] sm:$0xff] %v2304
    %s2307 = scalar_lea.vmem [#allocation4], 192
    %v2308 = vld [vmem:[%s2307] sm:$0xff]
    %v2309 = vld [vmem:[%s2307 + $0x8] sm:$0xff]
    %v2310 = vld [vmem:[%s2307 + $0x10] sm:$0xff]
    %v2311 = vld [vmem:[%s2307 + $0x18] sm:$0xff]
    %v2312 = vld [vmem:[#allocation7] sm:$0xff]
    %v2313 = vld [vmem:[#allocation7 + $0x20] sm:$0xff]
    %v2314 = vld [vmem:[#allocation7 + $0x40] sm:$0xff]
    %v2315 = vld [vmem:[#allocation7 + $0x60] sm:$0xff]
    %v2316 = vld [vmem:[#allocation7 + $0x80] sm:$0xff]
    %v2317 = vld [vmem:[#allocation7 + $0xa0] sm:$0xff]
    %v2318 = vld [vmem:[#allocation7 + $0xc0] sm:$0xff]
    %v2319 = vld [vmem:[#allocation7 + $0xe0] sm:$0xff]
    %v2320 = vld [vmem:[#allocation7 + $0x100] sm:$0xff]
    %v2321 = vld [vmem:[#allocation7 + $0x120] sm:$0xff]
    %v2322 = vld [vmem:[#allocation7 + $0x140] sm:$0xff]
    %v2323 = vld [vmem:[#allocation7 + $0x160] sm:$0xff]
    %v2324 = vld [vmem:[#allocation7 + $0x180] sm:$0xff]
    %v2325 = vld [vmem:[#allocation7 + $0x1a0] sm:$0xff]
    %v2326 = vld [vmem:[#allocation7 + $0x1c0] sm:$0xff]
    %v2327 = vld [vmem:[#allocation7 + $0x1e0] sm:$0xff]
    %2328 = vmatprep.subr.mxu0 0.0
    %2329 = vmatpush1.msra.mxu0 %v2312
    %2330 = vmatprep.subr.mxu0 0.0
    %2331 = vmatpush1.msra.mxu0 %v2313
    %2332 = vmatprep.subr.mxu0 0.0
    %2333 = vmatpush1.msra.mxu0 %v2314
    %2334 = vmatprep.subr.mxu0 0.0
    %2335 = vmatpush1.msra.mxu0 %v2315
    %2336 = vmatprep.subr.mxu0 0.0
    %2337 = vmatpush1.msra.mxu0 %v2316
    %2338 = vmatprep.subr.mxu0 0.0
    %2339 = vmatpush1.msra.mxu0 %v2317
    %2340 = vmatprep.subr.mxu0 0.0
    %2341 = vmatpush1.msra.mxu0 %v2318
    %2342 = vmatprep.subr.mxu0 0.0
    %2343 = vmatpush1.msra.mxu0 %v2319
    %2344 = vmatprep.subr.mxu0 0.0
    %2345 = vmatpush1.msra.mxu0 %v2320
    %2346 = vmatprep.subr.mxu0 0.0
    %2347 = vmatpush1.msra.mxu0 %v2321
    %2348 = vmatprep.subr.mxu0 0.0
    %2349 = vmatpush1.msra.mxu0 %v2322
    %2350 = vmatprep.subr.mxu0 0.0
    %2351 = vmatpush1.msra.mxu0 %v2323
    %2352 = vmatprep.subr.mxu0 0.0
    %2353 = vmatpush1.msra.mxu0 %v2324
    %2354 = vmatprep.subr.mxu0 0.0
    %2355 = vmatpush1.msra.mxu0 %v2325
    %2356 = vmatprep.subr.mxu0 0.0
    %2357 = vmatpush1.msra.mxu0 %v2326
    %2358 = vmatprep.subr.mxu0 0.0
    %2359 = vmatpush1.msra.mxu0 %v2327
    %2360 = vmatprep.subr.mxu0 0.0
    %2361 = vmatpush1.msra.mxu0 0.0
    %2362 = vmatprep.subr.mxu0 0.0
    %2363 = vmatpush1.msra.mxu0 0.0
    %2364 = vmatprep.subr.mxu0 0.0
    %2365 = vmatpush1.msra.mxu0 0.0
    %2366 = vmatprep.subr.mxu0 0.0
    %2367 = vmatpush1.msra.mxu0 0.0
    %2368 = vmatprep.subr.mxu0 0.0
    %2369 = vmatpush1.msra.mxu0 0.0
    %2370 = vmatprep.subr.mxu0 0.0
    %2371 = vmatpush1.msra.mxu0 0.0
    %2372 = vmatprep.subr.mxu0 0.0
    %2373 = vmatpush1.msra.mxu0 0.0
    %2374 = vmatprep.subr.mxu0 0.0
    %2375 = vmatpush1.msra.mxu0 0.0
    %2376 = vmatprep.subr.mxu0 0.0
    %2377 = vmatpush1.msra.mxu0 0.0
    %2378 = vmatprep.subr.mxu0 0.0
    %2379 = vmatpush1.msra.mxu0 0.0
    %2380 = vmatprep.subr.mxu0 0.0
    %2381 = vmatpush1.msra.mxu0 0.0
    %2382 = vmatprep.subr.mxu0 0.0
    %2383 = vmatpush1.msra.mxu0 0.0
    %2384 = vmatprep.subr.mxu0 0.0
    %2385 = vmatpush1.msra.mxu0 0.0
    %2386 = vmatprep.subr.mxu0 0.0
    %2387 = vmatpush1.msra.mxu0 0.0
    %2388 = vmatprep.subr.mxu0 0.0
    %2389 = vmatpush1.msra.mxu0 0.0
    %2390 = vmatprep.subr.mxu0 0.0
    %2391 = vmatpush1.msra.mxu0 0.0
    %2392 = vmatprep.mubr.f32.mxu0 0.0
    %2393 = vmatmul.mubr.f32.gmra.mrb[0].mxu0 %v2304
    %v2394 = vpop.f32.mrb[0].mxu0
    %v2395 = vadd.f32 0.0, %v2394
    %v2396 = vpop.f32.mrb[0].mxu0
    %2397 = vdwg.mxu0
    %v2398 = vadd.f32 %v2308, %v2395
    %v2399 = vmul.f32 %v2398, 0.5
    %v2400 = vtanh.pop %v2399
    %v2401 = vmul.f32 %v2400, 0.5
    %v2402 = vadd.f32 %v2401, 0.5
    %v2403 = vld [vmem:[#allocation7 + $0x8] sm:$0xff]
    %v2404 = vld [vmem:[#allocation7 + $0x28] sm:$0xff]
    %v2405 = vld [vmem:[#allocation7 + $0x48] sm:$0xff]
    %v2406 = vld [vmem:[#allocation7 + $0x68] sm:$0xff]
    %v2407 = vld [vmem:[#allocation7 + $0x88] sm:$0xff]
    %v2408 = vld [vmem:[#allocation7 + $0xa8] sm:$0xff]
    %v2409 = vld [vmem:[#allocation7 + $0xc8] sm:$0xff]
    %v2410 = vld [vmem:[#allocation7 + $0xe8] sm:$0xff]
    %v2411 = vld [vmem:[#allocation7 + $0x108] sm:$0xff]
    %v2412 = vld [vmem:[#allocation7 + $0x128] sm:$0xff]
    %v2413 = vld [vmem:[#allocation7 + $0x148] sm:$0xff]
    %v2414 = vld [vmem:[#allocation7 + $0x168] sm:$0xff]
    %v2415 = vld [vmem:[#allocation7 + $0x188] sm:$0xff]
    %v2416 = vld [vmem:[#allocation7 + $0x1a8] sm:$0xff]
    %v2417 = vld [vmem:[#allocation7 + $0x1c8] sm:$0xff]
    %v2418 = vld [vmem:[#allocation7 + $0x1e8] sm:$0xff]
    %2419 = vmatprep.subr.mxu0 0.0
    %2420 = vmatpush1.msra.mxu0 %v2403
    %2421 = vmatprep.subr.mxu0 0.0
    %2422 = vmatpush1.msra.mxu0 %v2404
    %2423 = vmatprep.subr.mxu0 0.0
    %2424 = vmatpush1.msra.mxu0 %v2405
    %2425 = vmatprep.subr.mxu0 0.0
    %2426 = vmatpush1.msra.mxu0 %v2406
    %2427 = vmatprep.subr.mxu0 0.0
    %2428 = vmatpush1.msra.mxu0 %v2407
    %2429 = vmatprep.subr.mxu0 0.0
    %2430 = vmatpush1.msra.mxu0 %v2408
    %2431 = vmatprep.subr.mxu0 0.0
    %2432 = vmatpush1.msra.mxu0 %v2409
    %2433 = vmatprep.subr.mxu0 0.0
    %2434 = vmatpush1.msra.mxu0 %v2410
    %2435 = vmatprep.subr.mxu0 0.0
    %2436 = vmatpush1.msra.mxu0 %v2411
    %2437 = vmatprep.subr.mxu0 0.0
    %2438 = vmatpush1.msra.mxu0 %v2412
    %2439 = vmatprep.subr.mxu0 0.0
    %2440 = vmatpush1.msra.mxu0 %v2413
    %2441 = vmatprep.subr.mxu0 0.0
    %2442 = vmatpush1.msra.mxu0 %v2414
    %2443 = vmatprep.subr.mxu0 0.0
    %2444 = vmatpush1.msra.mxu0 %v2415
    %2445 = vmatprep.subr.mxu0 0.0
    %2446 = vmatpush1.msra.mxu0 %v2416
    %2447 = vmatprep.subr.mxu0 0.0
    %2448 = vmatpush1.msra.mxu0 %v2417
    %2449 = vmatprep.subr.mxu0 0.0
    %2450 = vmatpush1.msra.mxu0 %v2418
    %2451 = vmatprep.subr.mxu0 0.0
    %2452 = vmatpush1.msra.mxu0 0.0
    %2453 = vmatprep.subr.mxu0 0.0
    %2454 = vmatpush1.msra.mxu0 0.0
    %2455 = vmatprep.subr.mxu0 0.0
    %2456 = vmatpush1.msra.mxu0 0.0
    %2457 = vmatprep.subr.mxu0 0.0
    %2458 = vmatpush1.msra.mxu0 0.0
    %2459 = vmatprep.subr.mxu0 0.0
    %2460 = vmatpush1.msra.mxu0 0.0
    %2461 = vmatprep.subr.mxu0 0.0
    %2462 = vmatpush1.msra.mxu0 0.0
    %2463 = vmatprep.subr.mxu0 0.0
    %2464 = vmatpush1.msra.mxu0 0.0
    %2465 = vmatprep.subr.mxu0 0.0
    %2466 = vmatpush1.msra.mxu0 0.0
    %2467 = vmatprep.subr.mxu0 0.0
    %2468 = vmatpush1.msra.mxu0 0.0
    %2469 = vmatprep.subr.mxu0 0.0
    %2470 = vmatpush1.msra.mxu0 0.0
    %2471 = vmatprep.subr.mxu0 0.0
    %2472 = vmatpush1.msra.mxu0 0.0
    %2473 = vmatprep.subr.mxu0 0.0
    %2474 = vmatpush1.msra.mxu0 0.0
    %2475 = vmatprep.subr.mxu0 0.0
    %2476 = vmatpush1.msra.mxu0 0.0
    %2477 = vmatprep.subr.mxu0 0.0
    %2478 = vmatpush1.msra.mxu0 0.0
    %2479 = vmatprep.subr.mxu0 0.0
    %2480 = vmatpush1.msra.mxu0 0.0
    %2481 = vmatprep.subr.mxu0 0.0
    %2482 = vmatpush1.msra.mxu0 0.0
    %2483 = vmatprep.mubr.f32.mxu0 0.0
    %2484 = vmatmul.mubr.f32.gmra.mrb[0].mxu0 %v2304
    %v2485 = vpop.f32.mrb[0].mxu0
    %v2486 = vadd.f32 0.0, %v2485
    %v2487 = vpop.f32.mrb[0].mxu0
    %2488 = vdwg.mxu0
    %v2489 = vadd.f32 %v2309, %v2486
    %v2490 = vmul.f32 %v2489, 0.5
    %v2491 = vtanh.pop %v2490
    %v2492 = vmul.f32 %v2491, 0.5
    %v2493 = vadd.f32 %v2492, 0.5
    %v2494 = vld [vmem:[#allocation7 + $0x10] sm:$0xff]
    %v2495 = vld [vmem:[#allocation7 + $0x30] sm:$0xff]
    %v2496 = vld [vmem:[#allocation7 + $0x50] sm:$0xff]
    %v2497 = vld [vmem:[#allocation7 + $0x70] sm:$0xff]
    %v2498 = vld [vmem:[#allocation7 + $0x90] sm:$0xff]
    %v2499 = vld [vmem:[#allocation7 + $0xb0] sm:$0xff]
    %v2500 = vld [vmem:[#allocation7 + $0xd0] sm:$0xff]
    %v2501 = vld [vmem:[#allocation7 + $0xf0] sm:$0xff]
    %v2502 = vld [vmem:[#allocation7 + $0x110] sm:$0xff]
    %v2503 = vld [vmem:[#allocation7 + $0x130] sm:$0xff]
    %v2504 = vld [vmem:[#allocation7 + $0x150] sm:$0xff]
    %v2505 = vld [vmem:[#allocation7 + $0x170] sm:$0xff]
    %v2506 = vld [vmem:[#allocation7 + $0x190] sm:$0xff]
    %v2507 = vld [vmem:[#allocation7 + $0x1b0] sm:$0xff]
    %v2508 = vld [vmem:[#allocation7 + $0x1d0] sm:$0xff]
    %v2509 = vld [vmem:[#allocation7 + $0x1f0] sm:$0xff]
    %2510 = vmatprep.subr.mxu0 0.0
    %2511 = vmatpush1.msra.mxu0 %v2494
    %2512 = vmatprep.subr.mxu0 0.0
    %2513 = vmatpush1.msra.mxu0 %v2495
    %2514 = vmatprep.subr.mxu0 0.0
    %2515 = vmatpush1.msra.mxu0 %v2496
    %2516 = vmatprep.subr.mxu0 0.0
    %2517 = vmatpush1.msra.mxu0 %v2497
    %2518 = vmatprep.subr.mxu0 0.0
    %2519 = vmatpush1.msra.mxu0 %v2498
    %2520 = vmatprep.subr.mxu0 0.0
    %2521 = vmatpush1.msra.mxu0 %v2499
    %2522 = vmatprep.subr.mxu0 0.0
    %2523 = vmatpush1.msra.mxu0 %v2500
    %2524 = vmatprep.subr.mxu0 0.0
    %2525 = vmatpush1.msra.mxu0 %v2501
    %2526 = vmatprep.subr.mxu0 0.0
    %2527 = vmatpush1.msra.mxu0 %v2502
    %2528 = vmatprep.subr.mxu0 0.0
    %2529 = vmatpush1.msra.mxu0 %v2503
    %2530 = vmatprep.subr.mxu0 0.0
    %2531 = vmatpush1.msra.mxu0 %v2504
    %2532 = vmatprep.subr.mxu0 0.0
    %2533 = vmatpush1.msra.mxu0 %v2505
    %2534 = vmatprep.subr.mxu0 0.0
    %2535 = vmatpush1.msra.mxu0 %v2506
    %2536 = vmatprep.subr.mxu0 0.0
    %2537 = vmatpush1.msra.mxu0 %v2507
    %2538 = vmatprep.subr.mxu0 0.0
    %2539 = vmatpush1.msra.mxu0 %v2508
    %2540 = vmatprep.subr.mxu0 0.0
    %2541 = vmatpush1.msra.mxu0 %v2509
    %2542 = vmatprep.subr.mxu0 0.0
    %2543 = vmatpush1.msra.mxu0 0.0
    %2544 = vmatprep.subr.mxu0 0.0
    %2545 = vmatpush1.msra.mxu0 0.0
    %2546 = vmatprep.subr.mxu0 0.0
    %2547 = vmatpush1.msra.mxu0 0.0
    %2548 = vmatprep.subr.mxu0 0.0
    %2549 = vmatpush1.msra.mxu0 0.0
    %2550 = vmatprep.subr.mxu0 0.0
    %2551 = vmatpush1.msra.mxu0 0.0
    %2552 = vmatprep.subr.mxu0 0.0
    %2553 = vmatpush1.msra.mxu0 0.0
    %2554 = vmatprep.subr.mxu0 0.0
    %2555 = vmatpush1.msra.mxu0 0.0
    %2556 = vmatprep.subr.mxu0 0.0
    %2557 = vmatpush1.msra.mxu0 0.0
    %2558 = vmatprep.subr.mxu0 0.0
    %2559 = vmatpush1.msra.mxu0 0.0
    %2560 = vmatprep.subr.mxu0 0.0
    %2561 = vmatpush1.msra.mxu0 0.0
    %2562 = vmatprep.subr.mxu0 0.0
    %2563 = vmatpush1.msra.mxu0 0.0
    %2564 = vmatprep.subr.mxu0 0.0
    %2565 = vmatpush1.msra.mxu0 0.0
    %2566 = vmatprep.subr.mxu0 0.0
    %2567 = vmatpush1.msra.mxu0 0.0
    %2568 = vmatprep.subr.mxu0 0.0
    %2569 = vmatpush1.msra.mxu0 0.0
    %2570 = vmatprep.subr.mxu0 0.0
    %2571 = vmatpush1.msra.mxu0 0.0
    %2572 = vmatprep.subr.mxu0 0.0
    %2573 = vmatpush1.msra.mxu0 0.0
    %2574 = vmatprep.mubr.f32.mxu0 0.0
    %2575 = vmatmul.mubr.f32.gmra.mrb[0].mxu0 %v2304
    %v2576 = vpop.f32.mrb[0].mxu0
    %v2577 = vadd.f32 0.0, %v2576
    %v2578 = vpop.f32.mrb[0].mxu0
    %2579 = vdwg.mxu0
    %v2580 = vadd.f32 %v2310, %v2577
    %v2581 = vmul.f32 %v2580, 0.5
    %v2582 = vtanh.pop %v2581
    %v2583 = vmul.f32 %v2582, 0.5
    %v2584 = vadd.f32 %v2583, 0.5
    %v2585 = vld [vmem:[#allocation7 + $0x18] sm:$0xff]
    %v2586 = vld [vmem:[#allocation7 + $0x38] sm:$0xff]
    %v2587 = vld [vmem:[#allocation7 + $0x58] sm:$0xff]
    %v2588 = vld [vmem:[#allocation7 + $0x78] sm:$0xff]
    %v2589 = vld [vmem:[#allocation7 + $0x98] sm:$0xff]
    %v2590 = vld [vmem:[#allocation7 + $0xb8] sm:$0xff]
    %v2591 = vld [vmem:[#allocation7 + $0xd8] sm:$0xff]
    %v2592 = vld [vmem:[#allocation7 + $0xf8] sm:$0xff]
    %v2593 = vld [vmem:[#allocation7 + $0x118] sm:$0xff]
    %v2594 = vld [vmem:[#allocation7 + $0x138] sm:$0xff]
    %v2595 = vld [vmem:[#allocation7 + $0x158] sm:$0xff]
    %v2596 = vld [vmem:[#allocation7 + $0x178] sm:$0xff]
    %v2597 = vld [vmem:[#allocation7 + $0x198] sm:$0xff]
    %v2598 = vld [vmem:[#allocation7 + $0x1b8] sm:$0xff]
    %v2599 = vld [vmem:[#allocation7 + $0x1d8] sm:$0xff]
    %v2600 = vld [vmem:[#allocation7 + $0x1f8] sm:$0xff]
    %2601 = vmatprep.subr.mxu0 0.0
    %2602 = vmatpush1.msra.mxu0 %v2585
    %2603 = vmatprep.subr.mxu0 0.0
    %2604 = vmatpush1.msra.mxu0 %v2586
    %2605 = vmatprep.subr.mxu0 0.0
    %2606 = vmatpush1.msra.mxu0 %v2587
    %2607 = vmatprep.subr.mxu0 0.0
    %2608 = vmatpush1.msra.mxu0 %v2588
    %2609 = vmatprep.subr.mxu0 0.0
    %2610 = vmatpush1.msra.mxu0 %v2589
    %2611 = vmatprep.subr.mxu0 0.0
    %2612 = vmatpush1.msra.mxu0 %v2590
    %2613 = vmatprep.subr.mxu0 0.0
    %2614 = vmatpush1.msra.mxu0 %v2591
    %2615 = vmatprep.subr.mxu0 0.0
    %2616 = vmatpush1.msra.mxu0 %v2592
    %2617 = vmatprep.subr.mxu0 0.0
    %2618 = vmatpush1.msra.mxu0 %v2593
    %2619 = vmatprep.subr.mxu0 0.0
    %2620 = vmatpush1.msra.mxu0 %v2594
    %2621 = vmatprep.subr.mxu0 0.0
    %2622 = vmatpush1.msra.mxu0 %v2595
    %2623 = vmatprep.subr.mxu0 0.0
    %2624 = vmatpush1.msra.mxu0 %v2596
    %2625 = vmatprep.subr.mxu0 0.0
    %2626 = vmatpush1.msra.mxu0 %v2597
    %2627 = vmatprep.subr.mxu0 0.0
    %2628 = vmatpush1.msra.mxu0 %v2598
    %2629 = vmatprep.subr.mxu0 0.0
    %2630 = vmatpush1.msra.mxu0 %v2599
    %2631 = vmatprep.subr.mxu0 0.0
    %2632 = vmatpush1.msra.mxu0 %v2600
    %2633 = vmatprep.subr.mxu0 0.0
    %2634 = vmatpush1.msra.mxu0 0.0
    %2635 = vmatprep.subr.mxu0 0.0
    %2636 = vmatpush1.msra.mxu0 0.0
    %2637 = vmatprep.subr.mxu0 0.0
    %2638 = vmatpush1.msra.mxu0 0.0
    %2639 = vmatprep.subr.mxu0 0.0
    %2640 = vmatpush1.msra.mxu0 0.0
    %2641 = vmatprep.subr.mxu0 0.0
    %2642 = vmatpush1.msra.mxu0 0.0
    %2643 = vmatprep.subr.mxu0 0.0
    %2644 = vmatpush1.msra.mxu0 0.0
    %2645 = vmatprep.subr.mxu0 0.0
    %2646 = vmatpush1.msra.mxu0 0.0
    %2647 = vmatprep.subr.mxu0 0.0
    %2648 = vmatpush1.msra.mxu0 0.0
    %2649 = vmatprep.subr.mxu0 0.0
    %2650 = vmatpush1.msra.mxu0 0.0
    %2651 = vmatprep.subr.mxu0 0.0
    %2652 = vmatpush1.msra.mxu0 0.0
    %2653 = vmatprep.subr.mxu0 0.0
    %2654 = vmatpush1.msra.mxu0 0.0
    %2655 = vmatprep.subr.mxu0 0.0
    %2656 = vmatpush1.msra.mxu0 0.0
    %2657 = vmatprep.subr.mxu0 0.0
    %2658 = vmatpush1.msra.mxu0 0.0
    %2659 = vmatprep.subr.mxu0 0.0
    %2660 = vmatpush1.msra.mxu0 0.0
    %2661 = vmatprep.subr.mxu0 0.0
    %2662 = vmatpush1.msra.mxu0 0.0
    %2663 = vmatprep.subr.mxu0 0.0
    %2664 = vmatpush1.msra.mxu0 0.0
    %2665 = vmatprep.mubr.f32.mxu0 0.0
    %2666 = vmatmul.mubr.f32.gmra.mrb[0].mxu0 %v2304
    %v2667 = vpop.f32.mrb[0].mxu0
    %v2668 = vadd.f32 0.0, %v2667
    %v2669 = vpop.f32.mrb[0].mxu0
    %2670 = vdwg.mxu0
    %v2671 = vadd.f32 %v2311, %v2668
    %v2672 = vtanh.pop %v2671
    %v2673 = vmul.f32 %v2493, %v2302
    %v2674 = vmul.f32 %v2402, %v2672
    %v2675 = vadd.f32 %v2673, %v2674
    %v2676 = vtanh.pop %v2675
    %v2677 = vmul.f32 %v2584, %v2676
    %s2678 = scalar_lea.vmem [#allocation10], 48
    %2679 = vst [vmem:[%s2678] sm:$0xff] %v2677
    %s2680 = scalar_lea.vmem [#allocation4], 224
    %v2681 = vld [vmem:[%s2680] sm:$0xff]
    %v2682 = vld [vmem:[%s2680 + $0x8] sm:$0xff]
    %v2683 = vld [vmem:[%s2680 + $0x10] sm:$0xff]
    %v2684 = vld [vmem:[%s2680 + $0x18] sm:$0xff]
    %v2685 = vld [vmem:[#allocation7] sm:$0xff]
    %v2686 = vld [vmem:[#allocation7 + $0x20] sm:$0xff]
    %v2687 = vld [vmem:[#allocation7 + $0x40] sm:$0xff]
    %v2688 = vld [vmem:[#allocation7 + $0x60] sm:$0xff]
    %v2689 = vld [vmem:[#allocation7 + $0x80] sm:$0xff]
    %v2690 = vld [vmem:[#allocation7 + $0xa0] sm:$0xff]
    %v2691 = vld [vmem:[#allocation7 + $0xc0] sm:$0xff]
    %v2692 = vld [vmem:[#allocation7 + $0xe0] sm:$0xff]
    %v2693 = vld [vmem:[#allocation7 + $0x100] sm:$0xff]
    %v2694 = vld [vmem:[#allocation7 + $0x120] sm:$0xff]
    %v2695 = vld [vmem:[#allocation7 + $0x140] sm:$0xff]
    %v2696 = vld [vmem:[#allocation7 + $0x160] sm:$0xff]
    %v2697 = vld [vmem:[#allocation7 + $0x180] sm:$0xff]
    %v2698 = vld [vmem:[#allocation7 + $0x1a0] sm:$0xff]
    %v2699 = vld [vmem:[#allocation7 + $0x1c0] sm:$0xff]
    %v2700 = vld [vmem:[#allocation7 + $0x1e0] sm:$0xff]
    %2701 = vmatprep.subr.mxu0 0.0
    %2702 = vmatpush1.msra.mxu0 %v2685
    %2703 = vmatprep.subr.mxu0 0.0
    %2704 = vmatpush1.msra.mxu0 %v2686
    %2705 = vmatprep.subr.mxu0 0.0
    %2706 = vmatpush1.msra.mxu0 %v2687
    %2707 = vmatprep.subr.mxu0 0.0
    %2708 = vmatpush1.msra.mxu0 %v2688
    %2709 = vmatprep.subr.mxu0 0.0
    %2710 = vmatpush1.msra.mxu0 %v2689
    %2711 = vmatprep.subr.mxu0 0.0
    %2712 = vmatpush1.msra.mxu0 %v2690
    %2713 = vmatprep.subr.mxu0 0.0
    %2714 = vmatpush1.msra.mxu0 %v2691
    %2715 = vmatprep.subr.mxu0 0.0
    %2716 = vmatpush1.msra.mxu0 %v2692
    %2717 = vmatprep.subr.mxu0 0.0
    %2718 = vmatpush1.msra.mxu0 %v2693
    %2719 = vmatprep.subr.mxu0 0.0
    %2720 = vmatpush1.msra.mxu0 %v2694
    %2721 = vmatprep.subr.mxu0 0.0
    %2722 = vmatpush1.msra.mxu0 %v2695
    %2723 = vmatprep.subr.mxu0 0.0
    %2724 = vmatpush1.msra.mxu0 %v2696
    %2725 = vmatprep.subr.mxu0 0.0
    %2726 = vmatpush1.msra.mxu0 %v2697
    %2727 = vmatprep.subr.mxu0 0.0
    %2728 = vmatpush1.msra.mxu0 %v2698
    %2729 = vmatprep.subr.mxu0 0.0
    %2730 = vmatpush1.msra.mxu0 %v2699
    %2731 = vmatprep.subr.mxu0 0.0
    %2732 = vmatpush1.msra.mxu0 %v2700
    %2733 = vmatprep.subr.mxu0 0.0
    %2734 = vmatpush1.msra.mxu0 0.0
    %2735 = vmatprep.subr.mxu0 0.0
    %2736 = vmatpush1.msra.mxu0 0.0
    %2737 = vmatprep.subr.mxu0 0.0
    %2738 = vmatpush1.msra.mxu0 0.0
    %2739 = vmatprep.subr.mxu0 0.0
    %2740 = vmatpush1.msra.mxu0 0.0
    %2741 = vmatprep.subr.mxu0 0.0
    %2742 = vmatpush1.msra.mxu0 0.0
    %2743 = vmatprep.subr.mxu0 0.0
    %2744 = vmatpush1.msra.mxu0 0.0
    %2745 = vmatprep.subr.mxu0 0.0
    %2746 = vmatpush1.msra.mxu0 0.0
    %2747 = vmatprep.subr.mxu0 0.0
    %2748 = vmatpush1.msra.mxu0 0.0
    %2749 = vmatprep.subr.mxu0 0.0
    %2750 = vmatpush1.msra.mxu0 0.0
    %2751 = vmatprep.subr.mxu0 0.0
    %2752 = vmatpush1.msra.mxu0 0.0
    %2753 = vmatprep.subr.mxu0 0.0
    %2754 = vmatpush1.msra.mxu0 0.0
    %2755 = vmatprep.subr.mxu0 0.0
    %2756 = vmatpush1.msra.mxu0 0.0
    %2757 = vmatprep.subr.mxu0 0.0
    %2758 = vmatpush1.msra.mxu0 0.0
    %2759 = vmatprep.subr.mxu0 0.0
    %2760 = vmatpush1.msra.mxu0 0.0
    %2761 = vmatprep.subr.mxu0 0.0
    %2762 = vmatpush1.msra.mxu0 0.0
    %2763 = vmatprep.subr.mxu0 0.0
    %2764 = vmatpush1.msra.mxu0 0.0
    %2765 = vmatprep.mubr.f32.mxu0 0.0
    %2766 = vmatmul.mubr.f32.gmra.mrb[0].mxu0 %v2677
    %v2767 = vpop.f32.mrb[0].mxu0
    %v2768 = vadd.f32 0.0, %v2767
    %v2769 = vpop.f32.mrb[0].mxu0
    %2770 = vdwg.mxu0
    %v2771 = vadd.f32 %v2681, %v2768
    %v2772 = vmul.f32 %v2771, 0.5
    %v2773 = vtanh.pop %v2772
    %v2774 = vmul.f32 %v2773, 0.5
    %v2775 = vadd.f32 %v2774, 0.5
    %v2776 = vld [vmem:[#allocation7 + $0x8] sm:$0xff]
    %v2777 = vld [vmem:[#allocation7 + $0x28] sm:$0xff]
    %v2778 = vld [vmem:[#allocation7 + $0x48] sm:$0xff]
    %v2779 = vld [vmem:[#allocation7 + $0x68] sm:$0xff]
    %v2780 = vld [vmem:[#allocation7 + $0x88] sm:$0xff]
    %v2781 = vld [vmem:[#allocation7 + $0xa8] sm:$0xff]
    %v2782 = vld [vmem:[#allocation7 + $0xc8] sm:$0xff]
    %v2783 = vld [vmem:[#allocation7 + $0xe8] sm:$0xff]
    %v2784 = vld [vmem:[#allocation7 + $0x108] sm:$0xff]
    %v2785 = vld [vmem:[#allocation7 + $0x128] sm:$0xff]
    %v2786 = vld [vmem:[#allocation7 + $0x148] sm:$0xff]
    %v2787 = vld [vmem:[#allocation7 + $0x168] sm:$0xff]
    %v2788 = vld [vmem:[#allocation7 + $0x188] sm:$0xff]
    %v2789 = vld [vmem:[#allocation7 + $0x1a8] sm:$0xff]
    %v2790 = vld [vmem:[#allocation7 + $0x1c8] sm:$0xff]
    %v2791 = vld [vmem:[#allocation7 + $0x1e8] sm:$0xff]
    %2792 = vmatprep.subr.mxu0 0.0
    %2793 = vmatpush1.msra.mxu0 %v2776
    %2794 = vmatprep.subr.mxu0 0.0
    %2795 = vmatpush1.msra.mxu0 %v2777
    %2796 = vmatprep.subr.mxu0 0.0
    %2797 = vmatpush1.msra.mxu0 %v2778
    %2798 = vmatprep.subr.mxu0 0.0
    %2799 = vmatpush1.msra.mxu0 %v2779
    %2800 = vmatprep.subr.mxu0 0.0
    %2801 = vmatpush1.msra.mxu0 %v2780
    %2802 = vmatprep.subr.mxu0 0.0
    %2803 = vmatpush1.msra.mxu0 %v2781
    %2804 = vmatprep.subr.mxu0 0.0
    %2805 = vmatpush1.msra.mxu0 %v2782
    %2806 = vmatprep.subr.mxu0 0.0
    %2807 = vmatpush1.msra.mxu0 %v2783
    %2808 = vmatprep.subr.mxu0 0.0
    %2809 = vmatpush1.msra.mxu0 %v2784
    %2810 = vmatprep.subr.mxu0 0.0
    %2811 = vmatpush1.msra.mxu0 %v2785
    %2812 = vmatprep.subr.mxu0 0.0
    %2813 = vmatpush1.msra.mxu0 %v2786
    %2814 = vmatprep.subr.mxu0 0.0
    %2815 = vmatpush1.msra.mxu0 %v2787
    %2816 = vmatprep.subr.mxu0 0.0
    %2817 = vmatpush1.msra.mxu0 %v2788
    %2818 = vmatprep.subr.mxu0 0.0
    %2819 = vmatpush1.msra.mxu0 %v2789
    %2820 = vmatprep.subr.mxu0 0.0
    %2821 = vmatpush1.msra.mxu0 %v2790
    %2822 = vmatprep.subr.mxu0 0.0
    %2823 = vmatpush1.msra.mxu0 %v2791
    %2824 = vmatprep.subr.mxu0 0.0
    %2825 = vmatpush1.msra.mxu0 0.0
    %2826 = vmatprep.subr.mxu0 0.0
    %2827 = vmatpush1.msra.mxu0 0.0
    %2828 = vmatprep.subr.mxu0 0.0
    %2829 = vmatpush1.msra.mxu0 0.0
    %2830 = vmatprep.subr.mxu0 0.0
    %2831 = vmatpush1.msra.mxu0 0.0
    %2832 = vmatprep.subr.mxu0 0.0
    %2833 = vmatpush1.msra.mxu0 0.0
    %2834 = vmatprep.subr.mxu0 0.0
    %2835 = vmatpush1.msra.mxu0 0.0
    %2836 = vmatprep.subr.mxu0 0.0
    %2837 = vmatpush1.msra.mxu0 0.0
    %2838 = vmatprep.subr.mxu0 0.0
    %2839 = vmatpush1.msra.mxu0 0.0
    %2840 = vmatprep.subr.mxu0 0.0
    %2841 = vmatpush1.msra.mxu0 0.0
    %2842 = vmatprep.subr.mxu0 0.0
    %2843 = vmatpush1.msra.mxu0 0.0
    %2844 = vmatprep.subr.mxu0 0.0
    %2845 = vmatpush1.msra.mxu0 0.0
    %2846 = vmatprep.subr.mxu0 0.0
    %2847 = vmatpush1.msra.mxu0 0.0
    %2848 = vmatprep.subr.mxu0 0.0
    %2849 = vmatpush1.msra.mxu0 0.0
    %2850 = vmatprep.subr.mxu0 0.0
    %2851 = vmatpush1.msra.mxu0 0.0
    %2852 = vmatprep.subr.mxu0 0.0
    %2853 = vmatpush1.msra.mxu0 0.0
    %2854 = vmatprep.subr.mxu0 0.0
    %2855 = vmatpush1.msra.mxu0 0.0
    %2856 = vmatprep.mubr.f32.mxu0 0.0
    %2857 = vmatmul.mubr.f32.gmra.mrb[0].mxu0 %v2677
    %v2858 = vpop.f32.mrb[0].mxu0
    %v2859 = vadd.f32 0.0, %v2858
    %v2860 = vpop.f32.mrb[0].mxu0
    %2861 = vdwg.mxu0
    %v2862 = vadd.f32 %v2682, %v2859
    %v2863 = vmul.f32 %v2862, 0.5
    %v2864 = vtanh.pop %v2863
    %v2865 = vmul.f32 %v2864, 0.5
    %v2866 = vadd.f32 %v2865, 0.5
    %v2867 = vld [vmem:[#allocation7 + $0x10] sm:$0xff]
    %v2868 = vld [vmem:[#allocation7 + $0x30] sm:$0xff]
    %v2869 = vld [vmem:[#allocation7 + $0x50] sm:$0xff]
    %v2870 = vld [vmem:[#allocation7 + $0x70] sm:$0xff]
    %v2871 = vld [vmem:[#allocation7 + $0x90] sm:$0xff]
    %v2872 = vld [vmem:[#allocation7 + $0xb0] sm:$0xff]
    %v2873 = vld [vmem:[#allocation7 + $0xd0] sm:$0xff]
    %v2874 = vld [vmem:[#allocation7 + $0xf0] sm:$0xff]
    %v2875 = vld [vmem:[#allocation7 + $0x110] sm:$0xff]
    %v2876 = vld [vmem:[#allocation7 + $0x130] sm:$0xff]
    %v2877 = vld [vmem:[#allocation7 + $0x150] sm:$0xff]
    %v2878 = vld [vmem:[#allocation7 + $0x170] sm:$0xff]
    %v2879 = vld [vmem:[#allocation7 + $0x190] sm:$0xff]
    %v2880 = vld [vmem:[#allocation7 + $0x1b0] sm:$0xff]
    %v2881 = vld [vmem:[#allocation7 + $0x1d0] sm:$0xff]
    %v2882 = vld [vmem:[#allocation7 + $0x1f0] sm:$0xff]
    %2883 = vmatprep.subr.mxu0 0.0
    %2884 = vmatpush1.msra.mxu0 %v2867
    %2885 = vmatprep.subr.mxu0 0.0
    %2886 = vmatpush1.msra.mxu0 %v2868
    %2887 = vmatprep.subr.mxu0 0.0
    %2888 = vmatpush1.msra.mxu0 %v2869
    %2889 = vmatprep.subr.mxu0 0.0
    %2890 = vmatpush1.msra.mxu0 %v2870
    %2891 = vmatprep.subr.mxu0 0.0
    %2892 = vmatpush1.msra.mxu0 %v2871
    %2893 = vmatprep.subr.mxu0 0.0
    %2894 = vmatpush1.msra.mxu0 %v2872
    %2895 = vmatprep.subr.mxu0 0.0
    %2896 = vmatpush1.msra.mxu0 %v2873
    %2897 = vmatprep.subr.mxu0 0.0
    %2898 = vmatpush1.msra.mxu0 %v2874
    %2899 = vmatprep.subr.mxu0 0.0
    %2900 = vmatpush1.msra.mxu0 %v2875
    %2901 = vmatprep.subr.mxu0 0.0
    %2902 = vmatpush1.msra.mxu0 %v2876
    %2903 = vmatprep.subr.mxu0 0.0
    %2904 = vmatpush1.msra.mxu0 %v2877
    %2905 = vmatprep.subr.mxu0 0.0
    %2906 = vmatpush1.msra.mxu0 %v2878
    %2907 = vmatprep.subr.mxu0 0.0
    %2908 = vmatpush1.msra.mxu0 %v2879
    %2909 = vmatprep.subr.mxu0 0.0
    %2910 = vmatpush1.msra.mxu0 %v2880
    %2911 = vmatprep.subr.mxu0 0.0
    %2912 = vmatpush1.msra.mxu0 %v2881
    %2913 = vmatprep.subr.mxu0 0.0
    %2914 = vmatpush1.msra.mxu0 %v2882
    %2915 = vmatprep.subr.mxu0 0.0
    %2916 = vmatpush1.msra.mxu0 0.0
    %2917 = vmatprep.subr.mxu0 0.0
    %2918 = vmatpush1.msra.mxu0 0.0
    %2919 = vmatprep.subr.mxu0 0.0
    %2920 = vmatpush1.msra.mxu0 0.0
    %2921 = vmatprep.subr.mxu0 0.0
    %2922 = vmatpush1.msra.mxu0 0.0
    %2923 = vmatprep.subr.mxu0 0.0
    %2924 = vmatpush1.msra.mxu0 0.0
    %2925 = vmatprep.subr.mxu0 0.0
    %2926 = vmatpush1.msra.mxu0 0.0
    %2927 = vmatprep.subr.mxu0 0.0
    %2928 = vmatpush1.msra.mxu0 0.0
    %2929 = vmatprep.subr.mxu0 0.0
    %2930 = vmatpush1.msra.mxu0 0.0
    %2931 = vmatprep.subr.mxu0 0.0
    %2932 = vmatpush1.msra.mxu0 0.0
    %2933 = vmatprep.subr.mxu0 0.0
    %2934 = vmatpush1.msra.mxu0 0.0
    %2935 = vmatprep.subr.mxu0 0.0
    %2936 = vmatpush1.msra.mxu0 0.0
    %2937 = vmatprep.subr.mxu0 0.0
    %2938 = vmatpush1.msra.mxu0 0.0
    %2939 = vmatprep.subr.mxu0 0.0
    %2940 = vmatpush1.msra.mxu0 0.0
    %2941 = vmatprep.subr.mxu0 0.0
    %2942 = vmatpush1.msra.mxu0 0.0
    %2943 = vmatprep.subr.mxu0 0.0
    %2944 = vmatpush1.msra.mxu0 0.0
    %2945 = vmatprep.subr.mxu0 0.0
    %2946 = vmatpush1.msra.mxu0 0.0
    %2947 = vmatprep.mubr.f32.mxu0 0.0
    %2948 = vmatmul.mubr.f32.gmra.mrb[0].mxu0 %v2677
    %v2949 = vpop.f32.mrb[0].mxu0
    %v2950 = vadd.f32 0.0, %v2949
    %v2951 = vpop.f32.mrb[0].mxu0
    %2952 = vdwg.mxu0
    %v2953 = vadd.f32 %v2683, %v2950
    %v2954 = vmul.f32 %v2953, 0.5
    %v2955 = vtanh.pop %v2954
    %v2956 = vmul.f32 %v2955, 0.5
    %v2957 = vadd.f32 %v2956, 0.5
    %v2958 = vld [vmem:[#allocation7 + $0x18] sm:$0xff]
    %v2959 = vld [vmem:[#allocation7 + $0x38] sm:$0xff]
    %v2960 = vld [vmem:[#allocation7 + $0x58] sm:$0xff]
    %v2961 = vld [vmem:[#allocation7 + $0x78] sm:$0xff]
    %v2962 = vld [vmem:[#allocation7 + $0x98] sm:$0xff]
    %v2963 = vld [vmem:[#allocation7 + $0xb8] sm:$0xff]
    %v2964 = vld [vmem:[#allocation7 + $0xd8] sm:$0xff]
    %v2965 = vld [vmem:[#allocation7 + $0xf8] sm:$0xff]
    %v2966 = vld [vmem:[#allocation7 + $0x118] sm:$0xff]
    %v2967 = vld [vmem:[#allocation7 + $0x138] sm:$0xff]
    %v2968 = vld [vmem:[#allocation7 + $0x158] sm:$0xff]
    %v2969 = vld [vmem:[#allocation7 + $0x178] sm:$0xff]
    %v2970 = vld [vmem:[#allocation7 + $0x198] sm:$0xff]
    %v2971 = vld [vmem:[#allocation7 + $0x1b8] sm:$0xff]
    %v2972 = vld [vmem:[#allocation7 + $0x1d8] sm:$0xff]
    %v2973 = vld [vmem:[#allocation7 + $0x1f8] sm:$0xff]
    %2974 = vmatprep.subr.mxu0 0.0
    %2975 = vmatpush1.msra.mxu0 %v2958
    %2976 = vmatprep.subr.mxu0 0.0
    %2977 = vmatpush1.msra.mxu0 %v2959
    %2978 = vmatprep.subr.mxu0 0.0
    %2979 = vmatpush1.msra.mxu0 %v2960
    %2980 = vmatprep.subr.mxu0 0.0
    %2981 = vmatpush1.msra.mxu0 %v2961
    %2982 = vmatprep.subr.mxu0 0.0
    %2983 = vmatpush1.msra.mxu0 %v2962
    %2984 = vmatprep.subr.mxu0 0.0
    %2985 = vmatpush1.msra.mxu0 %v2963
    %2986 = vmatprep.subr.mxu0 0.0
    %2987 = vmatpush1.msra.mxu0 %v2964
    %2988 = vmatprep.subr.mxu0 0.0
    %2989 = vmatpush1.msra.mxu0 %v2965
    %2990 = vmatprep.subr.mxu0 0.0
    %2991 = vmatpush1.msra.mxu0 %v2966
    %2992 = vmatprep.subr.mxu0 0.0
    %2993 = vmatpush1.msra.mxu0 %v2967
    %2994 = vmatprep.subr.mxu0 0.0
    %2995 = vmatpush1.msra.mxu0 %v2968
    %2996 = vmatprep.subr.mxu0 0.0
    %2997 = vmatpush1.msra.mxu0 %v2969
    %2998 = vmatprep.subr.mxu0 0.0
    %2999 = vmatpush1.msra.mxu0 %v2970
    %3000 = vmatprep.subr.mxu0 0.0
    %3001 = vmatpush1.msra.mxu0 %v2971
    %3002 = vmatprep.subr.mxu0 0.0
    %3003 = vmatpush1.msra.mxu0 %v2972
    %3004 = vmatprep.subr.mxu0 0.0
    %3005 = vmatpush1.msra.mxu0 %v2973
    %3006 = vmatprep.subr.mxu0 0.0
    %3007 = vmatpush1.msra.mxu0 0.0
    %3008 = vmatprep.subr.mxu0 0.0
    %3009 = vmatpush1.msra.mxu0 0.0
    %3010 = vmatprep.subr.mxu0 0.0
    %3011 = vmatpush1.msra.mxu0 0.0
    %3012 = vmatprep.subr.mxu0 0.0
    %3013 = vmatpush1.msra.mxu0 0.0
    %3014 = vmatprep.subr.mxu0 0.0
    %3015 = vmatpush1.msra.mxu0 0.0
    %3016 = vmatprep.subr.mxu0 0.0
    %3017 = vmatpush1.msra.mxu0 0.0
    %3018 = vmatprep.subr.mxu0 0.0
    %3019 = vmatpush1.msra.mxu0 0.0
    %3020 = vmatprep.subr.mxu0 0.0
    %3021 = vmatpush1.msra.mxu0 0.0
    %3022 = vmatprep.subr.mxu0 0.0
    %3023 = vmatpush1.msra.mxu0 0.0
    %3024 = vmatprep.subr.mxu0 0.0
    %3025 = vmatpush1.msra.mxu0 0.0
    %3026 = vmatprep.subr.mxu0 0.0
    %3027 = vmatpush1.msra.mxu0 0.0
    %3028 = vmatprep.subr.mxu0 0.0
    %3029 = vmatpush1.msra.mxu0 0.0
    %3030 = vmatprep.subr.mxu0 0.0
    %3031 = vmatpush1.msra.mxu0 0.0
    %3032 = vmatprep.subr.mxu0 0.0
    %3033 = vmatpush1.msra.mxu0 0.0
    %3034 = vmatprep.subr.mxu0 0.0
    %3035 = vmatpush1.msra.mxu0 0.0
    %3036 = vmatprep.subr.mxu0 0.0
    %3037 = vmatpush1.msra.mxu0 0.0
    %3038 = vmatprep.mubr.f32.mxu0 0.0
    %3039 = vmatmul.mubr.f32.gmra.mrb[0].mxu0 %v2677
    %v3040 = vpop.f32.mrb[0].mxu0
    %v3041 = vadd.f32 0.0, %v3040
    %v3042 = vpop.f32.mrb[0].mxu0
    %3043 = vdwg.mxu0
    %v3044 = vadd.f32 %v2684, %v3041
    %v3045 = vtanh.pop %v3044
    %v3046 = vmul.f32 %v2866, %v2675
    %v3047 = vmul.f32 %v2775, %v3045
    %v3048 = vadd.f32 %v3046, %v3047
    %v3049 = vtanh.pop %v3048
    %v3050 = vmul.f32 %v2957, %v3049
    %s3051 = scalar_lea.vmem [#allocation10], 56
    %3052 = vst [vmem:[%s3051] sm:$0xff] %v3050
    %3053 = vst [vmem:[#allocation2] sm:$0xff] %v3050
    %3054 = vst [vmem:[#allocation3] sm:$0xff] %v3048
    // Predicated region
    $region34: #{tpu_custom_call.1} parent=1 // pred_check
      %p3055 = pneg %p61
    $region35: #{tpu_custom_call.1} parent=1 // pred_check_branch
      %3057 = sbr.rel (%p3055) target = $region37
    $region36: #{tpu_custom_call.1} parent=1 // pred_region
      %3058 = vst [vmem:[#allocation11] sm:$0xff] %v3050
      %3059 = vst [vmem:[#allocation13] sm:$0xff] %v3048
    $region37: #{tpu_custom_call.1} parent=1 // pred_fallthru
      _
    // Predicated region
    $region38: #{tpu_custom_call.1} parent=1 // pred_check
      _
    $region39: #{tpu_custom_call.1} parent=1 // pred_check_branch
      %3061 = sbr.rel (0) target = $region41
    $region40: #{tpu_custom_call.1} parent=1 // pred_region
      %s3063 = ssub.s32 1024, 1024
      %3064 = vsyncadd [#allocation6], %s3063
      %s3065 = sshll.u32 [#allocation10], 4
      %s3066 = int_to_ptr.vmem [resolvable:$true] %s3065
      %3071 = dma.vmem_to_hbm [thread:$0]  %s3066, 1024, %s4, [#allocation6], 128, 128, 8
    $region41: #{tpu_custom_call.1} parent=1 // pred_fallthru
      _
    // Predicated region
    $region42: #{tpu_custom_call.1} parent=1 // pred_check
      _
    $region43: #{tpu_custom_call.1} parent=1 // pred_check_branch
      %3073 = sbr.rel (0) target = $region45
    $region44: #{tpu_custom_call.1} parent=1 // pred_region
      %s3075 = ssub.s32 128, 128
      %3076 = vsyncadd [#allocation12], %s3075
      %s3078 = sshll.u32 [#allocation11], 4
      %s3079 = int_to_ptr.vmem [resolvable:$true] %s3078
      %3081 = dma.vmem_to_hbm [thread:$0]  %s3079, 128, %s5, [#allocation12]
    $region45: #{tpu_custom_call.1} parent=1 // pred_fallthru
      _
    // Predicated region
    $region46: #{tpu_custom_call.1} parent=1 // pred_check
      _
    $region47: #{tpu_custom_call.1} parent=1 // pred_check_branch
      %3083 = sbr.rel (0) target = $region49
    $region48: #{tpu_custom_call.1} parent=1 // pred_region
      %s3085 = ssub.s32 128, 128
      %3086 = vsyncadd [#allocation12], %s3085
      %s3088 = sshll.u32 [#allocation13], 4
      %s3089 = int_to_ptr.vmem [resolvable:$true] %s3088
      %3091 = dma.vmem_to_hbm [thread:$0]  %s3089, 128, %s6, [#allocation12]
    $region49: #{tpu_custom_call.1} parent=1 // pred_fallthru
      _
    // Predicated region
    $region50: #{tpu_custom_call.1} parent=1 // pred_check
      _
    $region51: #{tpu_custom_call.1} parent=1 // pred_check_branch
      %3093 = sbr.rel (0) target = $region53
    $region52: #{tpu_custom_call.1} parent=1 // pred_region
      %3094 = dma.done [#allocation6], 1024
    $region53: #{tpu_custom_call.1} parent=1 // pred_fallthru
      _
    // Predicated region
    $region54: #{tpu_custom_call.1} parent=1 // pred_check
      _
    $region55: #{tpu_custom_call.1} parent=1 // pred_check_branch
      %3096 = sbr.rel (0) target = $region57
    $region56: #{tpu_custom_call.1} parent=1 // pred_region
      %3097 = dma.done [#allocation12], 128
    $region57: #{tpu_custom_call.1} parent=1 // pred_fallthru
      _
    // Predicated region
    $region58: #{tpu_custom_call.1} parent=1 // pred_check
      _
    $region59: #{tpu_custom_call.1} parent=1 // pred_check_branch
      %3099 = sbr.rel (0) target = $region61
    $region60: #{tpu_custom_call.1} parent=1 // pred_region
      %3100 = dma.done [#allocation12], 128
    $region61: #{tpu_custom_call.1} parent=1 // pred_fallthru
      _
    %3101 = vsyncpa [#allocation5], 1
    %3102 = vsyncpa [#allocation8], 1
    %3103 = vsyncpa [#allocation6], 1
    %3104 = vsyncpa [#allocation12], 1

</llo_original>
